<compile_context>
chip_gen: v7x
topology: tpu7x:2x2x1
jax: 0.10.0
libtpu: 0.0.40
codegen_flags: <defaults>
</compile_context>

<pallas_src>
import functools

import jax
import jax.numpy as jnp
from jax.experimental import pallas as pl
from jax.experimental.pallas import tpu as pltpu

HIDDEN = 2048  # fixed by the module definition (nn.Linear(d_model, 2048))


def _round_up(a, b):
    return (a + b - 1) // b * b


def _generator_kernel(x_ref, w1_ref, b1_ref, w2_ref, b2_ref, o_ref, h_ref):
    """Grid point (i, j) = (M tile, vocab tile).

    j == 0 : compute H = relu(x @ W1 + b1) for this M tile, use the fresh value
             directly for the first vocab tile and stage it in VMEM.
    j > 0  : reuse the staged H.
    The hidden dim is untiled, so each step is one MXU matmul + bias + store
    (no f32 accumulator read-modify-write).
    """
    j = pl.program_id(1)

    @pl.when(j == 0)
    def _():
        # First linear + ReLU (f32 accumulation on the MXU, bias/ReLU in f32 on the VPU).
        h = jnp.dot(x_ref[...], w1_ref[...], preferred_element_type=jnp.float32)
        h = jnp.maximum(h + b1_ref[...], 0.0)
        hc = h.astype(h_ref.dtype)
        h_ref[...] = hc  # stage for the remaining vocab tiles of this M tile
        # Feed the fresh activation straight into the first vocab tile's matmul
        # (avoids a VMEM store->load round trip on the heaviest step).
        o_ref[...] = (
            jnp.dot(hc, w2_ref[...], preferred_element_type=jnp.float32) + b2_ref[...]
        ).astype(o_ref.dtype)

    @pl.when(j > 0)
    def _():
        o_ref[...] = (
            jnp.dot(h_ref[...], w2_ref[...], preferred_element_type=jnp.float32)
            + b2_ref[...]
        ).astype(o_ref.dtype)


def _vmem_info():
    """Returns (vmem_capacity_bytes, assume_two_tensorcores).

    Falls back to a v7x-conservative 64 MiB if the query is unavailable.
    Heuristic: the 64-MiB-VMEM generation (v7x) has 2 TensorCores per chip that
    share the grid via megacore; v5e/v6e (128 MiB) have 1.
    """
    try:
        cap = int(pltpu.get_tpu_info().vmem_capacity_bytes)
    except Exception:  # pragma: no cover - defensive fallback
        cap = 64 * 1024 * 1024
    return cap, cap <= 80 * 1024 * 1024


@functools.partial(jax.jit, static_argnames=("tm", "tn", "compute_dtype", "out_dtype"))
def generator_forward(x, w1, b1, w2, b2, *, tm=None, tn=None,
                      compute_dtype=jnp.bfloat16, out_dtype=None):
    """x: (..., d_model) -> (..., vocab_num).   y = relu(x @ W1 + b1) @ W2 + b2."""
    orig_shape = x.shape
    d_model = orig_shape[-1]
    vocab = w2.shape[1]
    out_dtype = x.dtype if out_dtype is None else out_dtype
    out_size = jnp.dtype(out_dtype).itemsize
    cds = jnp.dtype(compute_dtype).itemsize

    x2d = x.reshape(-1, d_model)
    M = x2d.shape[0]

    # ---- generation-aware VMEM budget ----------------------------------------
    vmem_cap, two_cores = _vmem_info()
    budget = (vmem_cap * 3) // 4  # ~96 MiB on v5e/v6e (128 MiB), ~48 MiB on v7x (64 MiB)

    # ---- tm: large tiles amortize W2 HBM re-streaming; >=2 M blocks on 2-TC parts.
    if tm is None:
        min_m_blocks = 2 if (two_cores and M >= 512) else 1
        n_m_blocks = max(min_m_blocks, pl.cdiv(M, 1024))
        tm = _round_up(pl.cdiv(M, n_m_blocks), 8)
    tm = max(8, min(_round_up(tm, 8), _round_up(M, 8)))

    vocab_128 = _round_up(vocab, 128)
    if tn is None:
        tn = min(2048, vocab_128)
    tn = max(128, min(_round_up(tn, 128), vocab_128))

    # ---- explicit VMEM budget check -------------------------------------------
    def vmem_usage(tm_, tn_):
        return (d_model * HIDDEN * cds            # W1 resident (single copy)
                + HIDDEN * 4                      # b1 resident (f32)
                + 2 * tm_ * d_model * cds         # x tile (double buffered)
                + 2 * HIDDEN * tn_ * cds          # W2 tile (double buffered)
                + 2 * tn_ * 4                     # b2 tile (double buffered, f32)
                + 2 * tm_ * tn_ * out_size        # out tile (double buffered)
                + tm_ * HIDDEN * cds              # staged H scratch
                + tm_ * HIDDEN * (4 + cds)        # in-kernel f32 H + cast temporaries
                + tm_ * tn_ * 4)                  # in-kernel f32 second-matmul temp

    while vmem_usage(tm, tn) > budget:
        if tn > 512:
            tn = max(512, _round_up(tn // 2, 128))
        elif tm > 64:
            tm = max(64, _round_up(tm // 2, 8))
        elif tn > 128:
            tn = max(128, _round_up(tn // 2, 128))
        elif tm > 8:
            tm = max(8, _round_up(tm // 2, 8))
        else:
            # TODO(synk): for extremely large d_model the resident W1 alone can exceed
            # VMEM; fall back to tiling d_model / streaming W1 in that case.
            break

    M_pad = _round_up(M, tm)
    vocab_pad = _round_up(vocab_128, tn)

    # ---- operand casting / reshaping / padding (layout plumbing, outside kernel) --
    xc = x2d.astype(compute_dtype)
    if M_pad != M:
        xc = jnp.pad(xc, ((0, M_pad - M), (0, 0)))

    w1c = w1.astype(compute_dtype)                    # (d_model, HIDDEN), VMEM resident
    b1c = b1.astype(jnp.float32).reshape(1, HIDDEN)   # (1, HIDDEN), VMEM resident
    w2c = w2.astype(compute_dtype)                    # (HIDDEN, vocab)
    b2c = b2.astype(jnp.float32).reshape(1, vocab)
    if vocab_pad != vocab:
        w2c = jnp.pad(w2c, ((0, 0), (0, vocab_pad - vocab)))
        b2c = jnp.pad(b2c, ((0, 0), (0, vocab_pad - vocab)))

    grid = (M_pad // tm, vocab_pad // tn)
    n_m_blocks = grid[0]

    # Real HBM traffic: x / W1 / b1 / out once; W2 / b2 re-streamed once per M tile.
    bytes_accessed = (
        M_pad * d_model * cds
        + d_model * HIDDEN * cds + HIDDEN * 4
        + n_m_blocks * (HIDDEN * vocab_pad * cds + vocab_pad * 4)
        + M_pad * vocab_pad * out_size
    )

    vmem_limit = min(vmem_cap - 4 * 1024 * 1024, budget + 16 * 1024 * 1024)

    out = pl.pallas_call(
        _generator_kernel,
        out_shape=jax.ShapeDtypeStruct((M_pad, vocab_pad), out_dtype),
        grid_spec=pltpu.PrefetchScalarGridSpec(
            num_scalar_prefetch=0,
            grid=grid,
            in_specs=[
                pl.BlockSpec((tm, d_model), lambda i, j: (i, 0)),     # x tile
                pl.BlockSpec(memory_space=pltpu.MemorySpace.VMEM),    # W1 resident (1 copy)
                pl.BlockSpec(memory_space=pltpu.MemorySpace.VMEM),    # b1 resident (1 copy)
                pl.BlockSpec((HIDDEN, tn), lambda i, j: (0, j)),      # W2 tile
                pl.BlockSpec((1, tn), lambda i, j: (0, j)),           # b2 tile
            ],
            out_specs=pl.BlockSpec((tm, tn), lambda i, j: (i, j)),
            scratch_shapes=[
                pltpu.VMEM((tm, HIDDEN), compute_dtype),              # staged hidden H
            ],
        ),
        compiler_params=pltpu.CompilerParams(
            # vocab tiles reuse the per-M-tile H scratch -> j stays sequential on one
            # core; M tiles are independent -> megacore split on 2-TC parts (v7x).
            dimension_semantics=("parallel", "arbitrary"),
            vmem_limit_bytes=int(vmem_limit),
        ),
        cost_estimate=pl.CostEstimate(
            flops=2 * M_pad * HIDDEN * (d_model + vocab_pad),
            transcendentals=0,
            bytes_accessed=int(bytes_accessed),
        ),
    )(xc, w1c, b1c, w2c, b2c)

    out = out[:M, :vocab]
    return out.reshape(*orig_shape[:-1], vocab)


def init_generator_params(key, d_model, vocab_num, dtype=jnp.float32):
    """Deterministic init matching nn.Linear shapes (stored transposed)."""
    k1, k2, k3, k4 = jax.random.split(key, 4)
    s1 = 1.0 / jnp.sqrt(d_model)
    s2 = 1.0 / jnp.sqrt(HIDDEN)
    w1 = jax.random.uniform(k1, (d_model, HIDDEN), dtype, -s1, s1)    # linear1.weight.T
    b1 = jax.random.uniform(k2, (HIDDEN,), dtype, -s1, s1)
    w2 = jax.random.uniform(k3, (HIDDEN, vocab_num), dtype, -s2, s2)  # linear2.weight.T
    b2 = jax.random.uniform(k4, (vocab_num,), dtype, -s2, s2)
    return w1, b1, w2, b2


if __name__ == "__main__":
    d_model = 32
    vocab_num = 256
    batch, seq = 2, 8

    key = jax.random.PRNGKey(0)
    kx, kp = jax.random.split(key)
    x = jax.random.normal(kx, (batch, seq, d_model), jnp.float32)
    w1, b1, w2, b2 = init_generator_params(kp, d_model, vocab_num)

    out = generator_forward(x, w1, b1, w2, b2)
    out = jax.block_until_ready(out)
    assert out.shape == (batch, seq, vocab_num)

    # Reference with the same precision recipe (bf16 MXU operands, f32 accumulation).
    cd = jnp.bfloat16
    x2 = x.reshape(-1, d_model)
    h_ref = jnp.maximum(
        jnp.dot(x2.astype(cd), w1.astype(cd), preferred_element_type=jnp.float32) + b1,
        0.0,
    ).astype(cd)
    ref = jnp.dot(h_ref, w2.astype(cd), preferred_element_type=jnp.float32) + b2
    ref = ref.reshape(batch, seq, vocab_num).astype(out.dtype)
    assert jnp.allclose(out, ref, atol=2e-2, rtol=2e-2), float(jnp.max(jnp.abs(out - ref)))

    # Loose sanity check against the exact f32 math of the PyTorch module.
    ref32 = jnp.maximum(x @ w1 + b1, 0.0) @ w2 + b2
    assert jnp.allclose(out, ref32, atol=1e-1, rtol=1e-1)

    print("KERNEL_OK")
</pallas_src>

<mosaic_0001>
module attributes {stable_mosaic.version = 11 : i64} {
  func.func @_generator_kernel(%arg0: i32, %arg1: i32, %arg2: memref<16x32xbf16, #tpu.memory_space<vmem>>, %arg3: memref<32x2048xbf16, #tpu.memory_space<vmem>>, %arg4: memref<1x2048xf32, #tpu.memory_space<vmem>>, %arg5: memref<2048x256xbf16, #tpu.memory_space<vmem>>, %arg6: memref<1x256xf32, #tpu.memory_space<vmem>>, %arg7: memref<16x256xf32, #tpu.memory_space<vmem>>, %arg8: memref<16x2048xbf16, #tpu.memory_space<vmem>>) attributes {dimension_semantics = [#tpu.dimension_semantics<parallel>, #tpu.dimension_semantics<arbitrary>], iteration_bounds = array<i64: 1, 1>, scalar_prefetch = 0 : i64, scratch_operands = 1 : i64, tpu.core_type = #tpu.core_type<tc>, window_params = [{transform_indices = @transform_0, window_bounds = array<i64: 16, 32>}, {pipeline_mode = #tpu.pipeline_mode<synchronous>, transform_indices = @transform_1, window_bounds = array<i64: 32, 2048>}, {pipeline_mode = #tpu.pipeline_mode<synchronous>, transform_indices = @transform_2, window_bounds = array<i64: 1, 2048>}, {transform_indices = @transform_3, window_bounds = array<i64: 2048, 256>}, {transform_indices = @transform_4, window_bounds = array<i64: 1, 256>}, {transform_indices = @transform_5, window_bounds = array<i64: 16, 256>}]} {
    %c0_i32 = arith.constant 0 : i32
    %0 = arith.cmpi eq, %arg1, %c0_i32 : i32
    %1 = arith.extui %0 : i1 to i32
    %c0_i32_0 = arith.constant 0 : i32
    %2 = arith.cmpi ne, %1, %c0_i32_0 : i32
    scf.if %2 {
      %c0 = arith.constant 0 : index
      %c0_3 = arith.constant 0 : index
      %6 = vector.load %arg2[%c0, %c0_3] : memref<16x32xbf16, #tpu.memory_space<vmem>>, vector<16x32xbf16>
      %c0_4 = arith.constant 0 : index
      %c0_5 = arith.constant 0 : index
      %7 = vector.load %arg3[%c0_4, %c0_5] : memref<32x2048xbf16, #tpu.memory_space<vmem>>, vector<32x2048xbf16>
      %cst = arith.constant dense<0.000000e+00> : vector<16x2048xf32>
      %8 = tpu.matmul %6, %7, %cst {dimension_numbers = #tpu.dot_dimension_numbers<[1], [0], [0], [1], [0, 0, 1, 1], [], []>} : vector<16x32xbf16>, vector<32x2048xbf16>, vector<16x2048xf32> -> vector<16x2048xf32>
      %c0_6 = arith.constant 0 : index
      %c0_7 = arith.constant 0 : index
      %9 = vector.load %arg4[%c0_6, %c0_7] : memref<1x2048xf32, #tpu.memory_space<vmem>>, vector<1x2048xf32>
      %10 = vector.broadcast %9 : vector<1x2048xf32> to vector<16x2048xf32>
      %11 = arith.addf %8, %10 : vector<16x2048xf32>
      %cst_8 = arith.constant 0.000000e+00 : f32
      %12 = vector.broadcast %cst_8 : f32 to vector<16x2048xf32>
      %13 = arith.maximumf %11, %12 : vector<16x2048xf32>
      %14 = arith.truncf %13 : vector<16x2048xf32> to vector<16x2048xbf16>
      %c0_9 = arith.constant 0 : index
      %c0_10 = arith.constant 0 : index
      %15 = vector.load %arg8[%c0_9, %c0_10] : memref<16x2048xbf16, #tpu.memory_space<vmem>>, vector<16x2048xbf16>
      tpu.vector_store %arg8[%c0_9, %c0_10], %14 {strides = array<i32>} : memref<16x2048xbf16, #tpu.memory_space<vmem>>, vector<16x2048xbf16>,
      %c0_11 = arith.constant 0 : index
      %c0_12 = arith.constant 0 : index
      %16 = vector.load %arg5[%c0_11, %c0_12] : memref<2048x256xbf16, #tpu.memory_space<vmem>>, vector<2048x256xbf16>
      %cst_13 = arith.constant dense<0.000000e+00> : vector<16x256xf32>
      %17 = tpu.matmul %14, %16, %cst_13 {dimension_numbers = #tpu.dot_dimension_numbers<[1], [0], [0], [1], [0, 0, 1, 1], [], []>} : vector<16x2048xbf16>, vector<2048x256xbf16>, vector<16x256xf32> -> vector<16x256xf32>
      %c0_14 = arith.constant 0 : index
      %c0_15 = arith.constant 0 : index
      %18 = vector.load %arg6[%c0_14, %c0_15] : memref<1x256xf32, #tpu.memory_space<vmem>>, vector<1x256xf32>
      %19 = vector.broadcast %18 : vector<1x256xf32> to vector<16x256xf32>
      %20 = arith.addf %17, %19 : vector<16x256xf32>
      %c0_16 = arith.constant 0 : index
      %c0_17 = arith.constant 0 : index
      %21 = vector.load %arg7[%c0_16, %c0_17] : memref<16x256xf32, #tpu.memory_space<vmem>>, vector<16x256xf32>
      tpu.vector_store %arg7[%c0_16, %c0_17], %20 {strides = array<i32>} : memref<16x256xf32, #tpu.memory_space<vmem>>, vector<16x256xf32>,
    } else {
    }
    %c0_i32_1 = arith.constant 0 : i32
    %3 = arith.cmpi sgt, %arg1, %c0_i32_1 : i32
    %4 = arith.extui %3 : i1 to i32
    %c0_i32_2 = arith.constant 0 : i32
    %5 = arith.cmpi ne, %4, %c0_i32_2 : i32
    scf.if %5 {
      %c0 = arith.constant 0 : index
      %c0_3 = arith.constant 0 : index
      %6 = vector.load %arg8[%c0, %c0_3] : memref<16x2048xbf16, #tpu.memory_space<vmem>>, vector<16x2048xbf16>
      %c0_4 = arith.constant 0 : index
      %c0_5 = arith.constant 0 : index
      %7 = vector.load %arg5[%c0_4, %c0_5] : memref<2048x256xbf16, #tpu.memory_space<vmem>>, vector<2048x256xbf16>
      %cst = arith.constant dense<0.000000e+00> : vector<16x256xf32>
      %8 = tpu.matmul %6, %7, %cst {dimension_numbers = #tpu.dot_dimension_numbers<[1], [0], [0], [1], [0, 0, 1, 1], [], []>} : vector<16x2048xbf16>, vector<2048x256xbf16>, vector<16x256xf32> -> vector<16x256xf32>
      %c0_6 = arith.constant 0 : index
      %c0_7 = arith.constant 0 : index
      %9 = vector.load %arg6[%c0_6, %c0_7] : memref<1x256xf32, #tpu.memory_space<vmem>>, vector<1x256xf32>
      %10 = vector.broadcast %9 : vector<1x256xf32> to vector<16x256xf32>
      %11 = arith.addf %8, %10 : vector<16x256xf32>
      %c0_8 = arith.constant 0 : index
      %c0_9 = arith.constant 0 : index
      %12 = vector.load %arg7[%c0_8, %c0_9] : memref<16x256xf32, #tpu.memory_space<vmem>>, vector<16x256xf32>
      tpu.vector_store %arg7[%c0_8, %c0_9], %11 {strides = array<i32>} : memref<16x256xf32, #tpu.memory_space<vmem>>, vector<16x256xf32>,
    } else {
    }
    return
  }
  func.func @transform_0(%arg0: i32, %arg1: i32) -> (i32, i32) {
    %c0_i32 = arith.constant 0 : i32
    %c0_i32_0 = arith.constant 0 : i32
    return %arg0, %c0_i32 : i32, i32
  }
  func.func @transform_1(%arg0: i32, %arg1: i32) -> (i32, i32) {
    %c0_i32 = arith.constant 0 : i32
    %c0_i32_0 = arith.constant 0 : i32
    %c0_i32_1 = arith.constant 0 : i32
    return %c0_i32, %c0_i32_0 : i32, i32
  }
  func.func @transform_2(%arg0: i32, %arg1: i32) -> (i32, i32) {
    %c0_i32 = arith.constant 0 : i32
    %c0_i32_0 = arith.constant 0 : i32
    %c0_i32_1 = arith.constant 0 : i32
    return %c0_i32, %c0_i32_0 : i32, i32
  }
  func.func @transform_3(%arg0: i32, %arg1: i32) -> (i32, i32) {
    %c0_i32 = arith.constant 0 : i32
    %c0_i32_0 = arith.constant 0 : i32
    return %c0_i32, %arg1 : i32, i32
  }
  func.func @transform_4(%arg0: i32, %arg1: i32) -> (i32, i32) {
    %c0_i32 = arith.constant 0 : i32
    %c0_i32_0 = arith.constant 0 : i32
    return %c0_i32, %arg1 : i32, i32
  }
  func.func @transform_5(%arg0: i32, %arg1: i32) -> (i32, i32) {
    %c0_i32 = arith.constant 0 : i32
    return %arg0, %arg1 : i32, i32
  }
}

</mosaic_0001>

<llo_original>
// kernel: generator_forward.1
$region0: #{generator_forward.1}
  #allocation0 [shape = 'u32[]', space=smem, size = 0x4, offset = 0x4, fixed_abs, tag = 'smem constant byte address 0x4 - core index']
  #allocation1 [shape = 'u32[144,128]{1,0:T(1,128)}', space=vmem, size = 0x12000, scoped, tag = 'internal scratch']
  #allocation2 [shape = 'bf16[16,2048]{1,0:T(16,128)(2,1)}', space=vmem, size = 0x10000, scoped, tag = 'scratch operand']
  %s0 = inlined_call_operand.vmem [shape: bf16[16,32], index: 0, kind: input, shape index: {}]
  %s1 = inlined_call_operand.vmem [shape: bf16[32,2048], index: 1, kind: input, shape index: {}]
  %s2 = inlined_call_operand.vmem [shape: f32[1,2048], index: 2, kind: input, shape index: {}]
  %s3 = inlined_call_operand.vmem [shape: bf16[2048,256], index: 3, kind: input, shape index: {}]
  %s4 = inlined_call_operand.vmem [shape: f32[1,256], index: 4, kind: input, shape index: {}]
  %s5 = inlined_call_operand.hbm [shape: f32[16,256], index: 5, kind: output, shape index: {}]
  %s6 = sld [smem:[#allocation0]]
  $region38: #{generator_forward.1} parent=0
    _
  %s8 = ssub.s32 1, %s6
  %s9 = scalar_select 0, %s8, %s6
  $region1: #{generator_forward.1} parent=0
    #allocation3 [shape = 'u8[16384]{0}', space=vmem, size = 0x4000, scoped, tag = 'output window, operand 0, single buffered']
    #allocation4 [shape = 's32[1]{0}', space=sflag, size = 0x4, scoped, tag = 'scoped memory for generator_forward.1']
    %10 = vsyncpa [#allocation4], 0
    // Predicated region
    $region2: #{generator_forward.1} parent=1 // pred_check
      _
    $region3: #{generator_forward.1} parent=1 // pred_check_branch
      %12 = sbr.rel (0) target = $region5
    $region4: #{generator_forward.1} parent=1 // pred_region
      _
    $region5: #{generator_forward.1} parent=1 // pred_fallthru
      _
    // Predicated region
    $region6: #{generator_forward.1} parent=1 // pred_check
      _
    $region7: #{generator_forward.1} parent=1 // pred_check_branch
      %14 = sbr.rel (0) target = $region9
    $region8: #{generator_forward.1} parent=1 // pred_region
      _
    $region9: #{generator_forward.1} parent=1 // pred_fallthru
      _
    // Predicated region
    $region10: #{generator_forward.1} parent=1 // pred_check
      _
    $region11: #{generator_forward.1} parent=1 // pred_check_branch
      %16 = sbr.rel (0) target = $region13
    $region12: #{generator_forward.1} parent=1 // pred_region
      _
    $region13: #{generator_forward.1} parent=1 // pred_fallthru
      _
    // Predicated region
    $region14: #{generator_forward.1} parent=1 // pred_check
      _
    $region15: #{generator_forward.1} parent=1 // pred_check_branch
      %18 = sbr.rel (0) target = $region17
    $region16: #{generator_forward.1} parent=1 // pred_region
      _
    $region17: #{generator_forward.1} parent=1 // pred_fallthru
      _
    // Predicated region
    $region18: #{generator_forward.1} parent=1 // pred_check
      _
    $region19: #{generator_forward.1} parent=1 // pred_check_branch
      %20 = sbr.rel (0) target = $region21
    $region20: #{generator_forward.1} parent=1 // pred_region
      _
    $region21: #{generator_forward.1} parent=1 // pred_fallthru
      _
    %p22 = scmp.eq.s32.totalorder 0, 0
    // Predicated region
    $region22: #{generator_forward.1} parent=1 // pred_check
      %p23 = pneg %p22
    $region23: #{generator_forward.1} parent=1 // pred_check_branch
      %25 = sbr.rel (%p23) target = $region25
    $region24: #{generator_forward.1} parent=1 // pred_region
      %v26 = vld [vmem:[%s0] sm:$0xf]
      %v27 = vld [vmem:[%s0 + $0x4] sm:$0xf]
      %v28 = vld [vmem:[%s1] sm:$0xff]
      %v29 = vld [vmem:[%s1 + $0x8] sm:$0xff]
      %v30 = vld [vmem:[%s1 + $0x10] sm:$0xff]
      %v31 = vld [vmem:[%s1 + $0x18] sm:$0xff]
      %v32 = vld [vmem:[%s1 + $0x20] sm:$0xff]
      %v33 = vld [vmem:[%s1 + $0x28] sm:$0xff]
      %v34 = vld [vmem:[%s1 + $0x30] sm:$0xff]
      %v35 = vld [vmem:[%s1 + $0x38] sm:$0xff]
      %v36 = vld [vmem:[%s1 + $0x40] sm:$0xff]
      %v37 = vld [vmem:[%s1 + $0x48] sm:$0xff]
      %v38 = vld [vmem:[%s1 + $0x50] sm:$0xff]
      %v39 = vld [vmem:[%s1 + $0x58] sm:$0xff]
      %v40 = vld [vmem:[%s1 + $0x60] sm:$0xff]
      %v41 = vld [vmem:[%s1 + $0x68] sm:$0xff]
      %v42 = vld [vmem:[%s1 + $0x70] sm:$0xff]
      %v43 = vld [vmem:[%s1 + $0x78] sm:$0xff]
      %v44 = vld [vmem:[%s1 + $0x80] sm:$0xff]
      %v45 = vld [vmem:[%s1 + $0x88] sm:$0xff]
      %v46 = vld [vmem:[%s1 + $0x90] sm:$0xff]
      %v47 = vld [vmem:[%s1 + $0x98] sm:$0xff]
      %v48 = vld [vmem:[%s1 + $0xa0] sm:$0xff]
      %v49 = vld [vmem:[%s1 + $0xa8] sm:$0xff]
      %v50 = vld [vmem:[%s1 + $0xb0] sm:$0xff]
      %v51 = vld [vmem:[%s1 + $0xb8] sm:$0xff]
      %v52 = vld [vmem:[%s1 + $0xc0] sm:$0xff]
      %v53 = vld [vmem:[%s1 + $0xc8] sm:$0xff]
      %v54 = vld [vmem:[%s1 + $0xd0] sm:$0xff]
      %v55 = vld [vmem:[%s1 + $0xd8] sm:$0xff]
      %v56 = vld [vmem:[%s1 + $0xe0] sm:$0xff]
      %v57 = vld [vmem:[%s1 + $0xe8] sm:$0xff]
      %v58 = vld [vmem:[%s1 + $0xf0] sm:$0xff]
      %v59 = vld [vmem:[%s1 + $0xf8] sm:$0xff]
      %v60 = vld [vmem:[%s2] sm:$0xff]
      %v61 = vld [vmem:[%s2 + $0x8] sm:$0xff]
      %v64 = vlaneseq
      %v65 = vshrl.u32 %v64, 7
      %v66 = vsub.s32 0, %v65
      %v67 = vrot.slane %v60, %v66
      %v68 = vlaneseq
      %v69 = vshrl.u32 %v68, 7
      %v70 = vsub.s32 1, %v69
      %v71 = vrot.slane %v60, %v70
      %v72 = vlaneseq
      %v73 = vshrl.u32 %v72, 7
      %v74 = vsub.s32 2, %v73
      %v75 = vrot.slane %v60, %v74
      %v76 = vlaneseq
      %v77 = vshrl.u32 %v76, 7
      %v78 = vsub.s32 3, %v77
      %v79 = vrot.slane %v60, %v78
      %v80 = vlaneseq
      %v81 = vshrl.u32 %v80, 7
      %v82 = vsub.s32 4, %v81
      %v83 = vrot.slane %v60, %v82
      %v84 = vlaneseq
      %v85 = vshrl.u32 %v84, 7
      %v86 = vsub.s32 5, %v85
      %v87 = vrot.slane %v60, %v86
      %v88 = vlaneseq
      %v89 = vshrl.u32 %v88, 7
      %v90 = vsub.s32 6, %v89
      %v91 = vrot.slane %v60, %v90
      %v92 = vlaneseq
      %v93 = vshrl.u32 %v92, 7
      %v94 = vsub.s32 7, %v93
      %v95 = vrot.slane %v60, %v94
      %v96 = vlaneseq
      %v97 = vshrl.u32 %v96, 7
      %v98 = vsub.s32 0, %v97
      %v99 = vrot.slane %v61, %v98
      %v100 = vlaneseq
      %v101 = vshrl.u32 %v100, 7
      %v102 = vsub.s32 1, %v101
      %v103 = vrot.slane %v61, %v102
      %v104 = vlaneseq
      %v105 = vshrl.u32 %v104, 7
      %v106 = vsub.s32 2, %v105
      %v107 = vrot.slane %v61, %v106
      %v108 = vlaneseq
      %v109 = vshrl.u32 %v108, 7
      %v110 = vsub.s32 3, %v109
      %v111 = vrot.slane %v61, %v110
      %v112 = vlaneseq
      %v113 = vshrl.u32 %v112, 7
      %v114 = vsub.s32 4, %v113
      %v115 = vrot.slane %v61, %v114
      %v116 = vlaneseq
      %v117 = vshrl.u32 %v116, 7
      %v118 = vsub.s32 5, %v117
      %v119 = vrot.slane %v61, %v118
      %v120 = vlaneseq
      %v121 = vshrl.u32 %v120, 7
      %v122 = vsub.s32 6, %v121
      %v123 = vrot.slane %v61, %v122
      %v124 = vlaneseq
      %v125 = vshrl.u32 %v124, 7
      %v126 = vsub.s32 7, %v125
      %v127 = vrot.slane %v61, %v126
      %v146 = vunpack.c.l.b16 %v26
      %v147 = vunpack.c.l.b16 %v27
      %v148 = vpack.c.b16 %v147, %v146
      %v181 = vunpack.c.l.b16 %v28
      %v182 = vunpack.c.h.b16 %v28
      %v183 = vunpack.c.l.b16 %v29
      %v184 = vunpack.c.h.b16 %v29
      %v185 = vunpack.c.l.b16 %v30
      %v186 = vunpack.c.h.b16 %v30
      %v187 = vunpack.c.l.b16 %v31
      %v188 = vunpack.c.h.b16 %v31
      %v189 = vunpack.c.l.b16 %v32
      %v190 = vunpack.c.h.b16 %v32
      %v191 = vunpack.c.l.b16 %v33
      %v192 = vunpack.c.h.b16 %v33
      %v193 = vunpack.c.l.b16 %v34
      %v194 = vunpack.c.h.b16 %v34
      %v195 = vunpack.c.l.b16 %v35
      %v196 = vunpack.c.h.b16 %v35
      %v197 = vunpack.c.l.b16 %v36
      %v198 = vunpack.c.h.b16 %v36
      %v199 = vunpack.c.l.b16 %v37
      %v200 = vunpack.c.h.b16 %v37
      %v201 = vunpack.c.l.b16 %v38
      %v202 = vunpack.c.h.b16 %v38
      %v203 = vunpack.c.l.b16 %v39
      %v204 = vunpack.c.h.b16 %v39
      %v205 = vunpack.c.l.b16 %v40
      %v206 = vunpack.c.h.b16 %v40
      %v207 = vunpack.c.l.b16 %v41
      %v208 = vunpack.c.h.b16 %v41
      %v209 = vunpack.c.l.b16 %v42
      %v210 = vunpack.c.h.b16 %v42
      %v211 = vunpack.c.l.b16 %v43
      %v212 = vunpack.c.h.b16 %v43
      %v213 = vunpack.c.l.b16 %v44
      %v214 = vunpack.c.h.b16 %v44
      %v215 = vunpack.c.l.b16 %v45
      %v216 = vunpack.c.h.b16 %v45
      %v217 = vunpack.c.l.b16 %v46
      %v218 = vunpack.c.h.b16 %v46
      %v219 = vunpack.c.l.b16 %v47
      %v220 = vunpack.c.h.b16 %v47
      %v221 = vunpack.c.l.b16 %v48
      %v222 = vunpack.c.h.b16 %v48
      %v223 = vunpack.c.l.b16 %v49
      %v224 = vunpack.c.h.b16 %v49
      %v225 = vunpack.c.l.b16 %v50
      %v226 = vunpack.c.h.b16 %v50
      %v227 = vunpack.c.l.b16 %v51
      %v228 = vunpack.c.h.b16 %v51
      %v229 = vunpack.c.l.b16 %v52
      %v230 = vunpack.c.h.b16 %v52
      %v231 = vunpack.c.l.b16 %v53
      %v232 = vunpack.c.h.b16 %v53
      %v233 = vunpack.c.l.b16 %v54
      %v234 = vunpack.c.h.b16 %v54
      %v235 = vunpack.c.l.b16 %v55
      %v236 = vunpack.c.h.b16 %v55
      %v237 = vunpack.c.l.b16 %v56
      %v238 = vunpack.c.h.b16 %v56
      %v239 = vunpack.c.l.b16 %v57
      %v240 = vunpack.c.h.b16 %v57
      %v241 = vunpack.c.l.b16 %v58
      %v242 = vunpack.c.h.b16 %v58
      %v243 = vunpack.c.l.b16 %v59
      %v244 = vunpack.c.h.b16 %v59
      %v245 = vpack.c.b16 %v197, %v181
      %v246 = vpack.c.b16 %v198, %v182
      %v247 = vpack.c.b16 %v199, %v183
      %v248 = vpack.c.b16 %v200, %v184
      %v249 = vpack.c.b16 %v201, %v185
      %v250 = vpack.c.b16 %v202, %v186
      %v251 = vpack.c.b16 %v203, %v187
      %v252 = vpack.c.b16 %v204, %v188
      %v253 = vpack.c.b16 %v205, %v189
      %v254 = vpack.c.b16 %v206, %v190
      %v255 = vpack.c.b16 %v207, %v191
      %v256 = vpack.c.b16 %v208, %v192
      %v257 = vpack.c.b16 %v209, %v193
      %v258 = vpack.c.b16 %v210, %v194
      %v259 = vpack.c.b16 %v211, %v195
      %v260 = vpack.c.b16 %v212, %v196
      %v261 = vpack.c.b16 %v229, %v213
      %v262 = vpack.c.b16 %v230, %v214
      %v263 = vpack.c.b16 %v231, %v215
      %v264 = vpack.c.b16 %v232, %v216
      %v265 = vpack.c.b16 %v233, %v217
      %v266 = vpack.c.b16 %v234, %v218
      %v267 = vpack.c.b16 %v235, %v219
      %v268 = vpack.c.b16 %v236, %v220
      %v269 = vpack.c.b16 %v237, %v221
      %v270 = vpack.c.b16 %v238, %v222
      %v271 = vpack.c.b16 %v239, %v223
      %v272 = vpack.c.b16 %v240, %v224
      %v273 = vpack.c.b16 %v241, %v225
      %v274 = vpack.c.b16 %v242, %v226
      %v275 = vpack.c.b16 %v243, %v227
      %v276 = vpack.c.b16 %v244, %v228
      %vm309 = vcmask 261120
      %v311 = vsel %vm309, %v148, 0
      %313 = vmatprep.subr.bf16.mxu0 %v246
      %314 = vmatpush1.bf16.msra.mxu0 %v245
      %315 = vmatprep.subr.bf16.mxu0 %v262
      %316 = vmatpush1.bf16.msra.mxu0 %v261
      %317 = vmatprep.subr.bf16.mxu0 0
      %318 = vmatpush1.bf16.msra.mxu0 0
      %319 = vmatprep.subr.bf16.mxu0 0
      %320 = vmatpush1.bf16.msra.mxu0 0
      %321 = vmatprep.subr.bf16.mxu0 0
      %322 = vmatpush1.bf16.msra.mxu0 0
      %323 = vmatprep.subr.bf16.mxu0 0
      %324 = vmatpush1.bf16.msra.mxu0 0
      %325 = vmatprep.subr.bf16.mxu0 0
      %326 = vmatpush1.bf16.msra.mxu0 0
      %327 = vmatprep.subr.bf16.mxu0 0
      %328 = vmatpush1.bf16.msra.mxu0 0
      %329 = vmatprep.subr.bf16.mxu0 0
      %330 = vmatpush1.bf16.msra.mxu0 0
      %331 = vmatprep.subr.bf16.mxu0 0
      %332 = vmatpush1.bf16.msra.mxu0 0
      %333 = vmatprep.subr.bf16.mxu0 0
      %334 = vmatpush1.bf16.msra.mxu0 0
      %335 = vmatprep.subr.bf16.mxu0 0
      %336 = vmatpush1.bf16.msra.mxu0 0
      %337 = vmatprep.subr.bf16.mxu0 0
      %338 = vmatpush1.bf16.msra.mxu0 0
      %339 = vmatprep.subr.bf16.mxu0 0
      %340 = vmatpush1.bf16.msra.mxu0 0
      %341 = vmatprep.subr.bf16.mxu0 0
      %342 = vmatpush1.bf16.msra.mxu0 0
      %343 = vmatprep.subr.bf16.mxu0 0
      %344 = vmatpush1.bf16.msra.mxu0 0
      %345 = vmatprep.mubr.bf16.mxu0 0
      %346 = vmatmul.mubr.bf16.gmra.mrb[0].mxu0 %v311
      %v347 = vpop.f32.mrb[0].mxu0
      %v348 = vadd.f32 %v67, %v347
      %v349 = vpop.f32.mrb[0].mxu0
      %v350 = vadd.f32 %v71, %v349
      %v351 = vpop.f32.mrb[0].mxu0
      %v352 = vadd.f32 %v67, %v351
      %v353 = vpop.f32.mrb[0].mxu0
      %v354 = vadd.f32 %v71, %v353
      %355 = vdwg.mxu0
      %356 = vmatprep.subr.bf16.mxu0 %v248
      %357 = vmatpush1.bf16.msra.mxu0 %v247
      %358 = vmatprep.subr.bf16.mxu0 %v264
      %359 = vmatpush1.bf16.msra.mxu0 %v263
      %360 = vmatprep.subr.bf16.mxu0 0
      %361 = vmatpush1.bf16.msra.mxu0 0
      %362 = vmatprep.subr.bf16.mxu0 0
      %363 = vmatpush1.bf16.msra.mxu0 0
      %364 = vmatprep.subr.bf16.mxu0 0
      %365 = vmatpush1.bf16.msra.mxu0 0
      %366 = vmatprep.subr.bf16.mxu0 0
      %367 = vmatpush1.bf16.msra.mxu0 0
      %368 = vmatprep.subr.bf16.mxu0 0
      %369 = vmatpush1.bf16.msra.mxu0 0
      %370 = vmatprep.subr.bf16.mxu0 0
      %371 = vmatpush1.bf16.msra.mxu0 0
      %372 = vmatprep.subr.bf16.mxu0 0
      %373 = vmatpush1.bf16.msra.mxu0 0
      %374 = vmatprep.subr.bf16.mxu0 0
      %375 = vmatpush1.bf16.msra.mxu0 0
      %376 = vmatprep.subr.bf16.mxu0 0
      %377 = vmatpush1.bf16.msra.mxu0 0
      %378 = vmatprep.subr.bf16.mxu0 0
      %379 = vmatpush1.bf16.msra.mxu0 0
      %380 = vmatprep.subr.bf16.mxu0 0
      %381 = vmatpush1.bf16.msra.mxu0 0
      %382 = vmatprep.subr.bf16.mxu0 0
      %383 = vmatpush1.bf16.msra.mxu0 0
      %384 = vmatprep.subr.bf16.mxu0 0
      %385 = vmatpush1.bf16.msra.mxu0 0
      %386 = vmatprep.subr.bf16.mxu0 0
      %387 = vmatpush1.bf16.msra.mxu0 0
      %388 = vmatprep.mubr.bf16.mxu0 0
      %389 = vmatmul.mubr.bf16.gmra.mrb[0].mxu0 %v311
      %v390 = vpop.f32.mrb[0].mxu0
      %v391 = vadd.f32 %v75, %v390
      %v392 = vpop.f32.mrb[0].mxu0
      %v393 = vadd.f32 %v79, %v392
      %v394 = vpop.f32.mrb[0].mxu0
      %v395 = vadd.f32 %v75, %v394
      %v396 = vpop.f32.mrb[0].mxu0
      %v397 = vadd.f32 %v79, %v396
      %398 = vdwg.mxu0
      %399 = vmatprep.subr.bf16.mxu0 %v250
      %400 = vmatpush1.bf16.msra.mxu0 %v249
      %401 = vmatprep.subr.bf16.mxu0 %v266
      %402 = vmatpush1.bf16.msra.mxu0 %v265
      %403 = vmatprep.subr.bf16.mxu0 0
      %404 = vmatpush1.bf16.msra.mxu0 0
      %405 = vmatprep.subr.bf16.mxu0 0
      %406 = vmatpush1.bf16.msra.mxu0 0
      %407 = vmatprep.subr.bf16.mxu0 0
      %408 = vmatpush1.bf16.msra.mxu0 0
      %409 = vmatprep.subr.bf16.mxu0 0
      %410 = vmatpush1.bf16.msra.mxu0 0
      %411 = vmatprep.subr.bf16.mxu0 0
      %412 = vmatpush1.bf16.msra.mxu0 0
      %413 = vmatprep.subr.bf16.mxu0 0
      %414 = vmatpush1.bf16.msra.mxu0 0
      %415 = vmatprep.subr.bf16.mxu0 0
      %416 = vmatpush1.bf16.msra.mxu0 0
      %417 = vmatprep.subr.bf16.mxu0 0
      %418 = vmatpush1.bf16.msra.mxu0 0
      %419 = vmatprep.subr.bf16.mxu0 0
      %420 = vmatpush1.bf16.msra.mxu0 0
      %421 = vmatprep.subr.bf16.mxu0 0
      %422 = vmatpush1.bf16.msra.mxu0 0
      %423 = vmatprep.subr.bf16.mxu0 0
      %424 = vmatpush1.bf16.msra.mxu0 0
      %425 = vmatprep.subr.bf16.mxu0 0
      %426 = vmatpush1.bf16.msra.mxu0 0
      %427 = vmatprep.subr.bf16.mxu0 0
      %428 = vmatpush1.bf16.msra.mxu0 0
      %429 = vmatprep.subr.bf16.mxu0 0
      %430 = vmatpush1.bf16.msra.mxu0 0
      %431 = vmatprep.mubr.bf16.mxu0 0
      %432 = vmatmul.mubr.bf16.gmra.mrb[0].mxu0 %v311
      %v433 = vpop.f32.mrb[0].mxu0
      %v434 = vadd.f32 %v83, %v433
      %v435 = vpop.f32.mrb[0].mxu0
      %v436 = vadd.f32 %v87, %v435
      %v437 = vpop.f32.mrb[0].mxu0
      %v438 = vadd.f32 %v83, %v437
      %v439 = vpop.f32.mrb[0].mxu0
      %v440 = vadd.f32 %v87, %v439
      %441 = vdwg.mxu0
      %442 = vmatprep.subr.bf16.mxu0 %v252
      %443 = vmatpush1.bf16.msra.mxu0 %v251
      %444 = vmatprep.subr.bf16.mxu0 %v268
      %445 = vmatpush1.bf16.msra.mxu0 %v267
      %446 = vmatprep.subr.bf16.mxu0 0
      %447 = vmatpush1.bf16.msra.mxu0 0
      %448 = vmatprep.subr.bf16.mxu0 0
      %449 = vmatpush1.bf16.msra.mxu0 0
      %450 = vmatprep.subr.bf16.mxu0 0
      %451 = vmatpush1.bf16.msra.mxu0 0
      %452 = vmatprep.subr.bf16.mxu0 0
      %453 = vmatpush1.bf16.msra.mxu0 0
      %454 = vmatprep.subr.bf16.mxu0 0
      %455 = vmatpush1.bf16.msra.mxu0 0
      %456 = vmatprep.subr.bf16.mxu0 0
      %457 = vmatpush1.bf16.msra.mxu0 0
      %458 = vmatprep.subr.bf16.mxu0 0
      %459 = vmatpush1.bf16.msra.mxu0 0
      %460 = vmatprep.subr.bf16.mxu0 0
      %461 = vmatpush1.bf16.msra.mxu0 0
      %462 = vmatprep.subr.bf16.mxu0 0
      %463 = vmatpush1.bf16.msra.mxu0 0
      %464 = vmatprep.subr.bf16.mxu0 0
      %465 = vmatpush1.bf16.msra.mxu0 0
      %466 = vmatprep.subr.bf16.mxu0 0
      %467 = vmatpush1.bf16.msra.mxu0 0
      %468 = vmatprep.subr.bf16.mxu0 0
      %469 = vmatpush1.bf16.msra.mxu0 0
      %470 = vmatprep.subr.bf16.mxu0 0
      %471 = vmatpush1.bf16.msra.mxu0 0
      %472 = vmatprep.subr.bf16.mxu0 0
      %473 = vmatpush1.bf16.msra.mxu0 0
      %474 = vmatprep.mubr.bf16.mxu0 0
      %475 = vmatmul.mubr.bf16.gmra.mrb[0].mxu0 %v311
      %v476 = vpop.f32.mrb[0].mxu0
      %v477 = vadd.f32 %v91, %v476
      %v478 = vpop.f32.mrb[0].mxu0
      %v479 = vadd.f32 %v95, %v478
      %v480 = vpop.f32.mrb[0].mxu0
      %v481 = vadd.f32 %v91, %v480
      %v482 = vpop.f32.mrb[0].mxu0
      %v483 = vadd.f32 %v95, %v482
      %484 = vdwg.mxu0
      %485 = vmatprep.subr.bf16.mxu0 %v254
      %486 = vmatpush1.bf16.msra.mxu0 %v253
      %487 = vmatprep.subr.bf16.mxu0 %v270
      %488 = vmatpush1.bf16.msra.mxu0 %v269
      %489 = vmatprep.subr.bf16.mxu0 0
      %490 = vmatpush1.bf16.msra.mxu0 0
      %491 = vmatprep.subr.bf16.mxu0 0
      %492 = vmatpush1.bf16.msra.mxu0 0
      %493 = vmatprep.subr.bf16.mxu0 0
      %494 = vmatpush1.bf16.msra.mxu0 0
      %495 = vmatprep.subr.bf16.mxu0 0
      %496 = vmatpush1.bf16.msra.mxu0 0
      %497 = vmatprep.subr.bf16.mxu0 0
      %498 = vmatpush1.bf16.msra.mxu0 0
      %499 = vmatprep.subr.bf16.mxu0 0
      %500 = vmatpush1.bf16.msra.mxu0 0
      %501 = vmatprep.subr.bf16.mxu0 0
      %502 = vmatpush1.bf16.msra.mxu0 0
      %503 = vmatprep.subr.bf16.mxu0 0
      %504 = vmatpush1.bf16.msra.mxu0 0
      %505 = vmatprep.subr.bf16.mxu0 0
      %506 = vmatpush1.bf16.msra.mxu0 0
      %507 = vmatprep.subr.bf16.mxu0 0
      %508 = vmatpush1.bf16.msra.mxu0 0
      %509 = vmatprep.subr.bf16.mxu0 0
      %510 = vmatpush1.bf16.msra.mxu0 0
      %511 = vmatprep.subr.bf16.mxu0 0
      %512 = vmatpush1.bf16.msra.mxu0 0
      %513 = vmatprep.subr.bf16.mxu0 0
      %514 = vmatpush1.bf16.msra.mxu0 0
      %515 = vmatprep.subr.bf16.mxu0 0
      %516 = vmatpush1.bf16.msra.mxu0 0
      %517 = vmatprep.mubr.bf16.mxu0 0
      %518 = vmatmul.mubr.bf16.gmra.mrb[0].mxu0 %v311
      %v519 = vpop.f32.mrb[0].mxu0
      %v520 = vadd.f32 %v99, %v519
      %v521 = vpop.f32.mrb[0].mxu0
      %v522 = vadd.f32 %v103, %v521
      %v523 = vpop.f32.mrb[0].mxu0
      %v524 = vadd.f32 %v99, %v523
      %v525 = vpop.f32.mrb[0].mxu0
      %v526 = vadd.f32 %v103, %v525
      %527 = vdwg.mxu0
      %528 = vmatprep.subr.bf16.mxu0 %v256
      %529 = vmatpush1.bf16.msra.mxu0 %v255
      %530 = vmatprep.subr.bf16.mxu0 %v272
      %531 = vmatpush1.bf16.msra.mxu0 %v271
      %532 = vmatprep.subr.bf16.mxu0 0
      %533 = vmatpush1.bf16.msra.mxu0 0
      %534 = vmatprep.subr.bf16.mxu0 0
      %535 = vmatpush1.bf16.msra.mxu0 0
      %536 = vmatprep.subr.bf16.mxu0 0
      %537 = vmatpush1.bf16.msra.mxu0 0
      %538 = vmatprep.subr.bf16.mxu0 0
      %539 = vmatpush1.bf16.msra.mxu0 0
      %540 = vmatprep.subr.bf16.mxu0 0
      %541 = vmatpush1.bf16.msra.mxu0 0
      %542 = vmatprep.subr.bf16.mxu0 0
      %543 = vmatpush1.bf16.msra.mxu0 0
      %544 = vmatprep.subr.bf16.mxu0 0
      %545 = vmatpush1.bf16.msra.mxu0 0
      %546 = vmatprep.subr.bf16.mxu0 0
      %547 = vmatpush1.bf16.msra.mxu0 0
      %548 = vmatprep.subr.bf16.mxu0 0
      %549 = vmatpush1.bf16.msra.mxu0 0
      %550 = vmatprep.subr.bf16.mxu0 0
      %551 = vmatpush1.bf16.msra.mxu0 0
      %552 = vmatprep.subr.bf16.mxu0 0
      %553 = vmatpush1.bf16.msra.mxu0 0
      %554 = vmatprep.subr.bf16.mxu0 0
      %555 = vmatpush1.bf16.msra.mxu0 0
      %556 = vmatprep.subr.bf16.mxu0 0
      %557 = vmatpush1.bf16.msra.mxu0 0
      %558 = vmatprep.subr.bf16.mxu0 0
      %559 = vmatpush1.bf16.msra.mxu0 0
      %560 = vmatprep.mubr.bf16.mxu0 0
      %561 = vmatmul.mubr.bf16.gmra.mrb[0].mxu0 %v311
      %v562 = vpop.f32.mrb[0].mxu0
      %v563 = vadd.f32 %v107, %v562
      %v564 = vpop.f32.mrb[0].mxu0
      %v565 = vadd.f32 %v111, %v564
      %v566 = vpop.f32.mrb[0].mxu0
      %v567 = vadd.f32 %v107, %v566
      %v568 = vpop.f32.mrb[0].mxu0
      %v569 = vadd.f32 %v111, %v568
      %570 = vdwg.mxu0
      %571 = vmatprep.subr.bf16.mxu0 %v258
      %572 = vmatpush1.bf16.msra.mxu0 %v257
      %573 = vmatprep.subr.bf16.mxu0 %v274
      %574 = vmatpush1.bf16.msra.mxu0 %v273
      %575 = vmatprep.subr.bf16.mxu0 0
      %576 = vmatpush1.bf16.msra.mxu0 0
      %577 = vmatprep.subr.bf16.mxu0 0
      %578 = vmatpush1.bf16.msra.mxu0 0
      %579 = vmatprep.subr.bf16.mxu0 0
      %580 = vmatpush1.bf16.msra.mxu0 0
      %581 = vmatprep.subr.bf16.mxu0 0
      %582 = vmatpush1.bf16.msra.mxu0 0
      %583 = vmatprep.subr.bf16.mxu0 0
      %584 = vmatpush1.bf16.msra.mxu0 0
      %585 = vmatprep.subr.bf16.mxu0 0
      %586 = vmatpush1.bf16.msra.mxu0 0
      %587 = vmatprep.subr.bf16.mxu0 0
      %588 = vmatpush1.bf16.msra.mxu0 0
      %589 = vmatprep.subr.bf16.mxu0 0
      %590 = vmatpush1.bf16.msra.mxu0 0
      %591 = vmatprep.subr.bf16.mxu0 0
      %592 = vmatpush1.bf16.msra.mxu0 0
      %593 = vmatprep.subr.bf16.mxu0 0
      %594 = vmatpush1.bf16.msra.mxu0 0
      %595 = vmatprep.subr.bf16.mxu0 0
      %596 = vmatpush1.bf16.msra.mxu0 0
      %597 = vmatprep.subr.bf16.mxu0 0
      %598 = vmatpush1.bf16.msra.mxu0 0
      %599 = vmatprep.subr.bf16.mxu0 0
      %600 = vmatpush1.bf16.msra.mxu0 0
      %601 = vmatprep.subr.bf16.mxu0 0
      %602 = vmatpush1.bf16.msra.mxu0 0
      %603 = vmatprep.mubr.bf16.mxu0 0
      %604 = vmatmul.mubr.bf16.gmra.mrb[0].mxu0 %v311
      %v605 = vpop.f32.mrb[0].mxu0
      %v606 = vadd.f32 %v115, %v605
      %v607 = vpop.f32.mrb[0].mxu0
      %v608 = vadd.f32 %v119, %v607
      %v609 = vpop.f32.mrb[0].mxu0
      %v610 = vadd.f32 %v115, %v609
      %v611 = vpop.f32.mrb[0].mxu0
      %v612 = vadd.f32 %v119, %v611
      %613 = vdwg.mxu0
      %614 = vmatprep.subr.bf16.mxu0 %v260
      %615 = vmatpush1.bf16.msra.mxu0 %v259
      %616 = vmatprep.subr.bf16.mxu0 %v276
      %617 = vmatpush1.bf16.msra.mxu0 %v275
      %618 = vmatprep.subr.bf16.mxu0 0
      %619 = vmatpush1.bf16.msra.mxu0 0
      %620 = vmatprep.subr.bf16.mxu0 0
      %621 = vmatpush1.bf16.msra.mxu0 0
      %622 = vmatprep.subr.bf16.mxu0 0
      %623 = vmatpush1.bf16.msra.mxu0 0
      %624 = vmatprep.subr.bf16.mxu0 0
      %625 = vmatpush1.bf16.msra.mxu0 0
      %626 = vmatprep.subr.bf16.mxu0 0
      %627 = vmatpush1.bf16.msra.mxu0 0
      %628 = vmatprep.subr.bf16.mxu0 0
      %629 = vmatpush1.bf16.msra.mxu0 0
      %630 = vmatprep.subr.bf16.mxu0 0
      %631 = vmatpush1.bf16.msra.mxu0 0
      %632 = vmatprep.subr.bf16.mxu0 0
      %633 = vmatpush1.bf16.msra.mxu0 0
      %634 = vmatprep.subr.bf16.mxu0 0
      %635 = vmatpush1.bf16.msra.mxu0 0
      %636 = vmatprep.subr.bf16.mxu0 0
      %637 = vmatpush1.bf16.msra.mxu0 0
      %638 = vmatprep.subr.bf16.mxu0 0
      %639 = vmatpush1.bf16.msra.mxu0 0
      %640 = vmatprep.subr.bf16.mxu0 0
      %641 = vmatpush1.bf16.msra.mxu0 0
      %642 = vmatprep.subr.bf16.mxu0 0
      %643 = vmatpush1.bf16.msra.mxu0 0
      %644 = vmatprep.subr.bf16.mxu0 0
      %645 = vmatpush1.bf16.msra.mxu0 0
      %646 = vmatprep.mubr.bf16.mxu0 0
      %647 = vmatmul.mubr.bf16.gmra.mrb[0].mxu0 %v311
      %v648 = vpop.f32.mrb[0].mxu0
      %v649 = vadd.f32 %v123, %v648
      %v650 = vpop.f32.mrb[0].mxu0
      %v651 = vadd.f32 %v127, %v650
      %v652 = vpop.f32.mrb[0].mxu0
      %v653 = vadd.f32 %v123, %v652
      %v654 = vpop.f32.mrb[0].mxu0
      %v655 = vadd.f32 %v127, %v654
      %656 = vdwg.mxu0
      %v657 = vmax.f32 %v348, 0.0
      %v658 = vmax.f32 %v350, 0.0
      %v659 = vmax.f32 %v391, 0.0
      %v660 = vmax.f32 %v393, 0.0
      %v661 = vmax.f32 %v434, 0.0
      %v662 = vmax.f32 %v436, 0.0
      %v663 = vmax.f32 %v477, 0.0
      %v664 = vmax.f32 %v479, 0.0
      %v665 = vmax.f32 %v520, 0.0
      %v666 = vmax.f32 %v522, 0.0
      %v667 = vmax.f32 %v563, 0.0
      %v668 = vmax.f32 %v565, 0.0
      %v669 = vmax.f32 %v606, 0.0
      %v670 = vmax.f32 %v608, 0.0
      %v671 = vmax.f32 %v649, 0.0
      %v672 = vmax.f32 %v651, 0.0
      %v673 = vmax.f32 %v352, 0.0
      %v674 = vmax.f32 %v354, 0.0
      %v675 = vmax.f32 %v395, 0.0
      %v676 = vmax.f32 %v397, 0.0
      %v677 = vmax.f32 %v438, 0.0
      %v678 = vmax.f32 %v440, 0.0
      %v679 = vmax.f32 %v481, 0.0
      %v680 = vmax.f32 %v483, 0.0
      %v681 = vmax.f32 %v524, 0.0
      %v682 = vmax.f32 %v526, 0.0
      %v683 = vmax.f32 %v567, 0.0
      %v684 = vmax.f32 %v569, 0.0
      %v685 = vmax.f32 %v610, 0.0
      %v686 = vmax.f32 %v612, 0.0
      %v687 = vmax.f32 %v653, 0.0
      %v688 = vmax.f32 %v655, 0.0
      %v689 = vpack.c.bf16 %v673, %v657
      %v690 = vpack.c.bf16 %v674, %v658
      %v691 = vpack.c.bf16 %v675, %v659
      %v692 = vpack.c.bf16 %v676, %v660
      %v693 = vpack.c.bf16 %v677, %v661
      %v694 = vpack.c.bf16 %v678, %v662
      %v695 = vpack.c.bf16 %v679, %v663
      %v696 = vpack.c.bf16 %v680, %v664
      %v697 = vpack.c.bf16 %v681, %v665
      %v698 = vpack.c.bf16 %v682, %v666
      %v699 = vpack.c.bf16 %v683, %v667
      %v700 = vpack.c.bf16 %v684, %v668
      %v701 = vpack.c.bf16 %v685, %v669
      %v702 = vpack.c.bf16 %v686, %v670
      %v703 = vpack.c.bf16 %v687, %v671
      %v704 = vpack.c.bf16 %v688, %v672
      %705 = vst [vmem:[#allocation2] sm:$0xff] %v689
      %706 = vst [vmem:[#allocation2 + $0x8] sm:$0xff] %v690
      %707 = vst [vmem:[#allocation2 + $0x10] sm:$0xff] %v691
      %708 = vst [vmem:[#allocation2 + $0x18] sm:$0xff] %v692
      %709 = vst [vmem:[#allocation2 + $0x20] sm:$0xff] %v693
      %710 = vst [vmem:[#allocation2 + $0x28] sm:$0xff] %v694
      %711 = vst [vmem:[#allocation2 + $0x30] sm:$0xff] %v695
      %712 = vst [vmem:[#allocation2 + $0x38] sm:$0xff] %v696
      %713 = vst [vmem:[#allocation2 + $0x40] sm:$0xff] %v697
      %714 = vst [vmem:[#allocation2 + $0x48] sm:$0xff] %v698
      %715 = vst [vmem:[#allocation2 + $0x50] sm:$0xff] %v699
      %716 = vst [vmem:[#allocation2 + $0x58] sm:$0xff] %v700
      %717 = vst [vmem:[#allocation2 + $0x60] sm:$0xff] %v701
      %718 = vst [vmem:[#allocation2 + $0x68] sm:$0xff] %v702
      %719 = vst [vmem:[#allocation2 + $0x70] sm:$0xff] %v703
      %720 = vst [vmem:[#allocation2 + $0x78] sm:$0xff] %v704
      %v721 = vld [vmem:[%s3] sm:$0xff]
      %v722 = vld [vmem:[%s3 + $0x8] sm:$0xff]
      %v723 = vld [vmem:[%s3 + $0x10] sm:$0xff]
      %v724 = vld [vmem:[%s3 + $0x18] sm:$0xff]
      %v725 = vld [vmem:[%s3 + $0x20] sm:$0xff]
      %v726 = vld [vmem:[%s3 + $0x28] sm:$0xff]
      %v727 = vld [vmem:[%s3 + $0x30] sm:$0xff]
      %v728 = vld [vmem:[%s3 + $0x38] sm:$0xff]
      %v729 = vld [vmem:[%s3 + $0x40] sm:$0xff]
      %v730 = vld [vmem:[%s3 + $0x48] sm:$0xff]
      %v731 = vld [vmem:[%s3 + $0x50] sm:$0xff]
      %v732 = vld [vmem:[%s3 + $0x58] sm:$0xff]
      %v733 = vld [vmem:[%s3 + $0x60] sm:$0xff]
      %v734 = vld [vmem:[%s3 + $0x68] sm:$0xff]
      %v735 = vld [vmem:[%s3 + $0x70] sm:$0xff]
      %v736 = vld [vmem:[%s3 + $0x78] sm:$0xff]
      %v737 = vld [vmem:[%s3 + $0x80] sm:$0xff]
      %v738 = vld [vmem:[%s3 + $0x88] sm:$0xff]
      %v739 = vld [vmem:[%s3 + $0x90] sm:$0xff]
      %v740 = vld [vmem:[%s3 + $0x98] sm:$0xff]
      %v741 = vld [vmem:[%s3 + $0xa0] sm:$0xff]
      %v742 = vld [vmem:[%s3 + $0xa8] sm:$0xff]
      %v743 = vld [vmem:[%s3 + $0xb0] sm:$0xff]
      %v744 = vld [vmem:[%s3 + $0xb8] sm:$0xff]
      %v745 = vld [vmem:[%s3 + $0xc0] sm:$0xff]
      %v746 = vld [vmem:[%s3 + $0xc8] sm:$0xff]
      %v747 = vld [vmem:[%s3 + $0xd0] sm:$0xff]
      %v748 = vld [vmem:[%s3 + $0xd8] sm:$0xff]
      %v749 = vld [vmem:[%s3 + $0xe0] sm:$0xff]
      %v750 = vld [vmem:[%s3 + $0xe8] sm:$0xff]
      %v751 = vld [vmem:[%s3 + $0xf0] sm:$0xff]
      %v752 = vld [vmem:[%s3 + $0xf8] sm:$0xff]
      %v753 = vld [vmem:[%s3 + $0x100] sm:$0xff]
      %v754 = vld [vmem:[%s3 + $0x108] sm:$0xff]
      %v755 = vld [vmem:[%s3 + $0x110] sm:$0xff]
      %v756 = vld [vmem:[%s3 + $0x118] sm:$0xff]
      %v757 = vld [vmem:[%s3 + $0x120] sm:$0xff]
      %v758 = vld [vmem:[%s3 + $0x128] sm:$0xff]
      %v759 = vld [vmem:[%s3 + $0x130] sm:$0xff]
      %v760 = vld [vmem:[%s3 + $0x138] sm:$0xff]
      %v761 = vld [vmem:[%s3 + $0x140] sm:$0xff]
      %v762 = vld [vmem:[%s3 + $0x148] sm:$0xff]
      %v763 = vld [vmem:[%s3 + $0x150] sm:$0xff]
      %v764 = vld [vmem:[%s3 + $0x158] sm:$0xff]
      %v765 = vld [vmem:[%s3 + $0x160] sm:$0xff]
      %v766 = vld [vmem:[%s3 + $0x168] sm:$0xff]
      %v767 = vld [vmem:[%s3 + $0x170] sm:$0xff]
      %v768 = vld [vmem:[%s3 + $0x178] sm:$0xff]
      %v769 = vld [vmem:[%s3 + $0x180] sm:$0xff]
      %v770 = vld [vmem:[%s3 + $0x188] sm:$0xff]
      %v771 = vld [vmem:[%s3 + $0x190] sm:$0xff]
      %v772 = vld [vmem:[%s3 + $0x198] sm:$0xff]
      %v773 = vld [vmem:[%s3 + $0x1a0] sm:$0xff]
      %v774 = vld [vmem:[%s3 + $0x1a8] sm:$0xff]
      %v775 = vld [vmem:[%s3 + $0x1b0] sm:$0xff]
      %v776 = vld [vmem:[%s3 + $0x1b8] sm:$0xff]
      %v777 = vld [vmem:[%s3 + $0x1c0] sm:$0xff]
      %v778 = vld [vmem:[%s3 + $0x1c8] sm:$0xff]
      %v779 = vld [vmem:[%s3 + $0x1d0] sm:$0xff]
      %v780 = vld [vmem:[%s3 + $0x1d8] sm:$0xff]
      %v781 = vld [vmem:[%s3 + $0x1e0] sm:$0xff]
      %v782 = vld [vmem:[%s3 + $0x1e8] sm:$0xff]
      %v783 = vld [vmem:[%s3 + $0x1f0] sm:$0xff]
      %v784 = vld [vmem:[%s3 + $0x1f8] sm:$0xff]
      %v785 = vld [vmem:[%s3 + $0x200] sm:$0xff]
      %v786 = vld [vmem:[%s3 + $0x208] sm:$0xff]
      %v787 = vld [vmem:[%s3 + $0x210] sm:$0xff]
      %v788 = vld [vmem:[%s3 + $0x218] sm:$0xff]
      %v789 = vld [vmem:[%s3 + $0x220] sm:$0xff]
      %v790 = vld [vmem:[%s3 + $0x228] sm:$0xff]
      %v791 = vld [vmem:[%s3 + $0x230] sm:$0xff]
      %v792 = vld [vmem:[%s3 + $0x238] sm:$0xff]
      %v793 = vld [vmem:[%s3 + $0x240] sm:$0xff]
      %v794 = vld [vmem:[%s3 + $0x248] sm:$0xff]
      %v795 = vld [vmem:[%s3 + $0x250] sm:$0xff]
      %v796 = vld [vmem:[%s3 + $0x258] sm:$0xff]
      %v797 = vld [vmem:[%s3 + $0x260] sm:$0xff]
      %v798 = vld [vmem:[%s3 + $0x268] sm:$0xff]
      %v799 = vld [vmem:[%s3 + $0x270] sm:$0xff]
      %v800 = vld [vmem:[%s3 + $0x278] sm:$0xff]
      %v801 = vld [vmem:[%s3 + $0x280] sm:$0xff]
      %v802 = vld [vmem:[%s3 + $0x288] sm:$0xff]
      %v803 = vld [vmem:[%s3 + $0x290] sm:$0xff]
      %v804 = vld [vmem:[%s3 + $0x298] sm:$0xff]
      %v805 = vld [vmem:[%s3 + $0x2a0] sm:$0xff]
      %v806 = vld [vmem:[%s3 + $0x2a8] sm:$0xff]
      %v807 = vld [vmem:[%s3 + $0x2b0] sm:$0xff]
      %v808 = vld [vmem:[%s3 + $0x2b8] sm:$0xff]
      %v809 = vld [vmem:[%s3 + $0x2c0] sm:$0xff]
      %v810 = vld [vmem:[%s3 + $0x2c8] sm:$0xff]
      %v811 = vld [vmem:[%s3 + $0x2d0] sm:$0xff]
      %v812 = vld [vmem:[%s3 + $0x2d8] sm:$0xff]
      %v813 = vld [vmem:[%s3 + $0x2e0] sm:$0xff]
      %v814 = vld [vmem:[%s3 + $0x2e8] sm:$0xff]
      %v815 = vld [vmem:[%s3 + $0x2f0] sm:$0xff]
      %v816 = vld [vmem:[%s3 + $0x2f8] sm:$0xff]
      %v817 = vld [vmem:[%s3 + $0x300] sm:$0xff]
      %v818 = vld [vmem:[%s3 + $0x308] sm:$0xff]
      %v819 = vld [vmem:[%s3 + $0x310] sm:$0xff]
      %v820 = vld [vmem:[%s3 + $0x318] sm:$0xff]
      %v821 = vld [vmem:[%s3 + $0x320] sm:$0xff]
      %v822 = vld [vmem:[%s3 + $0x328] sm:$0xff]
      %v823 = vld [vmem:[%s3 + $0x330] sm:$0xff]
      %v824 = vld [vmem:[%s3 + $0x338] sm:$0xff]
      %v825 = vld [vmem:[%s3 + $0x340] sm:$0xff]
      %v826 = vld [vmem:[%s3 + $0x348] sm:$0xff]
      %v827 = vld [vmem:[%s3 + $0x350] sm:$0xff]
      %v828 = vld [vmem:[%s3 + $0x358] sm:$0xff]
      %v829 = vld [vmem:[%s3 + $0x360] sm:$0xff]
      %v830 = vld [vmem:[%s3 + $0x368] sm:$0xff]
      %v831 = vld [vmem:[%s3 + $0x370] sm:$0xff]
      %v832 = vld [vmem:[%s3 + $0x378] sm:$0xff]
      %v833 = vld [vmem:[%s3 + $0x380] sm:$0xff]
      %v834 = vld [vmem:[%s3 + $0x388] sm:$0xff]
      %v835 = vld [vmem:[%s3 + $0x390] sm:$0xff]
      %v836 = vld [vmem:[%s3 + $0x398] sm:$0xff]
      %v837 = vld [vmem:[%s3 + $0x3a0] sm:$0xff]
      %v838 = vld [vmem:[%s3 + $0x3a8] sm:$0xff]
      %v839 = vld [vmem:[%s3 + $0x3b0] sm:$0xff]
      %v840 = vld [vmem:[%s3 + $0x3b8] sm:$0xff]
      %v841 = vld [vmem:[%s3 + $0x3c0] sm:$0xff]
      %v842 = vld [vmem:[%s3 + $0x3c8] sm:$0xff]
      %v843 = vld [vmem:[%s3 + $0x3d0] sm:$0xff]
      %v844 = vld [vmem:[%s3 + $0x3d8] sm:$0xff]
      %v845 = vld [vmem:[%s3 + $0x3e0] sm:$0xff]
      %v846 = vld [vmem:[%s3 + $0x3e8] sm:$0xff]
      %v847 = vld [vmem:[%s3 + $0x3f0] sm:$0xff]
      %v848 = vld [vmem:[%s3 + $0x3f8] sm:$0xff]
      %v849 = vld [vmem:[%s3 + $0x400] sm:$0xff]
      %v850 = vld [vmem:[%s3 + $0x408] sm:$0xff]
      %v851 = vld [vmem:[%s3 + $0x410] sm:$0xff]
      %v852 = vld [vmem:[%s3 + $0x418] sm:$0xff]
      %v853 = vld [vmem:[%s3 + $0x420] sm:$0xff]
      %v854 = vld [vmem:[%s3 + $0x428] sm:$0xff]
      %v855 = vld [vmem:[%s3 + $0x430] sm:$0xff]
      %v856 = vld [vmem:[%s3 + $0x438] sm:$0xff]
      %v857 = vld [vmem:[%s3 + $0x440] sm:$0xff]
      %v858 = vld [vmem:[%s3 + $0x448] sm:$0xff]
      %v859 = vld [vmem:[%s3 + $0x450] sm:$0xff]
      %v860 = vld [vmem:[%s3 + $0x458] sm:$0xff]
      %v861 = vld [vmem:[%s3 + $0x460] sm:$0xff]
      %v862 = vld [vmem:[%s3 + $0x468] sm:$0xff]
      %v863 = vld [vmem:[%s3 + $0x470] sm:$0xff]
      %v864 = vld [vmem:[%s3 + $0x478] sm:$0xff]
      %v865 = vld [vmem:[%s3 + $0x480] sm:$0xff]
      %v866 = vld [vmem:[%s3 + $0x488] sm:$0xff]
      %v867 = vld [vmem:[%s3 + $0x490] sm:$0xff]
      %v868 = vld [vmem:[%s3 + $0x498] sm:$0xff]
      %v869 = vld [vmem:[%s3 + $0x4a0] sm:$0xff]
      %v870 = vld [vmem:[%s3 + $0x4a8] sm:$0xff]
      %v871 = vld [vmem:[%s3 + $0x4b0] sm:$0xff]
      %v872 = vld [vmem:[%s3 + $0x4b8] sm:$0xff]
      %v873 = vld [vmem:[%s3 + $0x4c0] sm:$0xff]
      %v874 = vld [vmem:[%s3 + $0x4c8] sm:$0xff]
      %v875 = vld [vmem:[%s3 + $0x4d0] sm:$0xff]
      %v876 = vld [vmem:[%s3 + $0x4d8] sm:$0xff]
      %v877 = vld [vmem:[%s3 + $0x4e0] sm:$0xff]
      %v878 = vld [vmem:[%s3 + $0x4e8] sm:$0xff]
      %v879 = vld [vmem:[%s3 + $0x4f0] sm:$0xff]
      %v880 = vld [vmem:[%s3 + $0x4f8] sm:$0xff]
      %v881 = vld [vmem:[%s3 + $0x500] sm:$0xff]
      %v882 = vld [vmem:[%s3 + $0x508] sm:$0xff]
      %v883 = vld [vmem:[%s3 + $0x510] sm:$0xff]
      %v884 = vld [vmem:[%s3 + $0x518] sm:$0xff]
      %v885 = vld [vmem:[%s3 + $0x520] sm:$0xff]
      %v886 = vld [vmem:[%s3 + $0x528] sm:$0xff]
      %v887 = vld [vmem:[%s3 + $0x530] sm:$0xff]
      %v888 = vld [vmem:[%s3 + $0x538] sm:$0xff]
      %v889 = vld [vmem:[%s3 + $0x540] sm:$0xff]
      %v890 = vld [vmem:[%s3 + $0x548] sm:$0xff]
      %v891 = vld [vmem:[%s3 + $0x550] sm:$0xff]
      %v892 = vld [vmem:[%s3 + $0x558] sm:$0xff]
      %v893 = vld [vmem:[%s3 + $0x560] sm:$0xff]
      %v894 = vld [vmem:[%s3 + $0x568] sm:$0xff]
      %v895 = vld [vmem:[%s3 + $0x570] sm:$0xff]
      %v896 = vld [vmem:[%s3 + $0x578] sm:$0xff]
      %v897 = vld [vmem:[%s3 + $0x580] sm:$0xff]
      %v898 = vld [vmem:[%s3 + $0x588] sm:$0xff]
      %v899 = vld [vmem:[%s3 + $0x590] sm:$0xff]
      %v900 = vld [vmem:[%s3 + $0x598] sm:$0xff]
      %v901 = vld [vmem:[%s3 + $0x5a0] sm:$0xff]
      %v902 = vld [vmem:[%s3 + $0x5a8] sm:$0xff]
      %v903 = vld [vmem:[%s3 + $0x5b0] sm:$0xff]
      %v904 = vld [vmem:[%s3 + $0x5b8] sm:$0xff]
      %v905 = vld [vmem:[%s3 + $0x5c0] sm:$0xff]
      %v906 = vld [vmem:[%s3 + $0x5c8] sm:$0xff]
      %v907 = vld [vmem:[%s3 + $0x5d0] sm:$0xff]
      %v908 = vld [vmem:[%s3 + $0x5d8] sm:$0xff]
      %v909 = vld [vmem:[%s3 + $0x5e0] sm:$0xff]
      %v910 = vld [vmem:[%s3 + $0x5e8] sm:$0xff]
      %v911 = vld [vmem:[%s3 + $0x5f0] sm:$0xff]
      %v912 = vld [vmem:[%s3 + $0x5f8] sm:$0xff]
      %v913 = vld [vmem:[%s3 + $0x600] sm:$0xff]
      %v914 = vld [vmem:[%s3 + $0x608] sm:$0xff]
      %v915 = vld [vmem:[%s3 + $0x610] sm:$0xff]
      %v916 = vld [vmem:[%s3 + $0x618] sm:$0xff]
      %v917 = vld [vmem:[%s3 + $0x620] sm:$0xff]
      %v918 = vld [vmem:[%s3 + $0x628] sm:$0xff]
      %v919 = vld [vmem:[%s3 + $0x630] sm:$0xff]
      %v920 = vld [vmem:[%s3 + $0x638] sm:$0xff]
      %v921 = vld [vmem:[%s3 + $0x640] sm:$0xff]
      %v922 = vld [vmem:[%s3 + $0x648] sm:$0xff]
      %v923 = vld [vmem:[%s3 + $0x650] sm:$0xff]
      %v924 = vld [vmem:[%s3 + $0x658] sm:$0xff]
      %v925 = vld [vmem:[%s3 + $0x660] sm:$0xff]
      %v926 = vld [vmem:[%s3 + $0x668] sm:$0xff]
      %v927 = vld [vmem:[%s3 + $0x670] sm:$0xff]
      %v928 = vld [vmem:[%s3 + $0x678] sm:$0xff]
      %v929 = vld [vmem:[%s3 + $0x680] sm:$0xff]
      %v930 = vld [vmem:[%s3 + $0x688] sm:$0xff]
      %v931 = vld [vmem:[%s3 + $0x690] sm:$0xff]
      %v932 = vld [vmem:[%s3 + $0x698] sm:$0xff]
      %v933 = vld [vmem:[%s3 + $0x6a0] sm:$0xff]
      %v934 = vld [vmem:[%s3 + $0x6a8] sm:$0xff]
      %v935 = vld [vmem:[%s3 + $0x6b0] sm:$0xff]
      %v936 = vld [vmem:[%s3 + $0x6b8] sm:$0xff]
      %v937 = vld [vmem:[%s3 + $0x6c0] sm:$0xff]
      %v938 = vld [vmem:[%s3 + $0x6c8] sm:$0xff]
      %v939 = vld [vmem:[%s3 + $0x6d0] sm:$0xff]
      %v940 = vld [vmem:[%s3 + $0x6d8] sm:$0xff]
      %v941 = vld [vmem:[%s3 + $0x6e0] sm:$0xff]
      %v942 = vld [vmem:[%s3 + $0x6e8] sm:$0xff]
      %v943 = vld [vmem:[%s3 + $0x6f0] sm:$0xff]
      %v944 = vld [vmem:[%s3 + $0x6f8] sm:$0xff]
      %v945 = vld [vmem:[%s3 + $0x700] sm:$0xff]
      %v946 = vld [vmem:[%s3 + $0x708] sm:$0xff]
      %v947 = vld [vmem:[%s3 + $0x710] sm:$0xff]
      %v948 = vld [vmem:[%s3 + $0x718] sm:$0xff]
      %v949 = vld [vmem:[%s3 + $0x720] sm:$0xff]
      %v950 = vld [vmem:[%s3 + $0x728] sm:$0xff]
      %v951 = vld [vmem:[%s3 + $0x730] sm:$0xff]
      %v952 = vld [vmem:[%s3 + $0x738] sm:$0xff]
      %v953 = vld [vmem:[%s3 + $0x740] sm:$0xff]
      %v954 = vld [vmem:[%s3 + $0x748] sm:$0xff]
      %v955 = vld [vmem:[%s3 + $0x750] sm:$0xff]
      %v956 = vld [vmem:[%s3 + $0x758] sm:$0xff]
      %v957 = vld [vmem:[%s3 + $0x760] sm:$0xff]
      %v958 = vld [vmem:[%s3 + $0x768] sm:$0xff]
      %v959 = vld [vmem:[%s3 + $0x770] sm:$0xff]
      %v960 = vld [vmem:[%s3 + $0x778] sm:$0xff]
      %v961 = vld [vmem:[%s3 + $0x780] sm:$0xff]
      %v962 = vld [vmem:[%s3 + $0x788] sm:$0xff]
      %v963 = vld [vmem:[%s3 + $0x790] sm:$0xff]
      %v964 = vld [vmem:[%s3 + $0x798] sm:$0xff]
      %v965 = vld [vmem:[%s3 + $0x7a0] sm:$0xff]
      %v966 = vld [vmem:[%s3 + $0x7a8] sm:$0xff]
      %v967 = vld [vmem:[%s3 + $0x7b0] sm:$0xff]
      %v968 = vld [vmem:[%s3 + $0x7b8] sm:$0xff]
      %v969 = vld [vmem:[%s3 + $0x7c0] sm:$0xff]
      %v970 = vld [vmem:[%s3 + $0x7c8] sm:$0xff]
      %v971 = vld [vmem:[%s3 + $0x7d0] sm:$0xff]
      %v972 = vld [vmem:[%s3 + $0x7d8] sm:$0xff]
      %v973 = vld [vmem:[%s3 + $0x7e0] sm:$0xff]
      %v974 = vld [vmem:[%s3 + $0x7e8] sm:$0xff]
      %v975 = vld [vmem:[%s3 + $0x7f0] sm:$0xff]
      %v976 = vld [vmem:[%s3 + $0x7f8] sm:$0xff]
      %v977 = vld [vmem:[%s4] sm:$0x3]
      %v979 = vlaneseq
      %v980 = vshrl.u32 %v979, 7
      %v981 = vsub.s32 0, %v980
      %v982 = vrot.slane %v977, %v981
      %v983 = vlaneseq
      %v984 = vshrl.u32 %v983, 7
      %v985 = vsub.s32 1, %v984
      %v986 = vrot.slane %v977, %v985
      %v1245 = vunpack.c.l.b16 %v721
      %v1246 = vunpack.c.h.b16 %v721
      %v1247 = vunpack.c.l.b16 %v722
      %v1248 = vunpack.c.h.b16 %v722
      %v1249 = vunpack.c.l.b16 %v723
      %v1250 = vunpack.c.h.b16 %v723
      %v1251 = vunpack.c.l.b16 %v724
      %v1252 = vunpack.c.h.b16 %v724
      %v1253 = vunpack.c.l.b16 %v725
      %v1254 = vunpack.c.h.b16 %v725
      %v1255 = vunpack.c.l.b16 %v726
      %v1256 = vunpack.c.h.b16 %v726
      %v1257 = vunpack.c.l.b16 %v727
      %v1258 = vunpack.c.h.b16 %v727
      %v1259 = vunpack.c.l.b16 %v728
      %v1260 = vunpack.c.h.b16 %v728
      %v1261 = vunpack.c.l.b16 %v729
      %v1262 = vunpack.c.h.b16 %v729
      %v1263 = vunpack.c.l.b16 %v730
      %v1264 = vunpack.c.h.b16 %v730
      %v1265 = vunpack.c.l.b16 %v731
      %v1266 = vunpack.c.h.b16 %v731
      %v1267 = vunpack.c.l.b16 %v732
      %v1268 = vunpack.c.h.b16 %v732
      %v1269 = vunpack.c.l.b16 %v733
      %v1270 = vunpack.c.h.b16 %v733
      %v1271 = vunpack.c.l.b16 %v734
      %v1272 = vunpack.c.h.b16 %v734
      %v1273 = vunpack.c.l.b16 %v735
      %v1274 = vunpack.c.h.b16 %v735
      %v1275 = vunpack.c.l.b16 %v736
      %v1276 = vunpack.c.h.b16 %v736
      %v1277 = vunpack.c.l.b16 %v737
      %v1278 = vunpack.c.h.b16 %v737
      %v1279 = vunpack.c.l.b16 %v738
      %v1280 = vunpack.c.h.b16 %v738
      %v1281 = vunpack.c.l.b16 %v739
      %v1282 = vunpack.c.h.b16 %v739
      %v1283 = vunpack.c.l.b16 %v740
      %v1284 = vunpack.c.h.b16 %v740
      %v1285 = vunpack.c.l.b16 %v741
      %v1286 = vunpack.c.h.b16 %v741
      %v1287 = vunpack.c.l.b16 %v742
      %v1288 = vunpack.c.h.b16 %v742
      %v1289 = vunpack.c.l.b16 %v743
      %v1290 = vunpack.c.h.b16 %v743
      %v1291 = vunpack.c.l.b16 %v744
      %v1292 = vunpack.c.h.b16 %v744
      %v1293 = vunpack.c.l.b16 %v745
      %v1294 = vunpack.c.h.b16 %v745
      %v1295 = vunpack.c.l.b16 %v746
      %v1296 = vunpack.c.h.b16 %v746
      %v1297 = vunpack.c.l.b16 %v747
      %v1298 = vunpack.c.h.b16 %v747
      %v1299 = vunpack.c.l.b16 %v748
      %v1300 = vunpack.c.h.b16 %v748
      %v1301 = vunpack.c.l.b16 %v749
      %v1302 = vunpack.c.h.b16 %v749
      %v1303 = vunpack.c.l.b16 %v750
      %v1304 = vunpack.c.h.b16 %v750
      %v1305 = vunpack.c.l.b16 %v751
      %v1306 = vunpack.c.h.b16 %v751
      %v1307 = vunpack.c.l.b16 %v752
      %v1308 = vunpack.c.h.b16 %v752
      %v1309 = vunpack.c.l.b16 %v753
      %v1310 = vunpack.c.h.b16 %v753
      %v1311 = vunpack.c.l.b16 %v754
      %v1312 = vunpack.c.h.b16 %v754
      %v1313 = vunpack.c.l.b16 %v755
      %v1314 = vunpack.c.h.b16 %v755
      %v1315 = vunpack.c.l.b16 %v756
      %v1316 = vunpack.c.h.b16 %v756
      %v1317 = vunpack.c.l.b16 %v757
      %v1318 = vunpack.c.h.b16 %v757
      %v1319 = vunpack.c.l.b16 %v758
      %v1320 = vunpack.c.h.b16 %v758
      %v1321 = vunpack.c.l.b16 %v759
      %v1322 = vunpack.c.h.b16 %v759
      %v1323 = vunpack.c.l.b16 %v760
      %v1324 = vunpack.c.h.b16 %v760
      %v1325 = vunpack.c.l.b16 %v761
      %v1326 = vunpack.c.h.b16 %v761
      %v1327 = vunpack.c.l.b16 %v762
      %v1328 = vunpack.c.h.b16 %v762
      %v1329 = vunpack.c.l.b16 %v763
      %v1330 = vunpack.c.h.b16 %v763
      %v1331 = vunpack.c.l.b16 %v764
      %v1332 = vunpack.c.h.b16 %v764
      %v1333 = vunpack.c.l.b16 %v765
      %v1334 = vunpack.c.h.b16 %v765
      %v1335 = vunpack.c.l.b16 %v766
      %v1336 = vunpack.c.h.b16 %v766
      %v1337 = vunpack.c.l.b16 %v767
      %v1338 = vunpack.c.h.b16 %v767
      %v1339 = vunpack.c.l.b16 %v768
      %v1340 = vunpack.c.h.b16 %v768
      %v1341 = vunpack.c.l.b16 %v769
      %v1342 = vunpack.c.h.b16 %v769
      %v1343 = vunpack.c.l.b16 %v770
      %v1344 = vunpack.c.h.b16 %v770
      %v1345 = vunpack.c.l.b16 %v771
      %v1346 = vunpack.c.h.b16 %v771
      %v1347 = vunpack.c.l.b16 %v772
      %v1348 = vunpack.c.h.b16 %v772
      %v1349 = vunpack.c.l.b16 %v773
      %v1350 = vunpack.c.h.b16 %v773
      %v1351 = vunpack.c.l.b16 %v774
      %v1352 = vunpack.c.h.b16 %v774
      %v1353 = vunpack.c.l.b16 %v775
      %v1354 = vunpack.c.h.b16 %v775
      %v1355 = vunpack.c.l.b16 %v776
      %v1356 = vunpack.c.h.b16 %v776
      %v1357 = vunpack.c.l.b16 %v777
      %v1358 = vunpack.c.h.b16 %v777
      %v1359 = vunpack.c.l.b16 %v778
      %v1360 = vunpack.c.h.b16 %v778
      %v1361 = vunpack.c.l.b16 %v779
      %v1362 = vunpack.c.h.b16 %v779
      %v1363 = vunpack.c.l.b16 %v780
      %v1364 = vunpack.c.h.b16 %v780
      %v1365 = vunpack.c.l.b16 %v781
      %v1366 = vunpack.c.h.b16 %v781
      %v1367 = vunpack.c.l.b16 %v782
      %v1368 = vunpack.c.h.b16 %v782
      %v1369 = vunpack.c.l.b16 %v783
      %v1370 = vunpack.c.h.b16 %v783
      %v1371 = vunpack.c.l.b16 %v784
      %v1372 = vunpack.c.h.b16 %v784
      %v1373 = vunpack.c.l.b16 %v785
      %v1374 = vunpack.c.h.b16 %v785
      %v1375 = vunpack.c.l.b16 %v786
      %v1376 = vunpack.c.h.b16 %v786
      %v1377 = vunpack.c.l.b16 %v787
      %v1378 = vunpack.c.h.b16 %v787
      %v1379 = vunpack.c.l.b16 %v788
      %v1380 = vunpack.c.h.b16 %v788
      %v1381 = vunpack.c.l.b16 %v789
      %v1382 = vunpack.c.h.b16 %v789
      %v1383 = vunpack.c.l.b16 %v790
      %v1384 = vunpack.c.h.b16 %v790
      %v1385 = vunpack.c.l.b16 %v791
      %v1386 = vunpack.c.h.b16 %v791
      %v1387 = vunpack.c.l.b16 %v792
      %v1388 = vunpack.c.h.b16 %v792
      %v1389 = vunpack.c.l.b16 %v793
      %v1390 = vunpack.c.h.b16 %v793
      %v1391 = vunpack.c.l.b16 %v794
      %v1392 = vunpack.c.h.b16 %v794
      %v1393 = vunpack.c.l.b16 %v795
      %v1394 = vunpack.c.h.b16 %v795
      %v1395 = vunpack.c.l.b16 %v796
      %v1396 = vunpack.c.h.b16 %v796
      %v1397 = vunpack.c.l.b16 %v797
      %v1398 = vunpack.c.h.b16 %v797
      %v1399 = vunpack.c.l.b16 %v798
      %v1400 = vunpack.c.h.b16 %v798
      %v1401 = vunpack.c.l.b16 %v799
      %v1402 = vunpack.c.h.b16 %v799
      %v1403 = vunpack.c.l.b16 %v800
      %v1404 = vunpack.c.h.b16 %v800
      %v1405 = vunpack.c.l.b16 %v801
      %v1406 = vunpack.c.h.b16 %v801
      %v1407 = vunpack.c.l.b16 %v802
      %v1408 = vunpack.c.h.b16 %v802
      %v1409 = vunpack.c.l.b16 %v803
      %v1410 = vunpack.c.h.b16 %v803
      %v1411 = vunpack.c.l.b16 %v804
      %v1412 = vunpack.c.h.b16 %v804
      %v1413 = vunpack.c.l.b16 %v805
      %v1414 = vunpack.c.h.b16 %v805
      %v1415 = vunpack.c.l.b16 %v806
      %v1416 = vunpack.c.h.b16 %v806
      %v1417 = vunpack.c.l.b16 %v807
      %v1418 = vunpack.c.h.b16 %v807
      %v1419 = vunpack.c.l.b16 %v808
      %v1420 = vunpack.c.h.b16 %v808
      %v1421 = vunpack.c.l.b16 %v809
      %v1422 = vunpack.c.h.b16 %v809
      %v1423 = vunpack.c.l.b16 %v810
      %v1424 = vunpack.c.h.b16 %v810
      %v1425 = vunpack.c.l.b16 %v811
      %v1426 = vunpack.c.h.b16 %v811
      %v1427 = vunpack.c.l.b16 %v812
      %v1428 = vunpack.c.h.b16 %v812
      %v1429 = vunpack.c.l.b16 %v813
      %v1430 = vunpack.c.h.b16 %v813
      %v1431 = vunpack.c.l.b16 %v814
      %v1432 = vunpack.c.h.b16 %v814
      %v1433 = vunpack.c.l.b16 %v815
      %v1434 = vunpack.c.h.b16 %v815
      %v1435 = vunpack.c.l.b16 %v816
      %v1436 = vunpack.c.h.b16 %v816
      %v1437 = vunpack.c.l.b16 %v817
      %v1438 = vunpack.c.h.b16 %v817
      %v1439 = vunpack.c.l.b16 %v818
      %v1440 = vunpack.c.h.b16 %v818
      %v1441 = vunpack.c.l.b16 %v819
      %v1442 = vunpack.c.h.b16 %v819
      %v1443 = vunpack.c.l.b16 %v820
      %v1444 = vunpack.c.h.b16 %v820
      %v1445 = vunpack.c.l.b16 %v821
      %v1446 = vunpack.c.h.b16 %v821
      %v1447 = vunpack.c.l.b16 %v822
      %v1448 = vunpack.c.h.b16 %v822
      %v1449 = vunpack.c.l.b16 %v823
      %v1450 = vunpack.c.h.b16 %v823
      %v1451 = vunpack.c.l.b16 %v824
      %v1452 = vunpack.c.h.b16 %v824
      %v1453 = vunpack.c.l.b16 %v825
      %v1454 = vunpack.c.h.b16 %v825
      %v1455 = vunpack.c.l.b16 %v826
      %v1456 = vunpack.c.h.b16 %v826
      %v1457 = vunpack.c.l.b16 %v827
      %v1458 = vunpack.c.h.b16 %v827
      %v1459 = vunpack.c.l.b16 %v828
      %v1460 = vunpack.c.h.b16 %v828
      %v1461 = vunpack.c.l.b16 %v829
      %v1462 = vunpack.c.h.b16 %v829
      %v1463 = vunpack.c.l.b16 %v830
      %v1464 = vunpack.c.h.b16 %v830
      %v1465 = vunpack.c.l.b16 %v831
      %v1466 = vunpack.c.h.b16 %v831
      %v1467 = vunpack.c.l.b16 %v832
      %v1468 = vunpack.c.h.b16 %v832
      %v1469 = vunpack.c.l.b16 %v833
      %v1470 = vunpack.c.h.b16 %v833
      %v1471 = vunpack.c.l.b16 %v834
      %v1472 = vunpack.c.h.b16 %v834
      %v1473 = vunpack.c.l.b16 %v835
      %v1474 = vunpack.c.h.b16 %v835
      %v1475 = vunpack.c.l.b16 %v836
      %v1476 = vunpack.c.h.b16 %v836
      %v1477 = vunpack.c.l.b16 %v837
      %v1478 = vunpack.c.h.b16 %v837
      %v1479 = vunpack.c.l.b16 %v838
      %v1480 = vunpack.c.h.b16 %v838
      %v1481 = vunpack.c.l.b16 %v839
      %v1482 = vunpack.c.h.b16 %v839
      %v1483 = vunpack.c.l.b16 %v840
      %v1484 = vunpack.c.h.b16 %v840
      %v1485 = vunpack.c.l.b16 %v841
      %v1486 = vunpack.c.h.b16 %v841
      %v1487 = vunpack.c.l.b16 %v842
      %v1488 = vunpack.c.h.b16 %v842
      %v1489 = vunpack.c.l.b16 %v843
      %v1490 = vunpack.c.h.b16 %v843
      %v1491 = vunpack.c.l.b16 %v844
      %v1492 = vunpack.c.h.b16 %v844
      %v1493 = vunpack.c.l.b16 %v845
      %v1494 = vunpack.c.h.b16 %v845
      %v1495 = vunpack.c.l.b16 %v846
      %v1496 = vunpack.c.h.b16 %v846
      %v1497 = vunpack.c.l.b16 %v847
      %v1498 = vunpack.c.h.b16 %v847
      %v1499 = vunpack.c.l.b16 %v848
      %v1500 = vunpack.c.h.b16 %v848
      %v1501 = vunpack.c.l.b16 %v849
      %v1502 = vunpack.c.h.b16 %v849
      %v1503 = vunpack.c.l.b16 %v850
      %v1504 = vunpack.c.h.b16 %v850
      %v1505 = vunpack.c.l.b16 %v851
      %v1506 = vunpack.c.h.b16 %v851
      %v1507 = vunpack.c.l.b16 %v852
      %v1508 = vunpack.c.h.b16 %v852
      %v1509 = vunpack.c.l.b16 %v853
      %v1510 = vunpack.c.h.b16 %v853
      %v1511 = vunpack.c.l.b16 %v854
      %v1512 = vunpack.c.h.b16 %v854
      %v1513 = vunpack.c.l.b16 %v855
      %v1514 = vunpack.c.h.b16 %v855
      %v1515 = vunpack.c.l.b16 %v856
      %v1516 = vunpack.c.h.b16 %v856
      %v1517 = vunpack.c.l.b16 %v857
      %v1518 = vunpack.c.h.b16 %v857
      %v1519 = vunpack.c.l.b16 %v858
      %v1520 = vunpack.c.h.b16 %v858
      %v1521 = vunpack.c.l.b16 %v859
      %v1522 = vunpack.c.h.b16 %v859
      %v1523 = vunpack.c.l.b16 %v860
      %v1524 = vunpack.c.h.b16 %v860
      %v1525 = vunpack.c.l.b16 %v861
      %v1526 = vunpack.c.h.b16 %v861
      %v1527 = vunpack.c.l.b16 %v862
      %v1528 = vunpack.c.h.b16 %v862
      %v1529 = vunpack.c.l.b16 %v863
      %v1530 = vunpack.c.h.b16 %v863
      %v1531 = vunpack.c.l.b16 %v864
      %v1532 = vunpack.c.h.b16 %v864
      %v1533 = vunpack.c.l.b16 %v865
      %v1534 = vunpack.c.h.b16 %v865
      %v1535 = vunpack.c.l.b16 %v866
      %v1536 = vunpack.c.h.b16 %v866
      %v1537 = vunpack.c.l.b16 %v867
      %v1538 = vunpack.c.h.b16 %v867
      %v1539 = vunpack.c.l.b16 %v868
      %v1540 = vunpack.c.h.b16 %v868
      %v1541 = vunpack.c.l.b16 %v869
      %v1542 = vunpack.c.h.b16 %v869
      %v1543 = vunpack.c.l.b16 %v870
      %v1544 = vunpack.c.h.b16 %v870
      %v1545 = vunpack.c.l.b16 %v871
      %v1546 = vunpack.c.h.b16 %v871
      %v1547 = vunpack.c.l.b16 %v872
      %v1548 = vunpack.c.h.b16 %v872
      %v1549 = vunpack.c.l.b16 %v873
      %v1550 = vunpack.c.h.b16 %v873
      %v1551 = vunpack.c.l.b16 %v874
      %v1552 = vunpack.c.h.b16 %v874
      %v1553 = vunpack.c.l.b16 %v875
      %v1554 = vunpack.c.h.b16 %v875
      %v1555 = vunpack.c.l.b16 %v876
      %v1556 = vunpack.c.h.b16 %v876
      %v1557 = vunpack.c.l.b16 %v877
      %v1558 = vunpack.c.h.b16 %v877
      %v1559 = vunpack.c.l.b16 %v878
      %v1560 = vunpack.c.h.b16 %v878
      %v1561 = vunpack.c.l.b16 %v879
      %v1562 = vunpack.c.h.b16 %v879
      %v1563 = vunpack.c.l.b16 %v880
      %v1564 = vunpack.c.h.b16 %v880
      %v1565 = vunpack.c.l.b16 %v881
      %v1566 = vunpack.c.h.b16 %v881
      %v1567 = vunpack.c.l.b16 %v882
      %v1568 = vunpack.c.h.b16 %v882
      %v1569 = vunpack.c.l.b16 %v883
      %v1570 = vunpack.c.h.b16 %v883
      %v1571 = vunpack.c.l.b16 %v884
      %v1572 = vunpack.c.h.b16 %v884
      %v1573 = vunpack.c.l.b16 %v885
      %v1574 = vunpack.c.h.b16 %v885
      %v1575 = vunpack.c.l.b16 %v886
      %v1576 = vunpack.c.h.b16 %v886
      %v1577 = vunpack.c.l.b16 %v887
      %v1578 = vunpack.c.h.b16 %v887
      %v1579 = vunpack.c.l.b16 %v888
      %v1580 = vunpack.c.h.b16 %v888
      %v1581 = vunpack.c.l.b16 %v889
      %v1582 = vunpack.c.h.b16 %v889
      %v1583 = vunpack.c.l.b16 %v890
      %v1584 = vunpack.c.h.b16 %v890
      %v1585 = vunpack.c.l.b16 %v891
      %v1586 = vunpack.c.h.b16 %v891
      %v1587 = vunpack.c.l.b16 %v892
      %v1588 = vunpack.c.h.b16 %v892
      %v1589 = vunpack.c.l.b16 %v893
      %v1590 = vunpack.c.h.b16 %v893
      %v1591 = vunpack.c.l.b16 %v894
      %v1592 = vunpack.c.h.b16 %v894
      %v1593 = vunpack.c.l.b16 %v895
      %v1594 = vunpack.c.h.b16 %v895
      %v1595 = vunpack.c.l.b16 %v896
      %v1596 = vunpack.c.h.b16 %v896
      %v1597 = vunpack.c.l.b16 %v897
      %v1598 = vunpack.c.h.b16 %v897
      %v1599 = vunpack.c.l.b16 %v898
      %v1600 = vunpack.c.h.b16 %v898
      %v1601 = vunpack.c.l.b16 %v899
      %v1602 = vunpack.c.h.b16 %v899
      %v1603 = vunpack.c.l.b16 %v900
      %v1604 = vunpack.c.h.b16 %v900
      %v1605 = vunpack.c.l.b16 %v901
      %v1606 = vunpack.c.h.b16 %v901
      %v1607 = vunpack.c.l.b16 %v902
      %v1608 = vunpack.c.h.b16 %v902
      %v1609 = vunpack.c.l.b16 %v903
      %v1610 = vunpack.c.h.b16 %v903
      %v1611 = vunpack.c.l.b16 %v904
      %v1612 = vunpack.c.h.b16 %v904
      %v1613 = vunpack.c.l.b16 %v905
      %v1614 = vunpack.c.h.b16 %v905
      %v1615 = vunpack.c.l.b16 %v906
      %v1616 = vunpack.c.h.b16 %v906
      %v1617 = vunpack.c.l.b16 %v907
      %v1618 = vunpack.c.h.b16 %v907
      %v1619 = vunpack.c.l.b16 %v908
      %v1620 = vunpack.c.h.b16 %v908
      %v1621 = vunpack.c.l.b16 %v909
      %v1622 = vunpack.c.h.b16 %v909
      %v1623 = vunpack.c.l.b16 %v910
      %v1624 = vunpack.c.h.b16 %v910
      %v1625 = vunpack.c.l.b16 %v911
      %v1626 = vunpack.c.h.b16 %v911
      %v1627 = vunpack.c.l.b16 %v912
      %v1628 = vunpack.c.h.b16 %v912
      %v1629 = vunpack.c.l.b16 %v913
      %v1630 = vunpack.c.h.b16 %v913
      %v1631 = vunpack.c.l.b16 %v914
      %v1632 = vunpack.c.h.b16 %v914
      %v1633 = vunpack.c.l.b16 %v915
      %v1634 = vunpack.c.h.b16 %v915
      %v1635 = vunpack.c.l.b16 %v916
      %v1636 = vunpack.c.h.b16 %v916
      %v1637 = vunpack.c.l.b16 %v917
      %v1638 = vunpack.c.h.b16 %v917
      %v1639 = vunpack.c.l.b16 %v918
      %v1640 = vunpack.c.h.b16 %v918
      %v1641 = vunpack.c.l.b16 %v919
      %v1642 = vunpack.c.h.b16 %v919
      %v1643 = vunpack.c.l.b16 %v920
      %v1644 = vunpack.c.h.b16 %v920
      %v1645 = vunpack.c.l.b16 %v921
      %v1646 = vunpack.c.h.b16 %v921
      %v1647 = vunpack.c.l.b16 %v922
      %v1648 = vunpack.c.h.b16 %v922
      %v1649 = vunpack.c.l.b16 %v923
      %v1650 = vunpack.c.h.b16 %v923
      %v1651 = vunpack.c.l.b16 %v924
      %v1652 = vunpack.c.h.b16 %v924
      %v1653 = vunpack.c.l.b16 %v925
      %v1654 = vunpack.c.h.b16 %v925
      %v1655 = vunpack.c.l.b16 %v926
      %v1656 = vunpack.c.h.b16 %v926
      %v1657 = vunpack.c.l.b16 %v927
      %v1658 = vunpack.c.h.b16 %v927
      %v1659 = vunpack.c.l.b16 %v928
      %v1660 = vunpack.c.h.b16 %v928
      %v1661 = vunpack.c.l.b16 %v929
      %v1662 = vunpack.c.h.b16 %v929
      %v1663 = vunpack.c.l.b16 %v930
      %v1664 = vunpack.c.h.b16 %v930
      %v1665 = vunpack.c.l.b16 %v931
      %v1666 = vunpack.c.h.b16 %v931
      %v1667 = vunpack.c.l.b16 %v932
      %v1668 = vunpack.c.h.b16 %v932
      %v1669 = vunpack.c.l.b16 %v933
      %v1670 = vunpack.c.h.b16 %v933
      %v1671 = vunpack.c.l.b16 %v934
      %v1672 = vunpack.c.h.b16 %v934
      %v1673 = vunpack.c.l.b16 %v935
      %v1674 = vunpack.c.h.b16 %v935
      %v1675 = vunpack.c.l.b16 %v936
      %v1676 = vunpack.c.h.b16 %v936
      %v1677 = vunpack.c.l.b16 %v937
      %v1678 = vunpack.c.h.b16 %v937
      %v1679 = vunpack.c.l.b16 %v938
      %v1680 = vunpack.c.h.b16 %v938
      %v1681 = vunpack.c.l.b16 %v939
      %v1682 = vunpack.c.h.b16 %v939
      %v1683 = vunpack.c.l.b16 %v940
      %v1684 = vunpack.c.h.b16 %v940
      %v1685 = vunpack.c.l.b16 %v941
      %v1686 = vunpack.c.h.b16 %v941
      %v1687 = vunpack.c.l.b16 %v942
      %v1688 = vunpack.c.h.b16 %v942
      %v1689 = vunpack.c.l.b16 %v943
      %v1690 = vunpack.c.h.b16 %v943
      %v1691 = vunpack.c.l.b16 %v944
      %v1692 = vunpack.c.h.b16 %v944
      %v1693 = vunpack.c.l.b16 %v945
      %v1694 = vunpack.c.h.b16 %v945
      %v1695 = vunpack.c.l.b16 %v946
      %v1696 = vunpack.c.h.b16 %v946
      %v1697 = vunpack.c.l.b16 %v947
      %v1698 = vunpack.c.h.b16 %v947
      %v1699 = vunpack.c.l.b16 %v948
      %v1700 = vunpack.c.h.b16 %v948
      %v1701 = vunpack.c.l.b16 %v949
      %v1702 = vunpack.c.h.b16 %v949
      %v1703 = vunpack.c.l.b16 %v950
      %v1704 = vunpack.c.h.b16 %v950
      %v1705 = vunpack.c.l.b16 %v951
      %v1706 = vunpack.c.h.b16 %v951
      %v1707 = vunpack.c.l.b16 %v952
      %v1708 = vunpack.c.h.b16 %v952
      %v1709 = vunpack.c.l.b16 %v953
      %v1710 = vunpack.c.h.b16 %v953
      %v1711 = vunpack.c.l.b16 %v954
      %v1712 = vunpack.c.h.b16 %v954
      %v1713 = vunpack.c.l.b16 %v955
      %v1714 = vunpack.c.h.b16 %v955
      %v1715 = vunpack.c.l.b16 %v956
      %v1716 = vunpack.c.h.b16 %v956
      %v1717 = vunpack.c.l.b16 %v957
      %v1718 = vunpack.c.h.b16 %v957
      %v1719 = vunpack.c.l.b16 %v958
      %v1720 = vunpack.c.h.b16 %v958
      %v1721 = vunpack.c.l.b16 %v959
      %v1722 = vunpack.c.h.b16 %v959
      %v1723 = vunpack.c.l.b16 %v960
      %v1724 = vunpack.c.h.b16 %v960
      %v1725 = vunpack.c.l.b16 %v961
      %v1726 = vunpack.c.h.b16 %v961
      %v1727 = vunpack.c.l.b16 %v962
      %v1728 = vunpack.c.h.b16 %v962
      %v1729 = vunpack.c.l.b16 %v963
      %v1730 = vunpack.c.h.b16 %v963
      %v1731 = vunpack.c.l.b16 %v964
      %v1732 = vunpack.c.h.b16 %v964
      %v1733 = vunpack.c.l.b16 %v965
      %v1734 = vunpack.c.h.b16 %v965
      %v1735 = vunpack.c.l.b16 %v966
      %v1736 = vunpack.c.h.b16 %v966
      %v1737 = vunpack.c.l.b16 %v967
      %v1738 = vunpack.c.h.b16 %v967
      %v1739 = vunpack.c.l.b16 %v968
      %v1740 = vunpack.c.h.b16 %v968
      %v1741 = vunpack.c.l.b16 %v969
      %v1742 = vunpack.c.h.b16 %v969
      %v1743 = vunpack.c.l.b16 %v970
      %v1744 = vunpack.c.h.b16 %v970
      %v1745 = vunpack.c.l.b16 %v971
      %v1746 = vunpack.c.h.b16 %v971
      %v1747 = vunpack.c.l.b16 %v972
      %v1748 = vunpack.c.h.b16 %v972
      %v1749 = vunpack.c.l.b16 %v973
      %v1750 = vunpack.c.h.b16 %v973
      %v1751 = vunpack.c.l.b16 %v974
      %v1752 = vunpack.c.h.b16 %v974
      %v1753 = vunpack.c.l.b16 %v975
      %v1754 = vunpack.c.h.b16 %v975
      %v1755 = vunpack.c.l.b16 %v976
      %v1756 = vunpack.c.h.b16 %v976
      %v1757 = vpack.c.b16 %v1247, %v1245
      %v1758 = vpack.c.b16 %v1248, %v1246
      %v1759 = vpack.c.b16 %v1251, %v1249
      %v1760 = vpack.c.b16 %v1252, %v1250
      %v1761 = vpack.c.b16 %v1255, %v1253
      %v1762 = vpack.c.b16 %v1256, %v1254
      %v1763 = vpack.c.b16 %v1259, %v1257
      %v1764 = vpack.c.b16 %v1260, %v1258
      %v1765 = vpack.c.b16 %v1263, %v1261
      %v1766 = vpack.c.b16 %v1264, %v1262
      %v1767 = vpack.c.b16 %v1267, %v1265
      %v1768 = vpack.c.b16 %v1268, %v1266
      %v1769 = vpack.c.b16 %v1271, %v1269
      %v1770 = vpack.c.b16 %v1272, %v1270
      %v1771 = vpack.c.b16 %v1275, %v1273
      %v1772 = vpack.c.b16 %v1276, %v1274
      %v1773 = vpack.c.b16 %v1279, %v1277
      %v1774 = vpack.c.b16 %v1280, %v1278
      %v1775 = vpack.c.b16 %v1283, %v1281
      %v1776 = vpack.c.b16 %v1284, %v1282
      %v1777 = vpack.c.b16 %v1287, %v1285
      %v1778 = vpack.c.b16 %v1288, %v1286
      %v1779 = vpack.c.b16 %v1291, %v1289
      %v1780 = vpack.c.b16 %v1292, %v1290
      %v1781 = vpack.c.b16 %v1295, %v1293
      %v1782 = vpack.c.b16 %v1296, %v1294
      %v1783 = vpack.c.b16 %v1299, %v1297
      %v1784 = vpack.c.b16 %v1300, %v1298
      %v1785 = vpack.c.b16 %v1303, %v1301
      %v1786 = vpack.c.b16 %v1304, %v1302
      %v1787 = vpack.c.b16 %v1307, %v1305
      %v1788 = vpack.c.b16 %v1308, %v1306
      %v1789 = vpack.c.b16 %v1311, %v1309
      %v1790 = vpack.c.b16 %v1312, %v1310
      %v1791 = vpack.c.b16 %v1315, %v1313
      %v1792 = vpack.c.b16 %v1316, %v1314
      %v1793 = vpack.c.b16 %v1319, %v1317
      %v1794 = vpack.c.b16 %v1320, %v1318
      %v1795 = vpack.c.b16 %v1323, %v1321
      %v1796 = vpack.c.b16 %v1324, %v1322
      %v1797 = vpack.c.b16 %v1327, %v1325
      %v1798 = vpack.c.b16 %v1328, %v1326
      %v1799 = vpack.c.b16 %v1331, %v1329
      %v1800 = vpack.c.b16 %v1332, %v1330
      %v1801 = vpack.c.b16 %v1335, %v1333
      %v1802 = vpack.c.b16 %v1336, %v1334
      %v1803 = vpack.c.b16 %v1339, %v1337
      %v1804 = vpack.c.b16 %v1340, %v1338
      %v1805 = vpack.c.b16 %v1343, %v1341
      %v1806 = vpack.c.b16 %v1344, %v1342
      %v1807 = vpack.c.b16 %v1347, %v1345
      %v1808 = vpack.c.b16 %v1348, %v1346
      %v1809 = vpack.c.b16 %v1351, %v1349
      %v1810 = vpack.c.b16 %v1352, %v1350
      %v1811 = vpack.c.b16 %v1355, %v1353
      %v1812 = vpack.c.b16 %v1356, %v1354
      %v1813 = vpack.c.b16 %v1359, %v1357
      %v1814 = vpack.c.b16 %v1360, %v1358
      %v1815 = vpack.c.b16 %v1363, %v1361
      %v1816 = vpack.c.b16 %v1364, %v1362
      %v1817 = vpack.c.b16 %v1367, %v1365
      %v1818 = vpack.c.b16 %v1368, %v1366
      %v1819 = vpack.c.b16 %v1371, %v1369
      %v1820 = vpack.c.b16 %v1372, %v1370
      %v1821 = vpack.c.b16 %v1375, %v1373
      %v1822 = vpack.c.b16 %v1376, %v1374
      %v1823 = vpack.c.b16 %v1379, %v1377
      %v1824 = vpack.c.b16 %v1380, %v1378
      %v1825 = vpack.c.b16 %v1383, %v1381
      %v1826 = vpack.c.b16 %v1384, %v1382
      %v1827 = vpack.c.b16 %v1387, %v1385
      %v1828 = vpack.c.b16 %v1388, %v1386
      %v1829 = vpack.c.b16 %v1391, %v1389
      %v1830 = vpack.c.b16 %v1392, %v1390
      %v1831 = vpack.c.b16 %v1395, %v1393
      %v1832 = vpack.c.b16 %v1396, %v1394
      %v1833 = vpack.c.b16 %v1399, %v1397
      %v1834 = vpack.c.b16 %v1400, %v1398
      %v1835 = vpack.c.b16 %v1403, %v1401
      %v1836 = vpack.c.b16 %v1404, %v1402
      %v1837 = vpack.c.b16 %v1407, %v1405
      %v1838 = vpack.c.b16 %v1408, %v1406
      %v1839 = vpack.c.b16 %v1411, %v1409
      %v1840 = vpack.c.b16 %v1412, %v1410
      %v1841 = vpack.c.b16 %v1415, %v1413
      %v1842 = vpack.c.b16 %v1416, %v1414
      %v1843 = vpack.c.b16 %v1419, %v1417
      %v1844 = vpack.c.b16 %v1420, %v1418
      %v1845 = vpack.c.b16 %v1423, %v1421
      %v1846 = vpack.c.b16 %v1424, %v1422
      %v1847 = vpack.c.b16 %v1427, %v1425
      %v1848 = vpack.c.b16 %v1428, %v1426
      %v1849 = vpack.c.b16 %v1431, %v1429
      %v1850 = vpack.c.b16 %v1432, %v1430
      %v1851 = vpack.c.b16 %v1435, %v1433
      %v1852 = vpack.c.b16 %v1436, %v1434
      %v1853 = vpack.c.b16 %v1439, %v1437
      %v1854 = vpack.c.b16 %v1440, %v1438
      %v1855 = vpack.c.b16 %v1443, %v1441
      %v1856 = vpack.c.b16 %v1444, %v1442
      %v1857 = vpack.c.b16 %v1447, %v1445
      %v1858 = vpack.c.b16 %v1448, %v1446
      %v1859 = vpack.c.b16 %v1451, %v1449
      %v1860 = vpack.c.b16 %v1452, %v1450
      %v1861 = vpack.c.b16 %v1455, %v1453
      %v1862 = vpack.c.b16 %v1456, %v1454
      %v1863 = vpack.c.b16 %v1459, %v1457
      %v1864 = vpack.c.b16 %v1460, %v1458
      %v1865 = vpack.c.b16 %v1463, %v1461
      %v1866 = vpack.c.b16 %v1464, %v1462
      %v1867 = vpack.c.b16 %v1467, %v1465
      %v1868 = vpack.c.b16 %v1468, %v1466
      %v1869 = vpack.c.b16 %v1471, %v1469
      %v1870 = vpack.c.b16 %v1472, %v1470
      %v1871 = vpack.c.b16 %v1475, %v1473
      %v1872 = vpack.c.b16 %v1476, %v1474
      %v1873 = vpack.c.b16 %v1479, %v1477
      %v1874 = vpack.c.b16 %v1480, %v1478
      %v1875 = vpack.c.b16 %v1483, %v1481
      %v1876 = vpack.c.b16 %v1484, %v1482
      %v1877 = vpack.c.b16 %v1487, %v1485
      %v1878 = vpack.c.b16 %v1488, %v1486
      %v1879 = vpack.c.b16 %v1491, %v1489
      %v1880 = vpack.c.b16 %v1492, %v1490
      %v1881 = vpack.c.b16 %v1495, %v1493
      %v1882 = vpack.c.b16 %v1496, %v1494
      %v1883 = vpack.c.b16 %v1499, %v1497
      %v1884 = vpack.c.b16 %v1500, %v1498
      %v1885 = vpack.c.b16 %v1503, %v1501
      %v1886 = vpack.c.b16 %v1504, %v1502
      %v1887 = vpack.c.b16 %v1507, %v1505
      %v1888 = vpack.c.b16 %v1508, %v1506
      %v1889 = vpack.c.b16 %v1511, %v1509
      %v1890 = vpack.c.b16 %v1512, %v1510
      %v1891 = vpack.c.b16 %v1515, %v1513
      %v1892 = vpack.c.b16 %v1516, %v1514
      %v1893 = vpack.c.b16 %v1519, %v1517
      %v1894 = vpack.c.b16 %v1520, %v1518
      %v1895 = vpack.c.b16 %v1523, %v1521
      %v1896 = vpack.c.b16 %v1524, %v1522
      %v1897 = vpack.c.b16 %v1527, %v1525
      %v1898 = vpack.c.b16 %v1528, %v1526
      %v1899 = vpack.c.b16 %v1531, %v1529
      %v1900 = vpack.c.b16 %v1532, %v1530
      %v1901 = vpack.c.b16 %v1535, %v1533
      %v1902 = vpack.c.b16 %v1536, %v1534
      %v1903 = vpack.c.b16 %v1539, %v1537
      %v1904 = vpack.c.b16 %v1540, %v1538
      %v1905 = vpack.c.b16 %v1543, %v1541
      %v1906 = vpack.c.b16 %v1544, %v1542
      %v1907 = vpack.c.b16 %v1547, %v1545
      %v1908 = vpack.c.b16 %v1548, %v1546
      %v1909 = vpack.c.b16 %v1551, %v1549
      %v1910 = vpack.c.b16 %v1552, %v1550
      %v1911 = vpack.c.b16 %v1555, %v1553
      %v1912 = vpack.c.b16 %v1556, %v1554
      %v1913 = vpack.c.b16 %v1559, %v1557
      %v1914 = vpack.c.b16 %v1560, %v1558
      %v1915 = vpack.c.b16 %v1563, %v1561
      %v1916 = vpack.c.b16 %v1564, %v1562
      %v1917 = vpack.c.b16 %v1567, %v1565
      %v1918 = vpack.c.b16 %v1568, %v1566
      %v1919 = vpack.c.b16 %v1571, %v1569
      %v1920 = vpack.c.b16 %v1572, %v1570
      %v1921 = vpack.c.b16 %v1575, %v1573
      %v1922 = vpack.c.b16 %v1576, %v1574
      %v1923 = vpack.c.b16 %v1579, %v1577
      %v1924 = vpack.c.b16 %v1580, %v1578
      %v1925 = vpack.c.b16 %v1583, %v1581
      %v1926 = vpack.c.b16 %v1584, %v1582
      %v1927 = vpack.c.b16 %v1587, %v1585
      %v1928 = vpack.c.b16 %v1588, %v1586
      %v1929 = vpack.c.b16 %v1591, %v1589
      %v1930 = vpack.c.b16 %v1592, %v1590
      %v1931 = vpack.c.b16 %v1595, %v1593
      %v1932 = vpack.c.b16 %v1596, %v1594
      %v1933 = vpack.c.b16 %v1599, %v1597
      %v1934 = vpack.c.b16 %v1600, %v1598
      %v1935 = vpack.c.b16 %v1603, %v1601
      %v1936 = vpack.c.b16 %v1604, %v1602
      %v1937 = vpack.c.b16 %v1607, %v1605
      %v1938 = vpack.c.b16 %v1608, %v1606
      %v1939 = vpack.c.b16 %v1611, %v1609
      %v1940 = vpack.c.b16 %v1612, %v1610
      %v1941 = vpack.c.b16 %v1615, %v1613
      %v1942 = vpack.c.b16 %v1616, %v1614
      %v1943 = vpack.c.b16 %v1619, %v1617
      %v1944 = vpack.c.b16 %v1620, %v1618
      %v1945 = vpack.c.b16 %v1623, %v1621
      %v1946 = vpack.c.b16 %v1624, %v1622
      %v1947 = vpack.c.b16 %v1627, %v1625
      %v1948 = vpack.c.b16 %v1628, %v1626
      %v1949 = vpack.c.b16 %v1631, %v1629
      %v1950 = vpack.c.b16 %v1632, %v1630
      %v1951 = vpack.c.b16 %v1635, %v1633
      %v1952 = vpack.c.b16 %v1636, %v1634
      %v1953 = vpack.c.b16 %v1639, %v1637
      %v1954 = vpack.c.b16 %v1640, %v1638
      %v1955 = vpack.c.b16 %v1643, %v1641
      %v1956 = vpack.c.b16 %v1644, %v1642
      %v1957 = vpack.c.b16 %v1647, %v1645
      %v1958 = vpack.c.b16 %v1648, %v1646
      %v1959 = vpack.c.b16 %v1651, %v1649
      %v1960 = vpack.c.b16 %v1652, %v1650
      %v1961 = vpack.c.b16 %v1655, %v1653
      %v1962 = vpack.c.b16 %v1656, %v1654
      %v1963 = vpack.c.b16 %v1659, %v1657
      %v1964 = vpack.c.b16 %v1660, %v1658
      %v1965 = vpack.c.b16 %v1663, %v1661
      %v1966 = vpack.c.b16 %v1664, %v1662
      %v1967 = vpack.c.b16 %v1667, %v1665
      %v1968 = vpack.c.b16 %v1668, %v1666
      %v1969 = vpack.c.b16 %v1671, %v1669
      %v1970 = vpack.c.b16 %v1672, %v1670
      %v1971 = vpack.c.b16 %v1675, %v1673
      %v1972 = vpack.c.b16 %v1676, %v1674
      %v1973 = vpack.c.b16 %v1679, %v1677
      %v1974 = vpack.c.b16 %v1680, %v1678
      %v1975 = vpack.c.b16 %v1683, %v1681
      %v1976 = vpack.c.b16 %v1684, %v1682
      %v1977 = vpack.c.b16 %v1687, %v1685
      %v1978 = vpack.c.b16 %v1688, %v1686
      %v1979 = vpack.c.b16 %v1691, %v1689
      %v1980 = vpack.c.b16 %v1692, %v1690
      %v1981 = vpack.c.b16 %v1695, %v1693
      %v1982 = vpack.c.b16 %v1696, %v1694
      %v1983 = vpack.c.b16 %v1699, %v1697
      %v1984 = vpack.c.b16 %v1700, %v1698
      %v1985 = vpack.c.b16 %v1703, %v1701
      %v1986 = vpack.c.b16 %v1704, %v1702
      %v1987 = vpack.c.b16 %v1707, %v1705
      %v1988 = vpack.c.b16 %v1708, %v1706
      %v1989 = vpack.c.b16 %v1711, %v1709
      %v1990 = vpack.c.b16 %v1712, %v1710
      %v1991 = vpack.c.b16 %v1715, %v1713
      %v1992 = vpack.c.b16 %v1716, %v1714
      %v1993 = vpack.c.b16 %v1719, %v1717
      %v1994 = vpack.c.b16 %v1720, %v1718
      %v1995 = vpack.c.b16 %v1723, %v1721
      %v1996 = vpack.c.b16 %v1724, %v1722
      %v1997 = vpack.c.b16 %v1727, %v1725
      %v1998 = vpack.c.b16 %v1728, %v1726
      %v1999 = vpack.c.b16 %v1731, %v1729
      %v2000 = vpack.c.b16 %v1732, %v1730
      %v2001 = vpack.c.b16 %v1735, %v1733
      %v2002 = vpack.c.b16 %v1736, %v1734
      %v2003 = vpack.c.b16 %v1739, %v1737
      %v2004 = vpack.c.b16 %v1740, %v1738
      %v2005 = vpack.c.b16 %v1743, %v1741
      %v2006 = vpack.c.b16 %v1744, %v1742
      %v2007 = vpack.c.b16 %v1747, %v1745
      %v2008 = vpack.c.b16 %v1748, %v1746
      %v2009 = vpack.c.b16 %v1751, %v1749
      %v2010 = vpack.c.b16 %v1752, %v1750
      %v2011 = vpack.c.b16 %v1755, %v1753
      %v2012 = vpack.c.b16 %v1756, %v1754
      %2269 = vmatprep.subr.bf16.mxu0 %v1758
      %2270 = vmatpush1.bf16.msra.mxu0 %v1757
      %2271 = vmatprep.subr.bf16.mxu0 %v1760
      %2272 = vmatpush1.bf16.msra.mxu0 %v1759
      %2273 = vmatprep.subr.bf16.mxu0 %v1762
      %2274 = vmatpush1.bf16.msra.mxu0 %v1761
      %2275 = vmatprep.subr.bf16.mxu0 %v1764
      %2276 = vmatpush1.bf16.msra.mxu0 %v1763
      %2277 = vmatprep.subr.bf16.mxu0 %v1766
      %2278 = vmatpush1.bf16.msra.mxu0 %v1765
      %2279 = vmatprep.subr.bf16.mxu0 %v1768
      %2280 = vmatpush1.bf16.msra.mxu0 %v1767
      %2281 = vmatprep.subr.bf16.mxu0 %v1770
      %2282 = vmatpush1.bf16.msra.mxu0 %v1769
      %2283 = vmatprep.subr.bf16.mxu0 %v1772
      %2284 = vmatpush1.bf16.msra.mxu0 %v1771
      %2285 = vmatprep.subr.bf16.mxu0 %v1774
      %2286 = vmatpush1.bf16.msra.mxu0 %v1773
      %2287 = vmatprep.subr.bf16.mxu0 %v1776
      %2288 = vmatpush1.bf16.msra.mxu0 %v1775
      %2289 = vmatprep.subr.bf16.mxu0 %v1778
      %2290 = vmatpush1.bf16.msra.mxu0 %v1777
      %2291 = vmatprep.subr.bf16.mxu0 %v1780
      %2292 = vmatpush1.bf16.msra.mxu0 %v1779
      %2293 = vmatprep.subr.bf16.mxu0 %v1782
      %2294 = vmatpush1.bf16.msra.mxu0 %v1781
      %2295 = vmatprep.subr.bf16.mxu0 %v1784
      %2296 = vmatpush1.bf16.msra.mxu0 %v1783
      %2297 = vmatprep.subr.bf16.mxu0 %v1786
      %2298 = vmatpush1.bf16.msra.mxu0 %v1785
      %2299 = vmatprep.subr.bf16.mxu0 %v1788
      %2300 = vmatpush1.bf16.msra.mxu0 %v1787
      %2301 = vmatprep.mubr.bf16.mxu0 %v690
      %2302 = vmatmul.mubr.bf16.gmra.mrb[0].mxu0 %v689
      %v2303 = vpop.f32.mrb[0].mxu0
      %v2304 = vadd.f32 %v982, %v2303
      %v2305 = vpop.f32.mrb[0].mxu0
      %v2306 = vadd.f32 %v986, %v2305
      %v2307 = vpop.f32.mrb[0].mxu0
      %v2308 = vadd.f32 %v982, %v2307
      %v2309 = vpop.f32.mrb[0].mxu0
      %v2310 = vadd.f32 %v986, %v2309
      %2311 = vdwg.mxu0
      %2312 = vmatprep.subr.bf16.mxu0 %v1790
      %2313 = vmatpush1.bf16.msra.mxu0 %v1789
      %2314 = vmatprep.subr.bf16.mxu0 %v1792
      %2315 = vmatpush1.bf16.msra.mxu0 %v1791
      %2316 = vmatprep.subr.bf16.mxu0 %v1794
      %2317 = vmatpush1.bf16.msra.mxu0 %v1793
      %2318 = vmatprep.subr.bf16.mxu0 %v1796
      %2319 = vmatpush1.bf16.msra.mxu0 %v1795
      %2320 = vmatprep.subr.bf16.mxu0 %v1798
      %2321 = vmatpush1.bf16.msra.mxu0 %v1797
      %2322 = vmatprep.subr.bf16.mxu0 %v1800
      %2323 = vmatpush1.bf16.msra.mxu0 %v1799
      %2324 = vmatprep.subr.bf16.mxu0 %v1802
      %2325 = vmatpush1.bf16.msra.mxu0 %v1801
      %2326 = vmatprep.subr.bf16.mxu0 %v1804
      %2327 = vmatpush1.bf16.msra.mxu0 %v1803
      %2328 = vmatprep.subr.bf16.mxu0 %v1806
      %2329 = vmatpush1.bf16.msra.mxu0 %v1805
      %2330 = vmatprep.subr.bf16.mxu0 %v1808
      %2331 = vmatpush1.bf16.msra.mxu0 %v1807
      %2332 = vmatprep.subr.bf16.mxu0 %v1810
      %2333 = vmatpush1.bf16.msra.mxu0 %v1809
      %2334 = vmatprep.subr.bf16.mxu0 %v1812
      %2335 = vmatpush1.bf16.msra.mxu0 %v1811
      %2336 = vmatprep.subr.bf16.mxu0 %v1814
      %2337 = vmatpush1.bf16.msra.mxu0 %v1813
      %2338 = vmatprep.subr.bf16.mxu0 %v1816
      %2339 = vmatpush1.bf16.msra.mxu0 %v1815
      %2340 = vmatprep.subr.bf16.mxu0 %v1818
      %2341 = vmatpush1.bf16.msra.mxu0 %v1817
      %2342 = vmatprep.subr.bf16.mxu0 %v1820
      %2343 = vmatpush1.bf16.msra.mxu0 %v1819
      %2344 = vmatprep.mubr.bf16.mxu0 %v692
      %2345 = vmatmul.mubr.bf16.gmra.mrb[0].mxu0 %v691
      %v2346 = vpop.f32.mrb[0].mxu0
      %v2347 = vadd.f32 %v2304, %v2346
      %v2348 = vpop.f32.mrb[0].mxu0
      %v2349 = vadd.f32 %v2306, %v2348
      %v2350 = vpop.f32.mrb[0].mxu0
      %v2351 = vadd.f32 %v2308, %v2350
      %v2352 = vpop.f32.mrb[0].mxu0
      %v2353 = vadd.f32 %v2310, %v2352
      %2354 = vdwg.mxu0
      %2355 = vmatprep.subr.bf16.mxu0 %v1822
      %2356 = vmatpush1.bf16.msra.mxu0 %v1821
      %2357 = vmatprep.subr.bf16.mxu0 %v1824
      %2358 = vmatpush1.bf16.msra.mxu0 %v1823
      %2359 = vmatprep.subr.bf16.mxu0 %v1826
      %2360 = vmatpush1.bf16.msra.mxu0 %v1825
      %2361 = vmatprep.subr.bf16.mxu0 %v1828
      %2362 = vmatpush1.bf16.msra.mxu0 %v1827
      %2363 = vmatprep.subr.bf16.mxu0 %v1830
      %2364 = vmatpush1.bf16.msra.mxu0 %v1829
      %2365 = vmatprep.subr.bf16.mxu0 %v1832
      %2366 = vmatpush1.bf16.msra.mxu0 %v1831
      %2367 = vmatprep.subr.bf16.mxu0 %v1834
      %2368 = vmatpush1.bf16.msra.mxu0 %v1833
      %2369 = vmatprep.subr.bf16.mxu0 %v1836
      %2370 = vmatpush1.bf16.msra.mxu0 %v1835
      %2371 = vmatprep.subr.bf16.mxu0 %v1838
      %2372 = vmatpush1.bf16.msra.mxu0 %v1837
      %2373 = vmatprep.subr.bf16.mxu0 %v1840
      %2374 = vmatpush1.bf16.msra.mxu0 %v1839
      %2375 = vmatprep.subr.bf16.mxu0 %v1842
      %2376 = vmatpush1.bf16.msra.mxu0 %v1841
      %2377 = vmatprep.subr.bf16.mxu0 %v1844
      %2378 = vmatpush1.bf16.msra.mxu0 %v1843
      %2379 = vmatprep.subr.bf16.mxu0 %v1846
      %2380 = vmatpush1.bf16.msra.mxu0 %v1845
      %2381 = vmatprep.subr.bf16.mxu0 %v1848
      %2382 = vmatpush1.bf16.msra.mxu0 %v1847
      %2383 = vmatprep.subr.bf16.mxu0 %v1850
      %2384 = vmatpush1.bf16.msra.mxu0 %v1849
      %2385 = vmatprep.subr.bf16.mxu0 %v1852
      %2386 = vmatpush1.bf16.msra.mxu0 %v1851
      %2387 = vmatprep.mubr.bf16.mxu0 %v694
      %2388 = vmatmul.mubr.bf16.gmra.mrb[0].mxu0 %v693
      %v2389 = vpop.f32.mrb[0].mxu0
      %v2390 = vadd.f32 %v2347, %v2389
      %v2391 = vpop.f32.mrb[0].mxu0
      %v2392 = vadd.f32 %v2349, %v2391
      %v2393 = vpop.f32.mrb[0].mxu0
      %v2394 = vadd.f32 %v2351, %v2393
      %v2395 = vpop.f32.mrb[0].mxu0
      %v2396 = vadd.f32 %v2353, %v2395
      %2397 = vdwg.mxu0
      %2398 = vmatprep.subr.bf16.mxu0 %v1854
      %2399 = vmatpush1.bf16.msra.mxu0 %v1853
      %2400 = vmatprep.subr.bf16.mxu0 %v1856
      %2401 = vmatpush1.bf16.msra.mxu0 %v1855
      %2402 = vmatprep.subr.bf16.mxu0 %v1858
      %2403 = vmatpush1.bf16.msra.mxu0 %v1857
      %2404 = vmatprep.subr.bf16.mxu0 %v1860
      %2405 = vmatpush1.bf16.msra.mxu0 %v1859
      %2406 = vmatprep.subr.bf16.mxu0 %v1862
      %2407 = vmatpush1.bf16.msra.mxu0 %v1861
      %2408 = vmatprep.subr.bf16.mxu0 %v1864
      %2409 = vmatpush1.bf16.msra.mxu0 %v1863
      %2410 = vmatprep.subr.bf16.mxu0 %v1866
      %2411 = vmatpush1.bf16.msra.mxu0 %v1865
      %2412 = vmatprep.subr.bf16.mxu0 %v1868
      %2413 = vmatpush1.bf16.msra.mxu0 %v1867
      %2414 = vmatprep.subr.bf16.mxu0 %v1870
      %2415 = vmatpush1.bf16.msra.mxu0 %v1869
      %2416 = vmatprep.subr.bf16.mxu0 %v1872
      %2417 = vmatpush1.bf16.msra.mxu0 %v1871
      %2418 = vmatprep.subr.bf16.mxu0 %v1874
      %2419 = vmatpush1.bf16.msra.mxu0 %v1873
      %2420 = vmatprep.subr.bf16.mxu0 %v1876
      %2421 = vmatpush1.bf16.msra.mxu0 %v1875
      %2422 = vmatprep.subr.bf16.mxu0 %v1878
      %2423 = vmatpush1.bf16.msra.mxu0 %v1877
      %2424 = vmatprep.subr.bf16.mxu0 %v1880
      %2425 = vmatpush1.bf16.msra.mxu0 %v1879
      %2426 = vmatprep.subr.bf16.mxu0 %v1882
      %2427 = vmatpush1.bf16.msra.mxu0 %v1881
      %2428 = vmatprep.subr.bf16.mxu0 %v1884
      %2429 = vmatpush1.bf16.msra.mxu0 %v1883
      %2430 = vmatprep.mubr.bf16.mxu0 %v696
      %2431 = vmatmul.mubr.bf16.gmra.mrb[0].mxu0 %v695
      %v2432 = vpop.f32.mrb[0].mxu0
      %v2433 = vadd.f32 %v2390, %v2432
      %v2434 = vpop.f32.mrb[0].mxu0
      %v2435 = vadd.f32 %v2392, %v2434
      %v2436 = vpop.f32.mrb[0].mxu0
      %v2437 = vadd.f32 %v2394, %v2436
      %v2438 = vpop.f32.mrb[0].mxu0
      %v2439 = vadd.f32 %v2396, %v2438
      %2440 = vdwg.mxu0
      %2441 = vmatprep.subr.bf16.mxu0 %v1886
      %2442 = vmatpush1.bf16.msra.mxu0 %v1885
      %2443 = vmatprep.subr.bf16.mxu0 %v1888
      %2444 = vmatpush1.bf16.msra.mxu0 %v1887
      %2445 = vmatprep.subr.bf16.mxu0 %v1890
      %2446 = vmatpush1.bf16.msra.mxu0 %v1889
      %2447 = vmatprep.subr.bf16.mxu0 %v1892
      %2448 = vmatpush1.bf16.msra.mxu0 %v1891
      %2449 = vmatprep.subr.bf16.mxu0 %v1894
      %2450 = vmatpush1.bf16.msra.mxu0 %v1893
      %2451 = vmatprep.subr.bf16.mxu0 %v1896
      %2452 = vmatpush1.bf16.msra.mxu0 %v1895
      %2453 = vmatprep.subr.bf16.mxu0 %v1898
      %2454 = vmatpush1.bf16.msra.mxu0 %v1897
      %2455 = vmatprep.subr.bf16.mxu0 %v1900
      %2456 = vmatpush1.bf16.msra.mxu0 %v1899
      %2457 = vmatprep.subr.bf16.mxu0 %v1902
      %2458 = vmatpush1.bf16.msra.mxu0 %v1901
      %2459 = vmatprep.subr.bf16.mxu0 %v1904
      %2460 = vmatpush1.bf16.msra.mxu0 %v1903
      %2461 = vmatprep.subr.bf16.mxu0 %v1906
      %2462 = vmatpush1.bf16.msra.mxu0 %v1905
      %2463 = vmatprep.subr.bf16.mxu0 %v1908
      %2464 = vmatpush1.bf16.msra.mxu0 %v1907
      %2465 = vmatprep.subr.bf16.mxu0 %v1910
      %2466 = vmatpush1.bf16.msra.mxu0 %v1909
      %2467 = vmatprep.subr.bf16.mxu0 %v1912
      %2468 = vmatpush1.bf16.msra.mxu0 %v1911
      %2469 = vmatprep.subr.bf16.mxu0 %v1914
      %2470 = vmatpush1.bf16.msra.mxu0 %v1913
      %2471 = vmatprep.subr.bf16.mxu0 %v1916
      %2472 = vmatpush1.bf16.msra.mxu0 %v1915
      %2473 = vmatprep.mubr.bf16.mxu0 %v698
      %2474 = vmatmul.mubr.bf16.gmra.mrb[0].mxu0 %v697
      %v2475 = vpop.f32.mrb[0].mxu0
      %v2476 = vadd.f32 %v2433, %v2475
      %v2477 = vpop.f32.mrb[0].mxu0
      %v2478 = vadd.f32 %v2435, %v2477
      %v2479 = vpop.f32.mrb[0].mxu0
      %v2480 = vadd.f32 %v2437, %v2479
      %v2481 = vpop.f32.mrb[0].mxu0
      %v2482 = vadd.f32 %v2439, %v2481
      %2483 = vdwg.mxu0
      %2484 = vmatprep.subr.bf16.mxu0 %v1918
      %2485 = vmatpush1.bf16.msra.mxu0 %v1917
      %2486 = vmatprep.subr.bf16.mxu0 %v1920
      %2487 = vmatpush1.bf16.msra.mxu0 %v1919
      %2488 = vmatprep.subr.bf16.mxu0 %v1922
      %2489 = vmatpush1.bf16.msra.mxu0 %v1921
      %2490 = vmatprep.subr.bf16.mxu0 %v1924
      %2491 = vmatpush1.bf16.msra.mxu0 %v1923
      %2492 = vmatprep.subr.bf16.mxu0 %v1926
      %2493 = vmatpush1.bf16.msra.mxu0 %v1925
      %2494 = vmatprep.subr.bf16.mxu0 %v1928
      %2495 = vmatpush1.bf16.msra.mxu0 %v1927
      %2496 = vmatprep.subr.bf16.mxu0 %v1930
      %2497 = vmatpush1.bf16.msra.mxu0 %v1929
      %2498 = vmatprep.subr.bf16.mxu0 %v1932
      %2499 = vmatpush1.bf16.msra.mxu0 %v1931
      %2500 = vmatprep.subr.bf16.mxu0 %v1934
      %2501 = vmatpush1.bf16.msra.mxu0 %v1933
      %2502 = vmatprep.subr.bf16.mxu0 %v1936
      %2503 = vmatpush1.bf16.msra.mxu0 %v1935
      %2504 = vmatprep.subr.bf16.mxu0 %v1938
      %2505 = vmatpush1.bf16.msra.mxu0 %v1937
      %2506 = vmatprep.subr.bf16.mxu0 %v1940
      %2507 = vmatpush1.bf16.msra.mxu0 %v1939
      %2508 = vmatprep.subr.bf16.mxu0 %v1942
      %2509 = vmatpush1.bf16.msra.mxu0 %v1941
      %2510 = vmatprep.subr.bf16.mxu0 %v1944
      %2511 = vmatpush1.bf16.msra.mxu0 %v1943
      %2512 = vmatprep.subr.bf16.mxu0 %v1946
      %2513 = vmatpush1.bf16.msra.mxu0 %v1945
      %2514 = vmatprep.subr.bf16.mxu0 %v1948
      %2515 = vmatpush1.bf16.msra.mxu0 %v1947
      %2516 = vmatprep.mubr.bf16.mxu0 %v700
      %2517 = vmatmul.mubr.bf16.gmra.mrb[0].mxu0 %v699
      %v2518 = vpop.f32.mrb[0].mxu0
      %v2519 = vadd.f32 %v2476, %v2518
      %v2520 = vpop.f32.mrb[0].mxu0
      %v2521 = vadd.f32 %v2478, %v2520
      %v2522 = vpop.f32.mrb[0].mxu0
      %v2523 = vadd.f32 %v2480, %v2522
      %v2524 = vpop.f32.mrb[0].mxu0
      %v2525 = vadd.f32 %v2482, %v2524
      %2526 = vdwg.mxu0
      %2527 = vmatprep.subr.bf16.mxu0 %v1950
      %2528 = vmatpush1.bf16.msra.mxu0 %v1949
      %2529 = vmatprep.subr.bf16.mxu0 %v1952
      %2530 = vmatpush1.bf16.msra.mxu0 %v1951
      %2531 = vmatprep.subr.bf16.mxu0 %v1954
      %2532 = vmatpush1.bf16.msra.mxu0 %v1953
      %2533 = vmatprep.subr.bf16.mxu0 %v1956
      %2534 = vmatpush1.bf16.msra.mxu0 %v1955
      %2535 = vmatprep.subr.bf16.mxu0 %v1958
      %2536 = vmatpush1.bf16.msra.mxu0 %v1957
      %2537 = vmatprep.subr.bf16.mxu0 %v1960
      %2538 = vmatpush1.bf16.msra.mxu0 %v1959
      %2539 = vmatprep.subr.bf16.mxu0 %v1962
      %2540 = vmatpush1.bf16.msra.mxu0 %v1961
      %2541 = vmatprep.subr.bf16.mxu0 %v1964
      %2542 = vmatpush1.bf16.msra.mxu0 %v1963
      %2543 = vmatprep.subr.bf16.mxu0 %v1966
      %2544 = vmatpush1.bf16.msra.mxu0 %v1965
      %2545 = vmatprep.subr.bf16.mxu0 %v1968
      %2546 = vmatpush1.bf16.msra.mxu0 %v1967
      %2547 = vmatprep.subr.bf16.mxu0 %v1970
      %2548 = vmatpush1.bf16.msra.mxu0 %v1969
      %2549 = vmatprep.subr.bf16.mxu0 %v1972
      %2550 = vmatpush1.bf16.msra.mxu0 %v1971
      %2551 = vmatprep.subr.bf16.mxu0 %v1974
      %2552 = vmatpush1.bf16.msra.mxu0 %v1973
      %2553 = vmatprep.subr.bf16.mxu0 %v1976
      %2554 = vmatpush1.bf16.msra.mxu0 %v1975
      %2555 = vmatprep.subr.bf16.mxu0 %v1978
      %2556 = vmatpush1.bf16.msra.mxu0 %v1977
      %2557 = vmatprep.subr.bf16.mxu0 %v1980
      %2558 = vmatpush1.bf16.msra.mxu0 %v1979
      %2559 = vmatprep.mubr.bf16.mxu0 %v702
      %2560 = vmatmul.mubr.bf16.gmra.mrb[0].mxu0 %v701
      %v2561 = vpop.f32.mrb[0].mxu0
      %v2562 = vadd.f32 %v2519, %v2561
      %v2563 = vpop.f32.mrb[0].mxu0
      %v2564 = vadd.f32 %v2521, %v2563
      %v2565 = vpop.f32.mrb[0].mxu0
      %v2566 = vadd.f32 %v2523, %v2565
      %v2567 = vpop.f32.mrb[0].mxu0
      %v2568 = vadd.f32 %v2525, %v2567
      %2569 = vdwg.mxu0
      %2570 = vmatprep.subr.bf16.mxu0 %v1982
      %2571 = vmatpush1.bf16.msra.mxu0 %v1981
      %2572 = vmatprep.subr.bf16.mxu0 %v1984
      %2573 = vmatpush1.bf16.msra.mxu0 %v1983
      %2574 = vmatprep.subr.bf16.mxu0 %v1986
      %2575 = vmatpush1.bf16.msra.mxu0 %v1985
      %2576 = vmatprep.subr.bf16.mxu0 %v1988
      %2577 = vmatpush1.bf16.msra.mxu0 %v1987
      %2578 = vmatprep.subr.bf16.mxu0 %v1990
      %2579 = vmatpush1.bf16.msra.mxu0 %v1989
      %2580 = vmatprep.subr.bf16.mxu0 %v1992
      %2581 = vmatpush1.bf16.msra.mxu0 %v1991
      %2582 = vmatprep.subr.bf16.mxu0 %v1994
      %2583 = vmatpush1.bf16.msra.mxu0 %v1993
      %2584 = vmatprep.subr.bf16.mxu0 %v1996
      %2585 = vmatpush1.bf16.msra.mxu0 %v1995
      %2586 = vmatprep.subr.bf16.mxu0 %v1998
      %2587 = vmatpush1.bf16.msra.mxu0 %v1997
      %2588 = vmatprep.subr.bf16.mxu0 %v2000
      %2589 = vmatpush1.bf16.msra.mxu0 %v1999
      %2590 = vmatprep.subr.bf16.mxu0 %v2002
      %2591 = vmatpush1.bf16.msra.mxu0 %v2001
      %2592 = vmatprep.subr.bf16.mxu0 %v2004
      %2593 = vmatpush1.bf16.msra.mxu0 %v2003
      %2594 = vmatprep.subr.bf16.mxu0 %v2006
      %2595 = vmatpush1.bf16.msra.mxu0 %v2005
      %2596 = vmatprep.subr.bf16.mxu0 %v2008
      %2597 = vmatpush1.bf16.msra.mxu0 %v2007
      %2598 = vmatprep.subr.bf16.mxu0 %v2010
      %2599 = vmatpush1.bf16.msra.mxu0 %v2009
      %2600 = vmatprep.subr.bf16.mxu0 %v2012
      %2601 = vmatpush1.bf16.msra.mxu0 %v2011
      %2602 = vmatprep.mubr.bf16.mxu0 %v704
      %2603 = vmatmul.mubr.bf16.gmra.mrb[0].mxu0 %v703
      %v2604 = vpop.f32.mrb[0].mxu0
      %v2605 = vadd.f32 %v2562, %v2604
      %v2606 = vpop.f32.mrb[0].mxu0
      %v2607 = vadd.f32 %v2564, %v2606
      %v2608 = vpop.f32.mrb[0].mxu0
      %v2609 = vadd.f32 %v2566, %v2608
      %v2610 = vpop.f32.mrb[0].mxu0
      %v2611 = vadd.f32 %v2568, %v2610
      %2612 = vdwg.mxu0
      %2613 = vst [vmem:[#allocation3] sm:$0xff] %v2605
      %2614 = vst [vmem:[#allocation3 + $0x8] sm:$0xff] %v2607
      %2615 = vst [vmem:[#allocation3 + $0x10] sm:$0xff] %v2609
      %2616 = vst [vmem:[#allocation3 + $0x18] sm:$0xff] %v2611
    $region25: #{generator_forward.1} parent=1 // pred_fallthru
      _
    %p2617 = scmp.gt.s32.totalorder 0, 0
    // Predicated region
    $region26: #{generator_forward.1} parent=1 // pred_check
      %p2618 = pneg %p2617
    $region27: #{generator_forward.1} parent=1 // pred_check_branch
      %2620 = sbr.rel (%p2618) target = $region29
    $region28: #{generator_forward.1} parent=1 // pred_region
      %v2621 = vld [vmem:[#allocation2] sm:$0xff]
      %v2622 = vld [vmem:[#allocation2 + $0x8] sm:$0xff]
      %v2623 = vld [vmem:[#allocation2 + $0x10] sm:$0xff]
      %v2624 = vld [vmem:[#allocation2 + $0x18] sm:$0xff]
      %v2625 = vld [vmem:[#allocation2 + $0x20] sm:$0xff]
      %v2626 = vld [vmem:[#allocation2 + $0x28] sm:$0xff]
      %v2627 = vld [vmem:[#allocation2 + $0x30] sm:$0xff]
      %v2628 = vld [vmem:[#allocation2 + $0x38] sm:$0xff]
      %v2629 = vld [vmem:[#allocation2 + $0x40] sm:$0xff]
      %v2630 = vld [vmem:[#allocation2 + $0x48] sm:$0xff]
      %v2631 = vld [vmem:[#allocation2 + $0x50] sm:$0xff]
      %v2632 = vld [vmem:[#allocation2 + $0x58] sm:$0xff]
      %v2633 = vld [vmem:[#allocation2 + $0x60] sm:$0xff]
      %v2634 = vld [vmem:[#allocation2 + $0x68] sm:$0xff]
      %v2635 = vld [vmem:[#allocation2 + $0x70] sm:$0xff]
      %v2636 = vld [vmem:[#allocation2 + $0x78] sm:$0xff]
      %v2637 = vld [vmem:[%s3] sm:$0xff]
      %v2638 = vld [vmem:[%s3 + $0x8] sm:$0xff]
      %v2639 = vld [vmem:[%s3 + $0x10] sm:$0xff]
      %v2640 = vld [vmem:[%s3 + $0x18] sm:$0xff]
      %v2641 = vld [vmem:[%s3 + $0x20] sm:$0xff]
      %v2642 = vld [vmem:[%s3 + $0x28] sm:$0xff]
      %v2643 = vld [vmem:[%s3 + $0x30] sm:$0xff]
      %v2644 = vld [vmem:[%s3 + $0x38] sm:$0xff]
      %v2645 = vld [vmem:[%s3 + $0x40] sm:$0xff]
      %v2646 = vld [vmem:[%s3 + $0x48] sm:$0xff]
      %v2647 = vld [vmem:[%s3 + $0x50] sm:$0xff]
      %v2648 = vld [vmem:[%s3 + $0x58] sm:$0xff]
      %v2649 = vld [vmem:[%s3 + $0x60] sm:$0xff]
      %v2650 = vld [vmem:[%s3 + $0x68] sm:$0xff]
      %v2651 = vld [vmem:[%s3 + $0x70] sm:$0xff]
      %v2652 = vld [vmem:[%s3 + $0x78] sm:$0xff]
      %v2653 = vld [vmem:[%s3 + $0x80] sm:$0xff]
      %v2654 = vld [vmem:[%s3 + $0x88] sm:$0xff]
      %v2655 = vld [vmem:[%s3 + $0x90] sm:$0xff]
      %v2656 = vld [vmem:[%s3 + $0x98] sm:$0xff]
      %v2657 = vld [vmem:[%s3 + $0xa0] sm:$0xff]
      %v2658 = vld [vmem:[%s3 + $0xa8] sm:$0xff]
      %v2659 = vld [vmem:[%s3 + $0xb0] sm:$0xff]
      %v2660 = vld [vmem:[%s3 + $0xb8] sm:$0xff]
      %v2661 = vld [vmem:[%s3 + $0xc0] sm:$0xff]
      %v2662 = vld [vmem:[%s3 + $0xc8] sm:$0xff]
      %v2663 = vld [vmem:[%s3 + $0xd0] sm:$0xff]
      %v2664 = vld [vmem:[%s3 + $0xd8] sm:$0xff]
      %v2665 = vld [vmem:[%s3 + $0xe0] sm:$0xff]
      %v2666 = vld [vmem:[%s3 + $0xe8] sm:$0xff]
      %v2667 = vld [vmem:[%s3 + $0xf0] sm:$0xff]
      %v2668 = vld [vmem:[%s3 + $0xf8] sm:$0xff]
      %v2669 = vld [vmem:[%s3 + $0x100] sm:$0xff]
      %v2670 = vld [vmem:[%s3 + $0x108] sm:$0xff]
      %v2671 = vld [vmem:[%s3 + $0x110] sm:$0xff]
      %v2672 = vld [vmem:[%s3 + $0x118] sm:$0xff]
      %v2673 = vld [vmem:[%s3 + $0x120] sm:$0xff]
      %v2674 = vld [vmem:[%s3 + $0x128] sm:$0xff]
      %v2675 = vld [vmem:[%s3 + $0x130] sm:$0xff]
      %v2676 = vld [vmem:[%s3 + $0x138] sm:$0xff]
      %v2677 = vld [vmem:[%s3 + $0x140] sm:$0xff]
      %v2678 = vld [vmem:[%s3 + $0x148] sm:$0xff]
      %v2679 = vld [vmem:[%s3 + $0x150] sm:$0xff]
      %v2680 = vld [vmem:[%s3 + $0x158] sm:$0xff]
      %v2681 = vld [vmem:[%s3 + $0x160] sm:$0xff]
      %v2682 = vld [vmem:[%s3 + $0x168] sm:$0xff]
      %v2683 = vld [vmem:[%s3 + $0x170] sm:$0xff]
      %v2684 = vld [vmem:[%s3 + $0x178] sm:$0xff]
      %v2685 = vld [vmem:[%s3 + $0x180] sm:$0xff]
      %v2686 = vld [vmem:[%s3 + $0x188] sm:$0xff]
      %v2687 = vld [vmem:[%s3 + $0x190] sm:$0xff]
      %v2688 = vld [vmem:[%s3 + $0x198] sm:$0xff]
      %v2689 = vld [vmem:[%s3 + $0x1a0] sm:$0xff]
      %v2690 = vld [vmem:[%s3 + $0x1a8] sm:$0xff]
      %v2691 = vld [vmem:[%s3 + $0x1b0] sm:$0xff]
      %v2692 = vld [vmem:[%s3 + $0x1b8] sm:$0xff]
      %v2693 = vld [vmem:[%s3 + $0x1c0] sm:$0xff]
      %v2694 = vld [vmem:[%s3 + $0x1c8] sm:$0xff]
      %v2695 = vld [vmem:[%s3 + $0x1d0] sm:$0xff]
      %v2696 = vld [vmem:[%s3 + $0x1d8] sm:$0xff]
      %v2697 = vld [vmem:[%s3 + $0x1e0] sm:$0xff]
      %v2698 = vld [vmem:[%s3 + $0x1e8] sm:$0xff]
      %v2699 = vld [vmem:[%s3 + $0x1f0] sm:$0xff]
      %v2700 = vld [vmem:[%s3 + $0x1f8] sm:$0xff]
      %v2701 = vld [vmem:[%s3 + $0x200] sm:$0xff]
      %v2702 = vld [vmem:[%s3 + $0x208] sm:$0xff]
      %v2703 = vld [vmem:[%s3 + $0x210] sm:$0xff]
      %v2704 = vld [vmem:[%s3 + $0x218] sm:$0xff]
      %v2705 = vld [vmem:[%s3 + $0x220] sm:$0xff]
      %v2706 = vld [vmem:[%s3 + $0x228] sm:$0xff]
      %v2707 = vld [vmem:[%s3 + $0x230] sm:$0xff]
      %v2708 = vld [vmem:[%s3 + $0x238] sm:$0xff]
      %v2709 = vld [vmem:[%s3 + $0x240] sm:$0xff]
      %v2710 = vld [vmem:[%s3 + $0x248] sm:$0xff]
      %v2711 = vld [vmem:[%s3 + $0x250] sm:$0xff]
      %v2712 = vld [vmem:[%s3 + $0x258] sm:$0xff]
      %v2713 = vld [vmem:[%s3 + $0x260] sm:$0xff]
      %v2714 = vld [vmem:[%s3 + $0x268] sm:$0xff]
      %v2715 = vld [vmem:[%s3 + $0x270] sm:$0xff]
      %v2716 = vld [vmem:[%s3 + $0x278] sm:$0xff]
      %v2717 = vld [vmem:[%s3 + $0x280] sm:$0xff]
      %v2718 = vld [vmem:[%s3 + $0x288] sm:$0xff]
      %v2719 = vld [vmem:[%s3 + $0x290] sm:$0xff]
      %v2720 = vld [vmem:[%s3 + $0x298] sm:$0xff]
      %v2721 = vld [vmem:[%s3 + $0x2a0] sm:$0xff]
      %v2722 = vld [vmem:[%s3 + $0x2a8] sm:$0xff]
      %v2723 = vld [vmem:[%s3 + $0x2b0] sm:$0xff]
      %v2724 = vld [vmem:[%s3 + $0x2b8] sm:$0xff]
      %v2725 = vld [vmem:[%s3 + $0x2c0] sm:$0xff]
      %v2726 = vld [vmem:[%s3 + $0x2c8] sm:$0xff]
      %v2727 = vld [vmem:[%s3 + $0x2d0] sm:$0xff]
      %v2728 = vld [vmem:[%s3 + $0x2d8] sm:$0xff]
      %v2729 = vld [vmem:[%s3 + $0x2e0] sm:$0xff]
      %v2730 = vld [vmem:[%s3 + $0x2e8] sm:$0xff]
      %v2731 = vld [vmem:[%s3 + $0x2f0] sm:$0xff]
      %v2732 = vld [vmem:[%s3 + $0x2f8] sm:$0xff]
      %v2733 = vld [vmem:[%s3 + $0x300] sm:$0xff]
      %v2734 = vld [vmem:[%s3 + $0x308] sm:$0xff]
      %v2735 = vld [vmem:[%s3 + $0x310] sm:$0xff]
      %v2736 = vld [vmem:[%s3 + $0x318] sm:$0xff]
      %v2737 = vld [vmem:[%s3 + $0x320] sm:$0xff]
      %v2738 = vld [vmem:[%s3 + $0x328] sm:$0xff]
      %v2739 = vld [vmem:[%s3 + $0x330] sm:$0xff]
      %v2740 = vld [vmem:[%s3 + $0x338] sm:$0xff]
      %v2741 = vld [vmem:[%s3 + $0x340] sm:$0xff]
      %v2742 = vld [vmem:[%s3 + $0x348] sm:$0xff]
      %v2743 = vld [vmem:[%s3 + $0x350] sm:$0xff]
      %v2744 = vld [vmem:[%s3 + $0x358] sm:$0xff]
      %v2745 = vld [vmem:[%s3 + $0x360] sm:$0xff]
      %v2746 = vld [vmem:[%s3 + $0x368] sm:$0xff]
      %v2747 = vld [vmem:[%s3 + $0x370] sm:$0xff]
      %v2748 = vld [vmem:[%s3 + $0x378] sm:$0xff]
      %v2749 = vld [vmem:[%s3 + $0x380] sm:$0xff]
      %v2750 = vld [vmem:[%s3 + $0x388] sm:$0xff]
      %v2751 = vld [vmem:[%s3 + $0x390] sm:$0xff]
      %v2752 = vld [vmem:[%s3 + $0x398] sm:$0xff]
      %v2753 = vld [vmem:[%s3 + $0x3a0] sm:$0xff]
      %v2754 = vld [vmem:[%s3 + $0x3a8] sm:$0xff]
      %v2755 = vld [vmem:[%s3 + $0x3b0] sm:$0xff]
      %v2756 = vld [vmem:[%s3 + $0x3b8] sm:$0xff]
      %v2757 = vld [vmem:[%s3 + $0x3c0] sm:$0xff]
      %v2758 = vld [vmem:[%s3 + $0x3c8] sm:$0xff]
      %v2759 = vld [vmem:[%s3 + $0x3d0] sm:$0xff]
      %v2760 = vld [vmem:[%s3 + $0x3d8] sm:$0xff]
      %v2761 = vld [vmem:[%s3 + $0x3e0] sm:$0xff]
      %v2762 = vld [vmem:[%s3 + $0x3e8] sm:$0xff]
      %v2763 = vld [vmem:[%s3 + $0x3f0] sm:$0xff]
      %v2764 = vld [vmem:[%s3 + $0x3f8] sm:$0xff]
      %v2765 = vld [vmem:[%s3 + $0x400] sm:$0xff]
      %v2766 = vld [vmem:[%s3 + $0x408] sm:$0xff]
      %v2767 = vld [vmem:[%s3 + $0x410] sm:$0xff]
      %v2768 = vld [vmem:[%s3 + $0x418] sm:$0xff]
      %v2769 = vld [vmem:[%s3 + $0x420] sm:$0xff]
      %v2770 = vld [vmem:[%s3 + $0x428] sm:$0xff]
      %v2771 = vld [vmem:[%s3 + $0x430] sm:$0xff]
      %v2772 = vld [vmem:[%s3 + $0x438] sm:$0xff]
      %v2773 = vld [vmem:[%s3 + $0x440] sm:$0xff]
      %v2774 = vld [vmem:[%s3 + $0x448] sm:$0xff]
      %v2775 = vld [vmem:[%s3 + $0x450] sm:$0xff]
      %v2776 = vld [vmem:[%s3 + $0x458] sm:$0xff]
      %v2777 = vld [vmem:[%s3 + $0x460] sm:$0xff]
      %v2778 = vld [vmem:[%s3 + $0x468] sm:$0xff]
      %v2779 = vld [vmem:[%s3 + $0x470] sm:$0xff]
      %v2780 = vld [vmem:[%s3 + $0x478] sm:$0xff]
      %v2781 = vld [vmem:[%s3 + $0x480] sm:$0xff]
      %v2782 = vld [vmem:[%s3 + $0x488] sm:$0xff]
      %v2783 = vld [vmem:[%s3 + $0x490] sm:$0xff]
      %v2784 = vld [vmem:[%s3 + $0x498] sm:$0xff]
      %v2785 = vld [vmem:[%s3 + $0x4a0] sm:$0xff]
      %v2786 = vld [vmem:[%s3 + $0x4a8] sm:$0xff]
      %v2787 = vld [vmem:[%s3 + $0x4b0] sm:$0xff]
      %v2788 = vld [vmem:[%s3 + $0x4b8] sm:$0xff]
      %v2789 = vld [vmem:[%s3 + $0x4c0] sm:$0xff]
      %v2790 = vld [vmem:[%s3 + $0x4c8] sm:$0xff]
      %v2791 = vld [vmem:[%s3 + $0x4d0] sm:$0xff]
      %v2792 = vld [vmem:[%s3 + $0x4d8] sm:$0xff]
      %v2793 = vld [vmem:[%s3 + $0x4e0] sm:$0xff]
      %v2794 = vld [vmem:[%s3 + $0x4e8] sm:$0xff]
      %v2795 = vld [vmem:[%s3 + $0x4f0] sm:$0xff]
      %v2796 = vld [vmem:[%s3 + $0x4f8] sm:$0xff]
      %v2797 = vld [vmem:[%s3 + $0x500] sm:$0xff]
      %v2798 = vld [vmem:[%s3 + $0x508] sm:$0xff]
      %v2799 = vld [vmem:[%s3 + $0x510] sm:$0xff]
      %v2800 = vld [vmem:[%s3 + $0x518] sm:$0xff]
      %v2801 = vld [vmem:[%s3 + $0x520] sm:$0xff]
      %v2802 = vld [vmem:[%s3 + $0x528] sm:$0xff]
      %v2803 = vld [vmem:[%s3 + $0x530] sm:$0xff]
      %v2804 = vld [vmem:[%s3 + $0x538] sm:$0xff]
      %v2805 = vld [vmem:[%s3 + $0x540] sm:$0xff]
      %v2806 = vld [vmem:[%s3 + $0x548] sm:$0xff]
      %v2807 = vld [vmem:[%s3 + $0x550] sm:$0xff]
      %v2808 = vld [vmem:[%s3 + $0x558] sm:$0xff]
      %v2809 = vld [vmem:[%s3 + $0x560] sm:$0xff]
      %v2810 = vld [vmem:[%s3 + $0x568] sm:$0xff]
      %v2811 = vld [vmem:[%s3 + $0x570] sm:$0xff]
      %v2812 = vld [vmem:[%s3 + $0x578] sm:$0xff]
      %v2813 = vld [vmem:[%s3 + $0x580] sm:$0xff]
      %v2814 = vld [vmem:[%s3 + $0x588] sm:$0xff]
      %v2815 = vld [vmem:[%s3 + $0x590] sm:$0xff]
      %v2816 = vld [vmem:[%s3 + $0x598] sm:$0xff]
      %v2817 = vld [vmem:[%s3 + $0x5a0] sm:$0xff]
      %v2818 = vld [vmem:[%s3 + $0x5a8] sm:$0xff]
      %v2819 = vld [vmem:[%s3 + $0x5b0] sm:$0xff]
      %v2820 = vld [vmem:[%s3 + $0x5b8] sm:$0xff]
      %v2821 = vld [vmem:[%s3 + $0x5c0] sm:$0xff]
      %v2822 = vld [vmem:[%s3 + $0x5c8] sm:$0xff]
      %v2823 = vld [vmem:[%s3 + $0x5d0] sm:$0xff]
      %v2824 = vld [vmem:[%s3 + $0x5d8] sm:$0xff]
      %v2825 = vld [vmem:[%s3 + $0x5e0] sm:$0xff]
      %v2826 = vld [vmem:[%s3 + $0x5e8] sm:$0xff]
      %v2827 = vld [vmem:[%s3 + $0x5f0] sm:$0xff]
      %v2828 = vld [vmem:[%s3 + $0x5f8] sm:$0xff]
      %v2829 = vld [vmem:[%s3 + $0x600] sm:$0xff]
      %v2830 = vld [vmem:[%s3 + $0x608] sm:$0xff]
      %v2831 = vld [vmem:[%s3 + $0x610] sm:$0xff]
      %v2832 = vld [vmem:[%s3 + $0x618] sm:$0xff]
      %v2833 = vld [vmem:[%s3 + $0x620] sm:$0xff]
      %v2834 = vld [vmem:[%s3 + $0x628] sm:$0xff]
      %v2835 = vld [vmem:[%s3 + $0x630] sm:$0xff]
      %v2836 = vld [vmem:[%s3 + $0x638] sm:$0xff]
      %v2837 = vld [vmem:[%s3 + $0x640] sm:$0xff]
      %v2838 = vld [vmem:[%s3 + $0x648] sm:$0xff]
      %v2839 = vld [vmem:[%s3 + $0x650] sm:$0xff]
      %v2840 = vld [vmem:[%s3 + $0x658] sm:$0xff]
      %v2841 = vld [vmem:[%s3 + $0x660] sm:$0xff]
      %v2842 = vld [vmem:[%s3 + $0x668] sm:$0xff]
      %v2843 = vld [vmem:[%s3 + $0x670] sm:$0xff]
      %v2844 = vld [vmem:[%s3 + $0x678] sm:$0xff]
      %v2845 = vld [vmem:[%s3 + $0x680] sm:$0xff]
      %v2846 = vld [vmem:[%s3 + $0x688] sm:$0xff]
      %v2847 = vld [vmem:[%s3 + $0x690] sm:$0xff]
      %v2848 = vld [vmem:[%s3 + $0x698] sm:$0xff]
      %v2849 = vld [vmem:[%s3 + $0x6a0] sm:$0xff]
      %v2850 = vld [vmem:[%s3 + $0x6a8] sm:$0xff]
      %v2851 = vld [vmem:[%s3 + $0x6b0] sm:$0xff]
      %v2852 = vld [vmem:[%s3 + $0x6b8] sm:$0xff]
      %v2853 = vld [vmem:[%s3 + $0x6c0] sm:$0xff]
      %v2854 = vld [vmem:[%s3 + $0x6c8] sm:$0xff]
      %v2855 = vld [vmem:[%s3 + $0x6d0] sm:$0xff]
      %v2856 = vld [vmem:[%s3 + $0x6d8] sm:$0xff]
      %v2857 = vld [vmem:[%s3 + $0x6e0] sm:$0xff]
      %v2858 = vld [vmem:[%s3 + $0x6e8] sm:$0xff]
      %v2859 = vld [vmem:[%s3 + $0x6f0] sm:$0xff]
      %v2860 = vld [vmem:[%s3 + $0x6f8] sm:$0xff]
      %v2861 = vld [vmem:[%s3 + $0x700] sm:$0xff]
      %v2862 = vld [vmem:[%s3 + $0x708] sm:$0xff]
      %v2863 = vld [vmem:[%s3 + $0x710] sm:$0xff]
      %v2864 = vld [vmem:[%s3 + $0x718] sm:$0xff]
      %v2865 = vld [vmem:[%s3 + $0x720] sm:$0xff]
      %v2866 = vld [vmem:[%s3 + $0x728] sm:$0xff]
      %v2867 = vld [vmem:[%s3 + $0x730] sm:$0xff]
      %v2868 = vld [vmem:[%s3 + $0x738] sm:$0xff]
      %v2869 = vld [vmem:[%s3 + $0x740] sm:$0xff]
      %v2870 = vld [vmem:[%s3 + $0x748] sm:$0xff]
      %v2871 = vld [vmem:[%s3 + $0x750] sm:$0xff]
      %v2872 = vld [vmem:[%s3 + $0x758] sm:$0xff]
      %v2873 = vld [vmem:[%s3 + $0x760] sm:$0xff]
      %v2874 = vld [vmem:[%s3 + $0x768] sm:$0xff]
      %v2875 = vld [vmem:[%s3 + $0x770] sm:$0xff]
      %v2876 = vld [vmem:[%s3 + $0x778] sm:$0xff]
      %v2877 = vld [vmem:[%s3 + $0x780] sm:$0xff]
      %v2878 = vld [vmem:[%s3 + $0x788] sm:$0xff]
      %v2879 = vld [vmem:[%s3 + $0x790] sm:$0xff]
      %v2880 = vld [vmem:[%s3 + $0x798] sm:$0xff]
      %v2881 = vld [vmem:[%s3 + $0x7a0] sm:$0xff]
      %v2882 = vld [vmem:[%s3 + $0x7a8] sm:$0xff]
      %v2883 = vld [vmem:[%s3 + $0x7b0] sm:$0xff]
      %v2884 = vld [vmem:[%s3 + $0x7b8] sm:$0xff]
      %v2885 = vld [vmem:[%s3 + $0x7c0] sm:$0xff]
      %v2886 = vld [vmem:[%s3 + $0x7c8] sm:$0xff]
      %v2887 = vld [vmem:[%s3 + $0x7d0] sm:$0xff]
      %v2888 = vld [vmem:[%s3 + $0x7d8] sm:$0xff]
      %v2889 = vld [vmem:[%s3 + $0x7e0] sm:$0xff]
      %v2890 = vld [vmem:[%s3 + $0x7e8] sm:$0xff]
      %v2891 = vld [vmem:[%s3 + $0x7f0] sm:$0xff]
      %v2892 = vld [vmem:[%s3 + $0x7f8] sm:$0xff]
      %v2893 = vld [vmem:[%s4] sm:$0x3]
      %v2895 = vlaneseq
      %v2896 = vshrl.u32 %v2895, 7
      %v2897 = vsub.s32 0, %v2896
      %v2898 = vrot.slane %v2893, %v2897
      %v2899 = vlaneseq
      %v2900 = vshrl.u32 %v2899, 7
      %v2901 = vsub.s32 1, %v2900
      %v2902 = vrot.slane %v2893, %v2901
      %v3161 = vunpack.c.l.b16 %v2637
      %v3162 = vunpack.c.h.b16 %v2637
      %v3163 = vunpack.c.l.b16 %v2638
      %v3164 = vunpack.c.h.b16 %v2638
      %v3165 = vunpack.c.l.b16 %v2639
      %v3166 = vunpack.c.h.b16 %v2639
      %v3167 = vunpack.c.l.b16 %v2640
      %v3168 = vunpack.c.h.b16 %v2640
      %v3169 = vunpack.c.l.b16 %v2641
      %v3170 = vunpack.c.h.b16 %v2641
      %v3171 = vunpack.c.l.b16 %v2642
      %v3172 = vunpack.c.h.b16 %v2642
      %v3173 = vunpack.c.l.b16 %v2643
      %v3174 = vunpack.c.h.b16 %v2643
      %v3175 = vunpack.c.l.b16 %v2644
      %v3176 = vunpack.c.h.b16 %v2644
      %v3177 = vunpack.c.l.b16 %v2645
      %v3178 = vunpack.c.h.b16 %v2645
      %v3179 = vunpack.c.l.b16 %v2646
      %v3180 = vunpack.c.h.b16 %v2646
      %v3181 = vunpack.c.l.b16 %v2647
      %v3182 = vunpack.c.h.b16 %v2647
      %v3183 = vunpack.c.l.b16 %v2648
      %v3184 = vunpack.c.h.b16 %v2648
      %v3185 = vunpack.c.l.b16 %v2649
      %v3186 = vunpack.c.h.b16 %v2649
      %v3187 = vunpack.c.l.b16 %v2650
      %v3188 = vunpack.c.h.b16 %v2650
      %v3189 = vunpack.c.l.b16 %v2651
      %v3190 = vunpack.c.h.b16 %v2651
      %v3191 = vunpack.c.l.b16 %v2652
      %v3192 = vunpack.c.h.b16 %v2652
      %v3193 = vunpack.c.l.b16 %v2653
      %v3194 = vunpack.c.h.b16 %v2653
      %v3195 = vunpack.c.l.b16 %v2654
      %v3196 = vunpack.c.h.b16 %v2654
      %v3197 = vunpack.c.l.b16 %v2655
      %v3198 = vunpack.c.h.b16 %v2655
      %v3199 = vunpack.c.l.b16 %v2656
      %v3200 = vunpack.c.h.b16 %v2656
      %v3201 = vunpack.c.l.b16 %v2657
      %v3202 = vunpack.c.h.b16 %v2657
      %v3203 = vunpack.c.l.b16 %v2658
      %v3204 = vunpack.c.h.b16 %v2658
      %v3205 = vunpack.c.l.b16 %v2659
      %v3206 = vunpack.c.h.b16 %v2659
      %v3207 = vunpack.c.l.b16 %v2660
      %v3208 = vunpack.c.h.b16 %v2660
      %v3209 = vunpack.c.l.b16 %v2661
      %v3210 = vunpack.c.h.b16 %v2661
      %v3211 = vunpack.c.l.b16 %v2662
      %v3212 = vunpack.c.h.b16 %v2662
      %v3213 = vunpack.c.l.b16 %v2663
      %v3214 = vunpack.c.h.b16 %v2663
      %v3215 = vunpack.c.l.b16 %v2664
      %v3216 = vunpack.c.h.b16 %v2664
      %v3217 = vunpack.c.l.b16 %v2665
      %v3218 = vunpack.c.h.b16 %v2665
      %v3219 = vunpack.c.l.b16 %v2666
      %v3220 = vunpack.c.h.b16 %v2666
      %v3221 = vunpack.c.l.b16 %v2667
      %v3222 = vunpack.c.h.b16 %v2667
      %v3223 = vunpack.c.l.b16 %v2668
      %v3224 = vunpack.c.h.b16 %v2668
      %v3225 = vunpack.c.l.b16 %v2669
      %v3226 = vunpack.c.h.b16 %v2669
      %v3227 = vunpack.c.l.b16 %v2670
      %v3228 = vunpack.c.h.b16 %v2670
      %v3229 = vunpack.c.l.b16 %v2671
      %v3230 = vunpack.c.h.b16 %v2671
      %v3231 = vunpack.c.l.b16 %v2672
      %v3232 = vunpack.c.h.b16 %v2672
      %v3233 = vunpack.c.l.b16 %v2673
      %v3234 = vunpack.c.h.b16 %v2673
      %v3235 = vunpack.c.l.b16 %v2674
      %v3236 = vunpack.c.h.b16 %v2674
      %v3237 = vunpack.c.l.b16 %v2675
      %v3238 = vunpack.c.h.b16 %v2675
      %v3239 = vunpack.c.l.b16 %v2676
      %v3240 = vunpack.c.h.b16 %v2676
      %v3241 = vunpack.c.l.b16 %v2677
      %v3242 = vunpack.c.h.b16 %v2677
      %v3243 = vunpack.c.l.b16 %v2678
      %v3244 = vunpack.c.h.b16 %v2678
      %v3245 = vunpack.c.l.b16 %v2679
      %v3246 = vunpack.c.h.b16 %v2679
      %v3247 = vunpack.c.l.b16 %v2680
      %v3248 = vunpack.c.h.b16 %v2680
      %v3249 = vunpack.c.l.b16 %v2681
      %v3250 = vunpack.c.h.b16 %v2681
      %v3251 = vunpack.c.l.b16 %v2682
      %v3252 = vunpack.c.h.b16 %v2682
      %v3253 = vunpack.c.l.b16 %v2683
      %v3254 = vunpack.c.h.b16 %v2683
      %v3255 = vunpack.c.l.b16 %v2684
      %v3256 = vunpack.c.h.b16 %v2684
      %v3257 = vunpack.c.l.b16 %v2685
      %v3258 = vunpack.c.h.b16 %v2685
      %v3259 = vunpack.c.l.b16 %v2686
      %v3260 = vunpack.c.h.b16 %v2686
      %v3261 = vunpack.c.l.b16 %v2687
      %v3262 = vunpack.c.h.b16 %v2687
      %v3263 = vunpack.c.l.b16 %v2688
      %v3264 = vunpack.c.h.b16 %v2688
      %v3265 = vunpack.c.l.b16 %v2689
      %v3266 = vunpack.c.h.b16 %v2689
      %v3267 = vunpack.c.l.b16 %v2690
      %v3268 = vunpack.c.h.b16 %v2690
      %v3269 = vunpack.c.l.b16 %v2691
      %v3270 = vunpack.c.h.b16 %v2691
      %v3271 = vunpack.c.l.b16 %v2692
      %v3272 = vunpack.c.h.b16 %v2692
      %v3273 = vunpack.c.l.b16 %v2693
      %v3274 = vunpack.c.h.b16 %v2693
      %v3275 = vunpack.c.l.b16 %v2694
      %v3276 = vunpack.c.h.b16 %v2694
      %v3277 = vunpack.c.l.b16 %v2695
      %v3278 = vunpack.c.h.b16 %v2695
      %v3279 = vunpack.c.l.b16 %v2696
      %v3280 = vunpack.c.h.b16 %v2696
      %v3281 = vunpack.c.l.b16 %v2697
      %v3282 = vunpack.c.h.b16 %v2697
      %v3283 = vunpack.c.l.b16 %v2698
      %v3284 = vunpack.c.h.b16 %v2698
      %v3285 = vunpack.c.l.b16 %v2699
      %v3286 = vunpack.c.h.b16 %v2699
      %v3287 = vunpack.c.l.b16 %v2700
      %v3288 = vunpack.c.h.b16 %v2700
      %v3289 = vunpack.c.l.b16 %v2701
      %v3290 = vunpack.c.h.b16 %v2701
      %v3291 = vunpack.c.l.b16 %v2702
      %v3292 = vunpack.c.h.b16 %v2702
      %v3293 = vunpack.c.l.b16 %v2703
      %v3294 = vunpack.c.h.b16 %v2703
      %v3295 = vunpack.c.l.b16 %v2704
      %v3296 = vunpack.c.h.b16 %v2704
      %v3297 = vunpack.c.l.b16 %v2705
      %v3298 = vunpack.c.h.b16 %v2705
      %v3299 = vunpack.c.l.b16 %v2706
      %v3300 = vunpack.c.h.b16 %v2706
      %v3301 = vunpack.c.l.b16 %v2707
      %v3302 = vunpack.c.h.b16 %v2707
      %v3303 = vunpack.c.l.b16 %v2708
      %v3304 = vunpack.c.h.b16 %v2708
      %v3305 = vunpack.c.l.b16 %v2709
      %v3306 = vunpack.c.h.b16 %v2709
      %v3307 = vunpack.c.l.b16 %v2710
      %v3308 = vunpack.c.h.b16 %v2710
      %v3309 = vunpack.c.l.b16 %v2711
      %v3310 = vunpack.c.h.b16 %v2711
      %v3311 = vunpack.c.l.b16 %v2712
      %v3312 = vunpack.c.h.b16 %v2712
      %v3313 = vunpack.c.l.b16 %v2713
      %v3314 = vunpack.c.h.b16 %v2713
      %v3315 = vunpack.c.l.b16 %v2714
      %v3316 = vunpack.c.h.b16 %v2714
      %v3317 = vunpack.c.l.b16 %v2715
      %v3318 = vunpack.c.h.b16 %v2715
      %v3319 = vunpack.c.l.b16 %v2716
      %v3320 = vunpack.c.h.b16 %v2716
      %v3321 = vunpack.c.l.b16 %v2717
      %v3322 = vunpack.c.h.b16 %v2717
      %v3323 = vunpack.c.l.b16 %v2718
      %v3324 = vunpack.c.h.b16 %v2718
      %v3325 = vunpack.c.l.b16 %v2719
      %v3326 = vunpack.c.h.b16 %v2719
      %v3327 = vunpack.c.l.b16 %v2720
      %v3328 = vunpack.c.h.b16 %v2720
      %v3329 = vunpack.c.l.b16 %v2721
      %v3330 = vunpack.c.h.b16 %v2721
      %v3331 = vunpack.c.l.b16 %v2722
      %v3332 = vunpack.c.h.b16 %v2722
      %v3333 = vunpack.c.l.b16 %v2723
      %v3334 = vunpack.c.h.b16 %v2723
      %v3335 = vunpack.c.l.b16 %v2724
      %v3336 = vunpack.c.h.b16 %v2724
      %v3337 = vunpack.c.l.b16 %v2725
      %v3338 = vunpack.c.h.b16 %v2725
      %v3339 = vunpack.c.l.b16 %v2726
      %v3340 = vunpack.c.h.b16 %v2726
      %v3341 = vunpack.c.l.b16 %v2727
      %v3342 = vunpack.c.h.b16 %v2727
      %v3343 = vunpack.c.l.b16 %v2728
      %v3344 = vunpack.c.h.b16 %v2728
      %v3345 = vunpack.c.l.b16 %v2729
      %v3346 = vunpack.c.h.b16 %v2729
      %v3347 = vunpack.c.l.b16 %v2730
      %v3348 = vunpack.c.h.b16 %v2730
      %v3349 = vunpack.c.l.b16 %v2731
      %v3350 = vunpack.c.h.b16 %v2731
      %v3351 = vunpack.c.l.b16 %v2732
      %v3352 = vunpack.c.h.b16 %v2732
      %v3353 = vunpack.c.l.b16 %v2733
      %v3354 = vunpack.c.h.b16 %v2733
      %v3355 = vunpack.c.l.b16 %v2734
      %v3356 = vunpack.c.h.b16 %v2734
      %v3357 = vunpack.c.l.b16 %v2735
      %v3358 = vunpack.c.h.b16 %v2735
      %v3359 = vunpack.c.l.b16 %v2736
      %v3360 = vunpack.c.h.b16 %v2736
      %v3361 = vunpack.c.l.b16 %v2737
      %v3362 = vunpack.c.h.b16 %v2737
      %v3363 = vunpack.c.l.b16 %v2738
      %v3364 = vunpack.c.h.b16 %v2738
      %v3365 = vunpack.c.l.b16 %v2739
      %v3366 = vunpack.c.h.b16 %v2739
      %v3367 = vunpack.c.l.b16 %v2740
      %v3368 = vunpack.c.h.b16 %v2740
      %v3369 = vunpack.c.l.b16 %v2741
      %v3370 = vunpack.c.h.b16 %v2741
      %v3371 = vunpack.c.l.b16 %v2742
      %v3372 = vunpack.c.h.b16 %v2742
      %v3373 = vunpack.c.l.b16 %v2743
      %v3374 = vunpack.c.h.b16 %v2743
      %v3375 = vunpack.c.l.b16 %v2744
      %v3376 = vunpack.c.h.b16 %v2744
      %v3377 = vunpack.c.l.b16 %v2745
      %v3378 = vunpack.c.h.b16 %v2745
      %v3379 = vunpack.c.l.b16 %v2746
      %v3380 = vunpack.c.h.b16 %v2746
      %v3381 = vunpack.c.l.b16 %v2747
      %v3382 = vunpack.c.h.b16 %v2747
      %v3383 = vunpack.c.l.b16 %v2748
      %v3384 = vunpack.c.h.b16 %v2748
      %v3385 = vunpack.c.l.b16 %v2749
      %v3386 = vunpack.c.h.b16 %v2749
      %v3387 = vunpack.c.l.b16 %v2750
      %v3388 = vunpack.c.h.b16 %v2750
      %v3389 = vunpack.c.l.b16 %v2751
      %v3390 = vunpack.c.h.b16 %v2751
      %v3391 = vunpack.c.l.b16 %v2752
      %v3392 = vunpack.c.h.b16 %v2752
      %v3393 = vunpack.c.l.b16 %v2753
      %v3394 = vunpack.c.h.b16 %v2753
      %v3395 = vunpack.c.l.b16 %v2754
      %v3396 = vunpack.c.h.b16 %v2754
      %v3397 = vunpack.c.l.b16 %v2755
      %v3398 = vunpack.c.h.b16 %v2755
      %v3399 = vunpack.c.l.b16 %v2756
      %v3400 = vunpack.c.h.b16 %v2756
      %v3401 = vunpack.c.l.b16 %v2757
      %v3402 = vunpack.c.h.b16 %v2757
      %v3403 = vunpack.c.l.b16 %v2758
      %v3404 = vunpack.c.h.b16 %v2758
      %v3405 = vunpack.c.l.b16 %v2759
      %v3406 = vunpack.c.h.b16 %v2759
      %v3407 = vunpack.c.l.b16 %v2760
      %v3408 = vunpack.c.h.b16 %v2760
      %v3409 = vunpack.c.l.b16 %v2761
      %v3410 = vunpack.c.h.b16 %v2761
      %v3411 = vunpack.c.l.b16 %v2762
      %v3412 = vunpack.c.h.b16 %v2762
      %v3413 = vunpack.c.l.b16 %v2763
      %v3414 = vunpack.c.h.b16 %v2763
      %v3415 = vunpack.c.l.b16 %v2764
      %v3416 = vunpack.c.h.b16 %v2764
      %v3417 = vunpack.c.l.b16 %v2765
      %v3418 = vunpack.c.h.b16 %v2765
      %v3419 = vunpack.c.l.b16 %v2766
      %v3420 = vunpack.c.h.b16 %v2766
      %v3421 = vunpack.c.l.b16 %v2767
      %v3422 = vunpack.c.h.b16 %v2767
      %v3423 = vunpack.c.l.b16 %v2768
      %v3424 = vunpack.c.h.b16 %v2768
      %v3425 = vunpack.c.l.b16 %v2769
      %v3426 = vunpack.c.h.b16 %v2769
      %v3427 = vunpack.c.l.b16 %v2770
      %v3428 = vunpack.c.h.b16 %v2770
      %v3429 = vunpack.c.l.b16 %v2771
      %v3430 = vunpack.c.h.b16 %v2771
      %v3431 = vunpack.c.l.b16 %v2772
      %v3432 = vunpack.c.h.b16 %v2772
      %v3433 = vunpack.c.l.b16 %v2773
      %v3434 = vunpack.c.h.b16 %v2773
      %v3435 = vunpack.c.l.b16 %v2774
      %v3436 = vunpack.c.h.b16 %v2774
      %v3437 = vunpack.c.l.b16 %v2775
      %v3438 = vunpack.c.h.b16 %v2775
      %v3439 = vunpack.c.l.b16 %v2776
      %v3440 = vunpack.c.h.b16 %v2776
      %v3441 = vunpack.c.l.b16 %v2777
      %v3442 = vunpack.c.h.b16 %v2777
      %v3443 = vunpack.c.l.b16 %v2778
      %v3444 = vunpack.c.h.b16 %v2778
      %v3445 = vunpack.c.l.b16 %v2779
      %v3446 = vunpack.c.h.b16 %v2779
      %v3447 = vunpack.c.l.b16 %v2780
      %v3448 = vunpack.c.h.b16 %v2780
      %v3449 = vunpack.c.l.b16 %v2781
      %v3450 = vunpack.c.h.b16 %v2781
      %v3451 = vunpack.c.l.b16 %v2782
      %v3452 = vunpack.c.h.b16 %v2782
      %v3453 = vunpack.c.l.b16 %v2783
      %v3454 = vunpack.c.h.b16 %v2783
      %v3455 = vunpack.c.l.b16 %v2784
      %v3456 = vunpack.c.h.b16 %v2784
      %v3457 = vunpack.c.l.b16 %v2785
      %v3458 = vunpack.c.h.b16 %v2785
      %v3459 = vunpack.c.l.b16 %v2786
      %v3460 = vunpack.c.h.b16 %v2786
      %v3461 = vunpack.c.l.b16 %v2787
      %v3462 = vunpack.c.h.b16 %v2787
      %v3463 = vunpack.c.l.b16 %v2788
      %v3464 = vunpack.c.h.b16 %v2788
      %v3465 = vunpack.c.l.b16 %v2789
      %v3466 = vunpack.c.h.b16 %v2789
      %v3467 = vunpack.c.l.b16 %v2790
      %v3468 = vunpack.c.h.b16 %v2790
      %v3469 = vunpack.c.l.b16 %v2791
      %v3470 = vunpack.c.h.b16 %v2791
      %v3471 = vunpack.c.l.b16 %v2792
      %v3472 = vunpack.c.h.b16 %v2792
      %v3473 = vunpack.c.l.b16 %v2793
      %v3474 = vunpack.c.h.b16 %v2793
      %v3475 = vunpack.c.l.b16 %v2794
      %v3476 = vunpack.c.h.b16 %v2794
      %v3477 = vunpack.c.l.b16 %v2795
      %v3478 = vunpack.c.h.b16 %v2795
      %v3479 = vunpack.c.l.b16 %v2796
      %v3480 = vunpack.c.h.b16 %v2796
      %v3481 = vunpack.c.l.b16 %v2797
      %v3482 = vunpack.c.h.b16 %v2797
      %v3483 = vunpack.c.l.b16 %v2798
      %v3484 = vunpack.c.h.b16 %v2798
      %v3485 = vunpack.c.l.b16 %v2799
      %v3486 = vunpack.c.h.b16 %v2799
      %v3487 = vunpack.c.l.b16 %v2800
      %v3488 = vunpack.c.h.b16 %v2800
      %v3489 = vunpack.c.l.b16 %v2801
      %v3490 = vunpack.c.h.b16 %v2801
      %v3491 = vunpack.c.l.b16 %v2802
      %v3492 = vunpack.c.h.b16 %v2802
      %v3493 = vunpack.c.l.b16 %v2803
      %v3494 = vunpack.c.h.b16 %v2803
      %v3495 = vunpack.c.l.b16 %v2804
      %v3496 = vunpack.c.h.b16 %v2804
      %v3497 = vunpack.c.l.b16 %v2805
      %v3498 = vunpack.c.h.b16 %v2805
      %v3499 = vunpack.c.l.b16 %v2806
      %v3500 = vunpack.c.h.b16 %v2806
      %v3501 = vunpack.c.l.b16 %v2807
      %v3502 = vunpack.c.h.b16 %v2807
      %v3503 = vunpack.c.l.b16 %v2808
      %v3504 = vunpack.c.h.b16 %v2808
      %v3505 = vunpack.c.l.b16 %v2809
      %v3506 = vunpack.c.h.b16 %v2809
      %v3507 = vunpack.c.l.b16 %v2810
      %v3508 = vunpack.c.h.b16 %v2810
      %v3509 = vunpack.c.l.b16 %v2811
      %v3510 = vunpack.c.h.b16 %v2811
      %v3511 = vunpack.c.l.b16 %v2812
      %v3512 = vunpack.c.h.b16 %v2812
      %v3513 = vunpack.c.l.b16 %v2813
      %v3514 = vunpack.c.h.b16 %v2813
      %v3515 = vunpack.c.l.b16 %v2814
      %v3516 = vunpack.c.h.b16 %v2814
      %v3517 = vunpack.c.l.b16 %v2815
      %v3518 = vunpack.c.h.b16 %v2815
      %v3519 = vunpack.c.l.b16 %v2816
      %v3520 = vunpack.c.h.b16 %v2816
      %v3521 = vunpack.c.l.b16 %v2817
      %v3522 = vunpack.c.h.b16 %v2817
      %v3523 = vunpack.c.l.b16 %v2818
      %v3524 = vunpack.c.h.b16 %v2818
      %v3525 = vunpack.c.l.b16 %v2819
      %v3526 = vunpack.c.h.b16 %v2819
      %v3527 = vunpack.c.l.b16 %v2820
      %v3528 = vunpack.c.h.b16 %v2820
      %v3529 = vunpack.c.l.b16 %v2821
      %v3530 = vunpack.c.h.b16 %v2821
      %v3531 = vunpack.c.l.b16 %v2822
      %v3532 = vunpack.c.h.b16 %v2822
      %v3533 = vunpack.c.l.b16 %v2823
      %v3534 = vunpack.c.h.b16 %v2823
      %v3535 = vunpack.c.l.b16 %v2824
      %v3536 = vunpack.c.h.b16 %v2824
      %v3537 = vunpack.c.l.b16 %v2825
      %v3538 = vunpack.c.h.b16 %v2825
      %v3539 = vunpack.c.l.b16 %v2826
      %v3540 = vunpack.c.h.b16 %v2826
      %v3541 = vunpack.c.l.b16 %v2827
      %v3542 = vunpack.c.h.b16 %v2827
      %v3543 = vunpack.c.l.b16 %v2828
      %v3544 = vunpack.c.h.b16 %v2828
      %v3545 = vunpack.c.l.b16 %v2829
      %v3546 = vunpack.c.h.b16 %v2829
      %v3547 = vunpack.c.l.b16 %v2830
      %v3548 = vunpack.c.h.b16 %v2830
      %v3549 = vunpack.c.l.b16 %v2831
      %v3550 = vunpack.c.h.b16 %v2831
      %v3551 = vunpack.c.l.b16 %v2832
      %v3552 = vunpack.c.h.b16 %v2832
      %v3553 = vunpack.c.l.b16 %v2833
      %v3554 = vunpack.c.h.b16 %v2833
      %v3555 = vunpack.c.l.b16 %v2834
      %v3556 = vunpack.c.h.b16 %v2834
      %v3557 = vunpack.c.l.b16 %v2835
      %v3558 = vunpack.c.h.b16 %v2835
      %v3559 = vunpack.c.l.b16 %v2836
      %v3560 = vunpack.c.h.b16 %v2836
      %v3561 = vunpack.c.l.b16 %v2837
      %v3562 = vunpack.c.h.b16 %v2837
      %v3563 = vunpack.c.l.b16 %v2838
      %v3564 = vunpack.c.h.b16 %v2838
      %v3565 = vunpack.c.l.b16 %v2839
      %v3566 = vunpack.c.h.b16 %v2839
      %v3567 = vunpack.c.l.b16 %v2840
      %v3568 = vunpack.c.h.b16 %v2840
      %v3569 = vunpack.c.l.b16 %v2841
      %v3570 = vunpack.c.h.b16 %v2841
      %v3571 = vunpack.c.l.b16 %v2842
      %v3572 = vunpack.c.h.b16 %v2842
      %v3573 = vunpack.c.l.b16 %v2843
      %v3574 = vunpack.c.h.b16 %v2843
      %v3575 = vunpack.c.l.b16 %v2844
      %v3576 = vunpack.c.h.b16 %v2844
      %v3577 = vunpack.c.l.b16 %v2845
      %v3578 = vunpack.c.h.b16 %v2845
      %v3579 = vunpack.c.l.b16 %v2846
      %v3580 = vunpack.c.h.b16 %v2846
      %v3581 = vunpack.c.l.b16 %v2847
      %v3582 = vunpack.c.h.b16 %v2847
      %v3583 = vunpack.c.l.b16 %v2848
      %v3584 = vunpack.c.h.b16 %v2848
      %v3585 = vunpack.c.l.b16 %v2849
      %v3586 = vunpack.c.h.b16 %v2849
      %v3587 = vunpack.c.l.b16 %v2850
      %v3588 = vunpack.c.h.b16 %v2850
      %v3589 = vunpack.c.l.b16 %v2851
      %v3590 = vunpack.c.h.b16 %v2851
      %v3591 = vunpack.c.l.b16 %v2852
      %v3592 = vunpack.c.h.b16 %v2852
      %v3593 = vunpack.c.l.b16 %v2853
      %v3594 = vunpack.c.h.b16 %v2853
      %v3595 = vunpack.c.l.b16 %v2854
      %v3596 = vunpack.c.h.b16 %v2854
      %v3597 = vunpack.c.l.b16 %v2855
      %v3598 = vunpack.c.h.b16 %v2855
      %v3599 = vunpack.c.l.b16 %v2856
      %v3600 = vunpack.c.h.b16 %v2856
      %v3601 = vunpack.c.l.b16 %v2857
      %v3602 = vunpack.c.h.b16 %v2857
      %v3603 = vunpack.c.l.b16 %v2858
      %v3604 = vunpack.c.h.b16 %v2858
      %v3605 = vunpack.c.l.b16 %v2859
      %v3606 = vunpack.c.h.b16 %v2859
      %v3607 = vunpack.c.l.b16 %v2860
      %v3608 = vunpack.c.h.b16 %v2860
      %v3609 = vunpack.c.l.b16 %v2861
      %v3610 = vunpack.c.h.b16 %v2861
      %v3611 = vunpack.c.l.b16 %v2862
      %v3612 = vunpack.c.h.b16 %v2862
      %v3613 = vunpack.c.l.b16 %v2863
      %v3614 = vunpack.c.h.b16 %v2863
      %v3615 = vunpack.c.l.b16 %v2864
      %v3616 = vunpack.c.h.b16 %v2864
      %v3617 = vunpack.c.l.b16 %v2865
      %v3618 = vunpack.c.h.b16 %v2865
      %v3619 = vunpack.c.l.b16 %v2866
      %v3620 = vunpack.c.h.b16 %v2866
      %v3621 = vunpack.c.l.b16 %v2867
      %v3622 = vunpack.c.h.b16 %v2867
      %v3623 = vunpack.c.l.b16 %v2868
      %v3624 = vunpack.c.h.b16 %v2868
      %v3625 = vunpack.c.l.b16 %v2869
      %v3626 = vunpack.c.h.b16 %v2869
      %v3627 = vunpack.c.l.b16 %v2870
      %v3628 = vunpack.c.h.b16 %v2870
      %v3629 = vunpack.c.l.b16 %v2871
      %v3630 = vunpack.c.h.b16 %v2871
      %v3631 = vunpack.c.l.b16 %v2872
      %v3632 = vunpack.c.h.b16 %v2872
      %v3633 = vunpack.c.l.b16 %v2873
      %v3634 = vunpack.c.h.b16 %v2873
      %v3635 = vunpack.c.l.b16 %v2874
      %v3636 = vunpack.c.h.b16 %v2874
      %v3637 = vunpack.c.l.b16 %v2875
      %v3638 = vunpack.c.h.b16 %v2875
      %v3639 = vunpack.c.l.b16 %v2876
      %v3640 = vunpack.c.h.b16 %v2876
      %v3641 = vunpack.c.l.b16 %v2877
      %v3642 = vunpack.c.h.b16 %v2877
      %v3643 = vunpack.c.l.b16 %v2878
      %v3644 = vunpack.c.h.b16 %v2878
      %v3645 = vunpack.c.l.b16 %v2879
      %v3646 = vunpack.c.h.b16 %v2879
      %v3647 = vunpack.c.l.b16 %v2880
      %v3648 = vunpack.c.h.b16 %v2880
      %v3649 = vunpack.c.l.b16 %v2881
      %v3650 = vunpack.c.h.b16 %v2881
      %v3651 = vunpack.c.l.b16 %v2882
      %v3652 = vunpack.c.h.b16 %v2882
      %v3653 = vunpack.c.l.b16 %v2883
      %v3654 = vunpack.c.h.b16 %v2883
      %v3655 = vunpack.c.l.b16 %v2884
      %v3656 = vunpack.c.h.b16 %v2884
      %v3657 = vunpack.c.l.b16 %v2885
      %v3658 = vunpack.c.h.b16 %v2885
      %v3659 = vunpack.c.l.b16 %v2886
      %v3660 = vunpack.c.h.b16 %v2886
      %v3661 = vunpack.c.l.b16 %v2887
      %v3662 = vunpack.c.h.b16 %v2887
      %v3663 = vunpack.c.l.b16 %v2888
      %v3664 = vunpack.c.h.b16 %v2888
      %v3665 = vunpack.c.l.b16 %v2889
      %v3666 = vunpack.c.h.b16 %v2889
      %v3667 = vunpack.c.l.b16 %v2890
      %v3668 = vunpack.c.h.b16 %v2890
      %v3669 = vunpack.c.l.b16 %v2891
      %v3670 = vunpack.c.h.b16 %v2891
      %v3671 = vunpack.c.l.b16 %v2892
      %v3672 = vunpack.c.h.b16 %v2892
      %v3673 = vpack.c.b16 %v3163, %v3161
      %v3674 = vpack.c.b16 %v3164, %v3162
      %v3675 = vpack.c.b16 %v3167, %v3165
      %v3676 = vpack.c.b16 %v3168, %v3166
      %v3677 = vpack.c.b16 %v3171, %v3169
      %v3678 = vpack.c.b16 %v3172, %v3170
      %v3679 = vpack.c.b16 %v3175, %v3173
      %v3680 = vpack.c.b16 %v3176, %v3174
      %v3681 = vpack.c.b16 %v3179, %v3177
      %v3682 = vpack.c.b16 %v3180, %v3178
      %v3683 = vpack.c.b16 %v3183, %v3181
      %v3684 = vpack.c.b16 %v3184, %v3182
      %v3685 = vpack.c.b16 %v3187, %v3185
      %v3686 = vpack.c.b16 %v3188, %v3186
      %v3687 = vpack.c.b16 %v3191, %v3189
      %v3688 = vpack.c.b16 %v3192, %v3190
      %v3689 = vpack.c.b16 %v3195, %v3193
      %v3690 = vpack.c.b16 %v3196, %v3194
      %v3691 = vpack.c.b16 %v3199, %v3197
      %v3692 = vpack.c.b16 %v3200, %v3198
      %v3693 = vpack.c.b16 %v3203, %v3201
      %v3694 = vpack.c.b16 %v3204, %v3202
      %v3695 = vpack.c.b16 %v3207, %v3205
      %v3696 = vpack.c.b16 %v3208, %v3206
      %v3697 = vpack.c.b16 %v3211, %v3209
      %v3698 = vpack.c.b16 %v3212, %v3210
      %v3699 = vpack.c.b16 %v3215, %v3213
      %v3700 = vpack.c.b16 %v3216, %v3214
      %v3701 = vpack.c.b16 %v3219, %v3217
      %v3702 = vpack.c.b16 %v3220, %v3218
      %v3703 = vpack.c.b16 %v3223, %v3221
      %v3704 = vpack.c.b16 %v3224, %v3222
      %v3705 = vpack.c.b16 %v3227, %v3225
      %v3706 = vpack.c.b16 %v3228, %v3226
      %v3707 = vpack.c.b16 %v3231, %v3229
      %v3708 = vpack.c.b16 %v3232, %v3230
      %v3709 = vpack.c.b16 %v3235, %v3233
      %v3710 = vpack.c.b16 %v3236, %v3234
      %v3711 = vpack.c.b16 %v3239, %v3237
      %v3712 = vpack.c.b16 %v3240, %v3238
      %v3713 = vpack.c.b16 %v3243, %v3241
      %v3714 = vpack.c.b16 %v3244, %v3242
      %v3715 = vpack.c.b16 %v3247, %v3245
      %v3716 = vpack.c.b16 %v3248, %v3246
      %v3717 = vpack.c.b16 %v3251, %v3249
      %v3718 = vpack.c.b16 %v3252, %v3250
      %v3719 = vpack.c.b16 %v3255, %v3253
      %v3720 = vpack.c.b16 %v3256, %v3254
      %v3721 = vpack.c.b16 %v3259, %v3257
      %v3722 = vpack.c.b16 %v3260, %v3258
      %v3723 = vpack.c.b16 %v3263, %v3261
      %v3724 = vpack.c.b16 %v3264, %v3262
      %v3725 = vpack.c.b16 %v3267, %v3265
      %v3726 = vpack.c.b16 %v3268, %v3266
      %v3727 = vpack.c.b16 %v3271, %v3269
      %v3728 = vpack.c.b16 %v3272, %v3270
      %v3729 = vpack.c.b16 %v3275, %v3273
      %v3730 = vpack.c.b16 %v3276, %v3274
      %v3731 = vpack.c.b16 %v3279, %v3277
      %v3732 = vpack.c.b16 %v3280, %v3278
      %v3733 = vpack.c.b16 %v3283, %v3281
      %v3734 = vpack.c.b16 %v3284, %v3282
      %v3735 = vpack.c.b16 %v3287, %v3285
      %v3736 = vpack.c.b16 %v3288, %v3286
      %v3737 = vpack.c.b16 %v3291, %v3289
      %v3738 = vpack.c.b16 %v3292, %v3290
      %v3739 = vpack.c.b16 %v3295, %v3293
      %v3740 = vpack.c.b16 %v3296, %v3294
      %v3741 = vpack.c.b16 %v3299, %v3297
      %v3742 = vpack.c.b16 %v3300, %v3298
      %v3743 = vpack.c.b16 %v3303, %v3301
      %v3744 = vpack.c.b16 %v3304, %v3302
      %v3745 = vpack.c.b16 %v3307, %v3305
      %v3746 = vpack.c.b16 %v3308, %v3306
      %v3747 = vpack.c.b16 %v3311, %v3309
      %v3748 = vpack.c.b16 %v3312, %v3310
      %v3749 = vpack.c.b16 %v3315, %v3313
      %v3750 = vpack.c.b16 %v3316, %v3314
      %v3751 = vpack.c.b16 %v3319, %v3317
      %v3752 = vpack.c.b16 %v3320, %v3318
      %v3753 = vpack.c.b16 %v3323, %v3321
      %v3754 = vpack.c.b16 %v3324, %v3322
      %v3755 = vpack.c.b16 %v3327, %v3325
      %v3756 = vpack.c.b16 %v3328, %v3326
      %v3757 = vpack.c.b16 %v3331, %v3329
      %v3758 = vpack.c.b16 %v3332, %v3330
      %v3759 = vpack.c.b16 %v3335, %v3333
      %v3760 = vpack.c.b16 %v3336, %v3334
      %v3761 = vpack.c.b16 %v3339, %v3337
      %v3762 = vpack.c.b16 %v3340, %v3338
      %v3763 = vpack.c.b16 %v3343, %v3341
      %v3764 = vpack.c.b16 %v3344, %v3342
      %v3765 = vpack.c.b16 %v3347, %v3345
      %v3766 = vpack.c.b16 %v3348, %v3346
      %v3767 = vpack.c.b16 %v3351, %v3349
      %v3768 = vpack.c.b16 %v3352, %v3350
      %v3769 = vpack.c.b16 %v3355, %v3353
      %v3770 = vpack.c.b16 %v3356, %v3354
      %v3771 = vpack.c.b16 %v3359, %v3357
      %v3772 = vpack.c.b16 %v3360, %v3358
      %v3773 = vpack.c.b16 %v3363, %v3361
      %v3774 = vpack.c.b16 %v3364, %v3362
      %v3775 = vpack.c.b16 %v3367, %v3365
      %v3776 = vpack.c.b16 %v3368, %v3366
      %v3777 = vpack.c.b16 %v3371, %v3369
      %v3778 = vpack.c.b16 %v3372, %v3370
      %v3779 = vpack.c.b16 %v3375, %v3373
      %v3780 = vpack.c.b16 %v3376, %v3374
      %v3781 = vpack.c.b16 %v3379, %v3377
      %v3782 = vpack.c.b16 %v3380, %v3378
      %v3783 = vpack.c.b16 %v3383, %v3381
      %v3784 = vpack.c.b16 %v3384, %v3382
      %v3785 = vpack.c.b16 %v3387, %v3385
      %v3786 = vpack.c.b16 %v3388, %v3386
      %v3787 = vpack.c.b16 %v3391, %v3389
      %v3788 = vpack.c.b16 %v3392, %v3390
      %v3789 = vpack.c.b16 %v3395, %v3393
      %v3790 = vpack.c.b16 %v3396, %v3394
      %v3791 = vpack.c.b16 %v3399, %v3397
      %v3792 = vpack.c.b16 %v3400, %v3398
      %v3793 = vpack.c.b16 %v3403, %v3401
      %v3794 = vpack.c.b16 %v3404, %v3402
      %v3795 = vpack.c.b16 %v3407, %v3405
      %v3796 = vpack.c.b16 %v3408, %v3406
      %v3797 = vpack.c.b16 %v3411, %v3409
      %v3798 = vpack.c.b16 %v3412, %v3410
      %v3799 = vpack.c.b16 %v3415, %v3413
      %v3800 = vpack.c.b16 %v3416, %v3414
      %v3801 = vpack.c.b16 %v3419, %v3417
      %v3802 = vpack.c.b16 %v3420, %v3418
      %v3803 = vpack.c.b16 %v3423, %v3421
      %v3804 = vpack.c.b16 %v3424, %v3422
      %v3805 = vpack.c.b16 %v3427, %v3425
      %v3806 = vpack.c.b16 %v3428, %v3426
      %v3807 = vpack.c.b16 %v3431, %v3429
      %v3808 = vpack.c.b16 %v3432, %v3430
      %v3809 = vpack.c.b16 %v3435, %v3433
      %v3810 = vpack.c.b16 %v3436, %v3434
      %v3811 = vpack.c.b16 %v3439, %v3437
      %v3812 = vpack.c.b16 %v3440, %v3438
      %v3813 = vpack.c.b16 %v3443, %v3441
      %v3814 = vpack.c.b16 %v3444, %v3442
      %v3815 = vpack.c.b16 %v3447, %v3445
      %v3816 = vpack.c.b16 %v3448, %v3446
      %v3817 = vpack.c.b16 %v3451, %v3449
      %v3818 = vpack.c.b16 %v3452, %v3450
      %v3819 = vpack.c.b16 %v3455, %v3453
      %v3820 = vpack.c.b16 %v3456, %v3454
      %v3821 = vpack.c.b16 %v3459, %v3457
      %v3822 = vpack.c.b16 %v3460, %v3458
      %v3823 = vpack.c.b16 %v3463, %v3461
      %v3824 = vpack.c.b16 %v3464, %v3462
      %v3825 = vpack.c.b16 %v3467, %v3465
      %v3826 = vpack.c.b16 %v3468, %v3466
      %v3827 = vpack.c.b16 %v3471, %v3469
      %v3828 = vpack.c.b16 %v3472, %v3470
      %v3829 = vpack.c.b16 %v3475, %v3473
      %v3830 = vpack.c.b16 %v3476, %v3474
      %v3831 = vpack.c.b16 %v3479, %v3477
      %v3832 = vpack.c.b16 %v3480, %v3478
      %v3833 = vpack.c.b16 %v3483, %v3481
      %v3834 = vpack.c.b16 %v3484, %v3482
      %v3835 = vpack.c.b16 %v3487, %v3485
      %v3836 = vpack.c.b16 %v3488, %v3486
      %v3837 = vpack.c.b16 %v3491, %v3489
      %v3838 = vpack.c.b16 %v3492, %v3490
      %v3839 = vpack.c.b16 %v3495, %v3493
      %v3840 = vpack.c.b16 %v3496, %v3494
      %v3841 = vpack.c.b16 %v3499, %v3497
      %v3842 = vpack.c.b16 %v3500, %v3498
      %v3843 = vpack.c.b16 %v3503, %v3501
      %v3844 = vpack.c.b16 %v3504, %v3502
      %v3845 = vpack.c.b16 %v3507, %v3505
      %v3846 = vpack.c.b16 %v3508, %v3506
      %v3847 = vpack.c.b16 %v3511, %v3509
      %v3848 = vpack.c.b16 %v3512, %v3510
      %v3849 = vpack.c.b16 %v3515, %v3513
      %v3850 = vpack.c.b16 %v3516, %v3514
      %v3851 = vpack.c.b16 %v3519, %v3517
      %v3852 = vpack.c.b16 %v3520, %v3518
      %v3853 = vpack.c.b16 %v3523, %v3521
      %v3854 = vpack.c.b16 %v3524, %v3522
      %v3855 = vpack.c.b16 %v3527, %v3525
      %v3856 = vpack.c.b16 %v3528, %v3526
      %v3857 = vpack.c.b16 %v3531, %v3529
      %v3858 = vpack.c.b16 %v3532, %v3530
      %v3859 = vpack.c.b16 %v3535, %v3533
      %v3860 = vpack.c.b16 %v3536, %v3534
      %v3861 = vpack.c.b16 %v3539, %v3537
      %v3862 = vpack.c.b16 %v3540, %v3538
      %v3863 = vpack.c.b16 %v3543, %v3541
      %v3864 = vpack.c.b16 %v3544, %v3542
      %v3865 = vpack.c.b16 %v3547, %v3545
      %v3866 = vpack.c.b16 %v3548, %v3546
      %v3867 = vpack.c.b16 %v3551, %v3549
      %v3868 = vpack.c.b16 %v3552, %v3550
      %v3869 = vpack.c.b16 %v3555, %v3553
      %v3870 = vpack.c.b16 %v3556, %v3554
      %v3871 = vpack.c.b16 %v3559, %v3557
      %v3872 = vpack.c.b16 %v3560, %v3558
      %v3873 = vpack.c.b16 %v3563, %v3561
      %v3874 = vpack.c.b16 %v3564, %v3562
      %v3875 = vpack.c.b16 %v3567, %v3565
      %v3876 = vpack.c.b16 %v3568, %v3566
      %v3877 = vpack.c.b16 %v3571, %v3569
      %v3878 = vpack.c.b16 %v3572, %v3570
      %v3879 = vpack.c.b16 %v3575, %v3573
      %v3880 = vpack.c.b16 %v3576, %v3574
      %v3881 = vpack.c.b16 %v3579, %v3577
      %v3882 = vpack.c.b16 %v3580, %v3578
      %v3883 = vpack.c.b16 %v3583, %v3581
      %v3884 = vpack.c.b16 %v3584, %v3582
      %v3885 = vpack.c.b16 %v3587, %v3585
      %v3886 = vpack.c.b16 %v3588, %v3586
      %v3887 = vpack.c.b16 %v3591, %v3589
      %v3888 = vpack.c.b16 %v3592, %v3590
      %v3889 = vpack.c.b16 %v3595, %v3593
      %v3890 = vpack.c.b16 %v3596, %v3594
      %v3891 = vpack.c.b16 %v3599, %v3597
      %v3892 = vpack.c.b16 %v3600, %v3598
      %v3893 = vpack.c.b16 %v3603, %v3601
      %v3894 = vpack.c.b16 %v3604, %v3602
      %v3895 = vpack.c.b16 %v3607, %v3605
      %v3896 = vpack.c.b16 %v3608, %v3606
      %v3897 = vpack.c.b16 %v3611, %v3609
      %v3898 = vpack.c.b16 %v3612, %v3610
      %v3899 = vpack.c.b16 %v3615, %v3613
      %v3900 = vpack.c.b16 %v3616, %v3614
      %v3901 = vpack.c.b16 %v3619, %v3617
      %v3902 = vpack.c.b16 %v3620, %v3618
      %v3903 = vpack.c.b16 %v3623, %v3621
      %v3904 = vpack.c.b16 %v3624, %v3622
      %v3905 = vpack.c.b16 %v3627, %v3625
      %v3906 = vpack.c.b16 %v3628, %v3626
      %v3907 = vpack.c.b16 %v3631, %v3629
      %v3908 = vpack.c.b16 %v3632, %v3630
      %v3909 = vpack.c.b16 %v3635, %v3633
      %v3910 = vpack.c.b16 %v3636, %v3634
      %v3911 = vpack.c.b16 %v3639, %v3637
      %v3912 = vpack.c.b16 %v3640, %v3638
      %v3913 = vpack.c.b16 %v3643, %v3641
      %v3914 = vpack.c.b16 %v3644, %v3642
      %v3915 = vpack.c.b16 %v3647, %v3645
      %v3916 = vpack.c.b16 %v3648, %v3646
      %v3917 = vpack.c.b16 %v3651, %v3649
      %v3918 = vpack.c.b16 %v3652, %v3650
      %v3919 = vpack.c.b16 %v3655, %v3653
      %v3920 = vpack.c.b16 %v3656, %v3654
      %v3921 = vpack.c.b16 %v3659, %v3657
      %v3922 = vpack.c.b16 %v3660, %v3658
      %v3923 = vpack.c.b16 %v3663, %v3661
      %v3924 = vpack.c.b16 %v3664, %v3662
      %v3925 = vpack.c.b16 %v3667, %v3665
      %v3926 = vpack.c.b16 %v3668, %v3666
      %v3927 = vpack.c.b16 %v3671, %v3669
      %v3928 = vpack.c.b16 %v3672, %v3670
      %4185 = vmatprep.subr.bf16.mxu0 %v3674
      %4186 = vmatpush1.bf16.msra.mxu0 %v3673
      %4187 = vmatprep.subr.bf16.mxu0 %v3676
      %4188 = vmatpush1.bf16.msra.mxu0 %v3675
      %4189 = vmatprep.subr.bf16.mxu0 %v3678
      %4190 = vmatpush1.bf16.msra.mxu0 %v3677
      %4191 = vmatprep.subr.bf16.mxu0 %v3680
      %4192 = vmatpush1.bf16.msra.mxu0 %v3679
      %4193 = vmatprep.subr.bf16.mxu0 %v3682
      %4194 = vmatpush1.bf16.msra.mxu0 %v3681
      %4195 = vmatprep.subr.bf16.mxu0 %v3684
      %4196 = vmatpush1.bf16.msra.mxu0 %v3683
      %4197 = vmatprep.subr.bf16.mxu0 %v3686
      %4198 = vmatpush1.bf16.msra.mxu0 %v3685
      %4199 = vmatprep.subr.bf16.mxu0 %v3688
      %4200 = vmatpush1.bf16.msra.mxu0 %v3687
      %4201 = vmatprep.subr.bf16.mxu0 %v3690
      %4202 = vmatpush1.bf16.msra.mxu0 %v3689
      %4203 = vmatprep.subr.bf16.mxu0 %v3692
      %4204 = vmatpush1.bf16.msra.mxu0 %v3691
      %4205 = vmatprep.subr.bf16.mxu0 %v3694
      %4206 = vmatpush1.bf16.msra.mxu0 %v3693
      %4207 = vmatprep.subr.bf16.mxu0 %v3696
      %4208 = vmatpush1.bf16.msra.mxu0 %v3695
      %4209 = vmatprep.subr.bf16.mxu0 %v3698
      %4210 = vmatpush1.bf16.msra.mxu0 %v3697
      %4211 = vmatprep.subr.bf16.mxu0 %v3700
      %4212 = vmatpush1.bf16.msra.mxu0 %v3699
      %4213 = vmatprep.subr.bf16.mxu0 %v3702
      %4214 = vmatpush1.bf16.msra.mxu0 %v3701
      %4215 = vmatprep.subr.bf16.mxu0 %v3704
      %4216 = vmatpush1.bf16.msra.mxu0 %v3703
      %4217 = vmatprep.mubr.bf16.mxu0 %v2622
      %4218 = vmatmul.mubr.bf16.gmra.mrb[0].mxu0 %v2621
      %v4219 = vpop.f32.mrb[0].mxu0
      %v4220 = vadd.f32 %v2898, %v4219
      %v4221 = vpop.f32.mrb[0].mxu0
      %v4222 = vadd.f32 %v2902, %v4221
      %v4223 = vpop.f32.mrb[0].mxu0
      %v4224 = vadd.f32 %v2898, %v4223
      %v4225 = vpop.f32.mrb[0].mxu0
      %v4226 = vadd.f32 %v2902, %v4225
      %4227 = vdwg.mxu0
      %4228 = vmatprep.subr.bf16.mxu0 %v3706
      %4229 = vmatpush1.bf16.msra.mxu0 %v3705
      %4230 = vmatprep.subr.bf16.mxu0 %v3708
      %4231 = vmatpush1.bf16.msra.mxu0 %v3707
      %4232 = vmatprep.subr.bf16.mxu0 %v3710
      %4233 = vmatpush1.bf16.msra.mxu0 %v3709
      %4234 = vmatprep.subr.bf16.mxu0 %v3712
      %4235 = vmatpush1.bf16.msra.mxu0 %v3711
      %4236 = vmatprep.subr.bf16.mxu0 %v3714
      %4237 = vmatpush1.bf16.msra.mxu0 %v3713
      %4238 = vmatprep.subr.bf16.mxu0 %v3716
      %4239 = vmatpush1.bf16.msra.mxu0 %v3715
      %4240 = vmatprep.subr.bf16.mxu0 %v3718
      %4241 = vmatpush1.bf16.msra.mxu0 %v3717
      %4242 = vmatprep.subr.bf16.mxu0 %v3720
      %4243 = vmatpush1.bf16.msra.mxu0 %v3719
      %4244 = vmatprep.subr.bf16.mxu0 %v3722
      %4245 = vmatpush1.bf16.msra.mxu0 %v3721
      %4246 = vmatprep.subr.bf16.mxu0 %v3724
      %4247 = vmatpush1.bf16.msra.mxu0 %v3723
      %4248 = vmatprep.subr.bf16.mxu0 %v3726
      %4249 = vmatpush1.bf16.msra.mxu0 %v3725
      %4250 = vmatprep.subr.bf16.mxu0 %v3728
      %4251 = vmatpush1.bf16.msra.mxu0 %v3727
      %4252 = vmatprep.subr.bf16.mxu0 %v3730
      %4253 = vmatpush1.bf16.msra.mxu0 %v3729
      %4254 = vmatprep.subr.bf16.mxu0 %v3732
      %4255 = vmatpush1.bf16.msra.mxu0 %v3731
      %4256 = vmatprep.subr.bf16.mxu0 %v3734
      %4257 = vmatpush1.bf16.msra.mxu0 %v3733
      %4258 = vmatprep.subr.bf16.mxu0 %v3736
      %4259 = vmatpush1.bf16.msra.mxu0 %v3735
      %4260 = vmatprep.mubr.bf16.mxu0 %v2624
      %4261 = vmatmul.mubr.bf16.gmra.mrb[0].mxu0 %v2623
      %v4262 = vpop.f32.mrb[0].mxu0
      %v4263 = vadd.f32 %v4220, %v4262
      %v4264 = vpop.f32.mrb[0].mxu0
      %v4265 = vadd.f32 %v4222, %v4264
      %v4266 = vpop.f32.mrb[0].mxu0
      %v4267 = vadd.f32 %v4224, %v4266
      %v4268 = vpop.f32.mrb[0].mxu0
      %v4269 = vadd.f32 %v4226, %v4268
      %4270 = vdwg.mxu0
      %4271 = vmatprep.subr.bf16.mxu0 %v3738
      %4272 = vmatpush1.bf16.msra.mxu0 %v3737
      %4273 = vmatprep.subr.bf16.mxu0 %v3740
      %4274 = vmatpush1.bf16.msra.mxu0 %v3739
      %4275 = vmatprep.subr.bf16.mxu0 %v3742
      %4276 = vmatpush1.bf16.msra.mxu0 %v3741
      %4277 = vmatprep.subr.bf16.mxu0 %v3744
      %4278 = vmatpush1.bf16.msra.mxu0 %v3743
      %4279 = vmatprep.subr.bf16.mxu0 %v3746
      %4280 = vmatpush1.bf16.msra.mxu0 %v3745
      %4281 = vmatprep.subr.bf16.mxu0 %v3748
      %4282 = vmatpush1.bf16.msra.mxu0 %v3747
      %4283 = vmatprep.subr.bf16.mxu0 %v3750
      %4284 = vmatpush1.bf16.msra.mxu0 %v3749
      %4285 = vmatprep.subr.bf16.mxu0 %v3752
      %4286 = vmatpush1.bf16.msra.mxu0 %v3751
      %4287 = vmatprep.subr.bf16.mxu0 %v3754
      %4288 = vmatpush1.bf16.msra.mxu0 %v3753
      %4289 = vmatprep.subr.bf16.mxu0 %v3756
      %4290 = vmatpush1.bf16.msra.mxu0 %v3755
      %4291 = vmatprep.subr.bf16.mxu0 %v3758
      %4292 = vmatpush1.bf16.msra.mxu0 %v3757
      %4293 = vmatprep.subr.bf16.mxu0 %v3760
      %4294 = vmatpush1.bf16.msra.mxu0 %v3759
      %4295 = vmatprep.subr.bf16.mxu0 %v3762
      %4296 = vmatpush1.bf16.msra.mxu0 %v3761
      %4297 = vmatprep.subr.bf16.mxu0 %v3764
      %4298 = vmatpush1.bf16.msra.mxu0 %v3763
      %4299 = vmatprep.subr.bf16.mxu0 %v3766
      %4300 = vmatpush1.bf16.msra.mxu0 %v3765
      %4301 = vmatprep.subr.bf16.mxu0 %v3768
      %4302 = vmatpush1.bf16.msra.mxu0 %v3767
      %4303 = vmatprep.mubr.bf16.mxu0 %v2626
      %4304 = vmatmul.mubr.bf16.gmra.mrb[0].mxu0 %v2625
      %v4305 = vpop.f32.mrb[0].mxu0
      %v4306 = vadd.f32 %v4263, %v4305
      %v4307 = vpop.f32.mrb[0].mxu0
      %v4308 = vadd.f32 %v4265, %v4307
      %v4309 = vpop.f32.mrb[0].mxu0
      %v4310 = vadd.f32 %v4267, %v4309
      %v4311 = vpop.f32.mrb[0].mxu0
      %v4312 = vadd.f32 %v4269, %v4311
      %4313 = vdwg.mxu0
      %4314 = vmatprep.subr.bf16.mxu0 %v3770
      %4315 = vmatpush1.bf16.msra.mxu0 %v3769
      %4316 = vmatprep.subr.bf16.mxu0 %v3772
      %4317 = vmatpush1.bf16.msra.mxu0 %v3771
      %4318 = vmatprep.subr.bf16.mxu0 %v3774
      %4319 = vmatpush1.bf16.msra.mxu0 %v3773
      %4320 = vmatprep.subr.bf16.mxu0 %v3776
      %4321 = vmatpush1.bf16.msra.mxu0 %v3775
      %4322 = vmatprep.subr.bf16.mxu0 %v3778
      %4323 = vmatpush1.bf16.msra.mxu0 %v3777
      %4324 = vmatprep.subr.bf16.mxu0 %v3780
      %4325 = vmatpush1.bf16.msra.mxu0 %v3779
      %4326 = vmatprep.subr.bf16.mxu0 %v3782
      %4327 = vmatpush1.bf16.msra.mxu0 %v3781
      %4328 = vmatprep.subr.bf16.mxu0 %v3784
      %4329 = vmatpush1.bf16.msra.mxu0 %v3783
      %4330 = vmatprep.subr.bf16.mxu0 %v3786
      %4331 = vmatpush1.bf16.msra.mxu0 %v3785
      %4332 = vmatprep.subr.bf16.mxu0 %v3788
      %4333 = vmatpush1.bf16.msra.mxu0 %v3787
      %4334 = vmatprep.subr.bf16.mxu0 %v3790
      %4335 = vmatpush1.bf16.msra.mxu0 %v3789
      %4336 = vmatprep.subr.bf16.mxu0 %v3792
      %4337 = vmatpush1.bf16.msra.mxu0 %v3791
      %4338 = vmatprep.subr.bf16.mxu0 %v3794
      %4339 = vmatpush1.bf16.msra.mxu0 %v3793
      %4340 = vmatprep.subr.bf16.mxu0 %v3796
      %4341 = vmatpush1.bf16.msra.mxu0 %v3795
      %4342 = vmatprep.subr.bf16.mxu0 %v3798
      %4343 = vmatpush1.bf16.msra.mxu0 %v3797
      %4344 = vmatprep.subr.bf16.mxu0 %v3800
      %4345 = vmatpush1.bf16.msra.mxu0 %v3799
      %4346 = vmatprep.mubr.bf16.mxu0 %v2628
      %4347 = vmatmul.mubr.bf16.gmra.mrb[0].mxu0 %v2627
      %v4348 = vpop.f32.mrb[0].mxu0
      %v4349 = vadd.f32 %v4306, %v4348
      %v4350 = vpop.f32.mrb[0].mxu0
      %v4351 = vadd.f32 %v4308, %v4350
      %v4352 = vpop.f32.mrb[0].mxu0
      %v4353 = vadd.f32 %v4310, %v4352
      %v4354 = vpop.f32.mrb[0].mxu0
      %v4355 = vadd.f32 %v4312, %v4354
      %4356 = vdwg.mxu0
      %4357 = vmatprep.subr.bf16.mxu0 %v3802
      %4358 = vmatpush1.bf16.msra.mxu0 %v3801
      %4359 = vmatprep.subr.bf16.mxu0 %v3804
      %4360 = vmatpush1.bf16.msra.mxu0 %v3803
      %4361 = vmatprep.subr.bf16.mxu0 %v3806
      %4362 = vmatpush1.bf16.msra.mxu0 %v3805
      %4363 = vmatprep.subr.bf16.mxu0 %v3808
      %4364 = vmatpush1.bf16.msra.mxu0 %v3807
      %4365 = vmatprep.subr.bf16.mxu0 %v3810
      %4366 = vmatpush1.bf16.msra.mxu0 %v3809
      %4367 = vmatprep.subr.bf16.mxu0 %v3812
      %4368 = vmatpush1.bf16.msra.mxu0 %v3811
      %4369 = vmatprep.subr.bf16.mxu0 %v3814
      %4370 = vmatpush1.bf16.msra.mxu0 %v3813
      %4371 = vmatprep.subr.bf16.mxu0 %v3816
      %4372 = vmatpush1.bf16.msra.mxu0 %v3815
      %4373 = vmatprep.subr.bf16.mxu0 %v3818
      %4374 = vmatpush1.bf16.msra.mxu0 %v3817
      %4375 = vmatprep.subr.bf16.mxu0 %v3820
      %4376 = vmatpush1.bf16.msra.mxu0 %v3819
      %4377 = vmatprep.subr.bf16.mxu0 %v3822
      %4378 = vmatpush1.bf16.msra.mxu0 %v3821
      %4379 = vmatprep.subr.bf16.mxu0 %v3824
      %4380 = vmatpush1.bf16.msra.mxu0 %v3823
      %4381 = vmatprep.subr.bf16.mxu0 %v3826
      %4382 = vmatpush1.bf16.msra.mxu0 %v3825
      %4383 = vmatprep.subr.bf16.mxu0 %v3828
      %4384 = vmatpush1.bf16.msra.mxu0 %v3827
      %4385 = vmatprep.subr.bf16.mxu0 %v3830
      %4386 = vmatpush1.bf16.msra.mxu0 %v3829
      %4387 = vmatprep.subr.bf16.mxu0 %v3832
      %4388 = vmatpush1.bf16.msra.mxu0 %v3831
      %4389 = vmatprep.mubr.bf16.mxu0 %v2630
      %4390 = vmatmul.mubr.bf16.gmra.mrb[0].mxu0 %v2629
      %v4391 = vpop.f32.mrb[0].mxu0
      %v4392 = vadd.f32 %v4349, %v4391
      %v4393 = vpop.f32.mrb[0].mxu0
      %v4394 = vadd.f32 %v4351, %v4393
      %v4395 = vpop.f32.mrb[0].mxu0
      %v4396 = vadd.f32 %v4353, %v4395
      %v4397 = vpop.f32.mrb[0].mxu0
      %v4398 = vadd.f32 %v4355, %v4397
      %4399 = vdwg.mxu0
      %4400 = vmatprep.subr.bf16.mxu0 %v3834
      %4401 = vmatpush1.bf16.msra.mxu0 %v3833
      %4402 = vmatprep.subr.bf16.mxu0 %v3836
      %4403 = vmatpush1.bf16.msra.mxu0 %v3835
      %4404 = vmatprep.subr.bf16.mxu0 %v3838
      %4405 = vmatpush1.bf16.msra.mxu0 %v3837
      %4406 = vmatprep.subr.bf16.mxu0 %v3840
      %4407 = vmatpush1.bf16.msra.mxu0 %v3839
      %4408 = vmatprep.subr.bf16.mxu0 %v3842
      %4409 = vmatpush1.bf16.msra.mxu0 %v3841
      %4410 = vmatprep.subr.bf16.mxu0 %v3844
      %4411 = vmatpush1.bf16.msra.mxu0 %v3843
      %4412 = vmatprep.subr.bf16.mxu0 %v3846
      %4413 = vmatpush1.bf16.msra.mxu0 %v3845
      %4414 = vmatprep.subr.bf16.mxu0 %v3848
      %4415 = vmatpush1.bf16.msra.mxu0 %v3847
      %4416 = vmatprep.subr.bf16.mxu0 %v3850
      %4417 = vmatpush1.bf16.msra.mxu0 %v3849
      %4418 = vmatprep.subr.bf16.mxu0 %v3852
      %4419 = vmatpush1.bf16.msra.mxu0 %v3851
      %4420 = vmatprep.subr.bf16.mxu0 %v3854
      %4421 = vmatpush1.bf16.msra.mxu0 %v3853
      %4422 = vmatprep.subr.bf16.mxu0 %v3856
      %4423 = vmatpush1.bf16.msra.mxu0 %v3855
      %4424 = vmatprep.subr.bf16.mxu0 %v3858
      %4425 = vmatpush1.bf16.msra.mxu0 %v3857
      %4426 = vmatprep.subr.bf16.mxu0 %v3860
      %4427 = vmatpush1.bf16.msra.mxu0 %v3859
      %4428 = vmatprep.subr.bf16.mxu0 %v3862
      %4429 = vmatpush1.bf16.msra.mxu0 %v3861
      %4430 = vmatprep.subr.bf16.mxu0 %v3864
      %4431 = vmatpush1.bf16.msra.mxu0 %v3863
      %4432 = vmatprep.mubr.bf16.mxu0 %v2632
      %4433 = vmatmul.mubr.bf16.gmra.mrb[0].mxu0 %v2631
      %v4434 = vpop.f32.mrb[0].mxu0
      %v4435 = vadd.f32 %v4392, %v4434
      %v4436 = vpop.f32.mrb[0].mxu0
      %v4437 = vadd.f32 %v4394, %v4436
      %v4438 = vpop.f32.mrb[0].mxu0
      %v4439 = vadd.f32 %v4396, %v4438
      %v4440 = vpop.f32.mrb[0].mxu0
      %v4441 = vadd.f32 %v4398, %v4440
      %4442 = vdwg.mxu0
      %4443 = vmatprep.subr.bf16.mxu0 %v3866
      %4444 = vmatpush1.bf16.msra.mxu0 %v3865
      %4445 = vmatprep.subr.bf16.mxu0 %v3868
      %4446 = vmatpush1.bf16.msra.mxu0 %v3867
      %4447 = vmatprep.subr.bf16.mxu0 %v3870
      %4448 = vmatpush1.bf16.msra.mxu0 %v3869
      %4449 = vmatprep.subr.bf16.mxu0 %v3872
      %4450 = vmatpush1.bf16.msra.mxu0 %v3871
      %4451 = vmatprep.subr.bf16.mxu0 %v3874
      %4452 = vmatpush1.bf16.msra.mxu0 %v3873
      %4453 = vmatprep.subr.bf16.mxu0 %v3876
      %4454 = vmatpush1.bf16.msra.mxu0 %v3875
      %4455 = vmatprep.subr.bf16.mxu0 %v3878
      %4456 = vmatpush1.bf16.msra.mxu0 %v3877
      %4457 = vmatprep.subr.bf16.mxu0 %v3880
      %4458 = vmatpush1.bf16.msra.mxu0 %v3879
      %4459 = vmatprep.subr.bf16.mxu0 %v3882
      %4460 = vmatpush1.bf16.msra.mxu0 %v3881
      %4461 = vmatprep.subr.bf16.mxu0 %v3884
      %4462 = vmatpush1.bf16.msra.mxu0 %v3883
      %4463 = vmatprep.subr.bf16.mxu0 %v3886
      %4464 = vmatpush1.bf16.msra.mxu0 %v3885
      %4465 = vmatprep.subr.bf16.mxu0 %v3888
      %4466 = vmatpush1.bf16.msra.mxu0 %v3887
      %4467 = vmatprep.subr.bf16.mxu0 %v3890
      %4468 = vmatpush1.bf16.msra.mxu0 %v3889
      %4469 = vmatprep.subr.bf16.mxu0 %v3892
      %4470 = vmatpush1.bf16.msra.mxu0 %v3891
      %4471 = vmatprep.subr.bf16.mxu0 %v3894
      %4472 = vmatpush1.bf16.msra.mxu0 %v3893
      %4473 = vmatprep.subr.bf16.mxu0 %v3896
      %4474 = vmatpush1.bf16.msra.mxu0 %v3895
      %4475 = vmatprep.mubr.bf16.mxu0 %v2634
      %4476 = vmatmul.mubr.bf16.gmra.mrb[0].mxu0 %v2633
      %v4477 = vpop.f32.mrb[0].mxu0
      %v4478 = vadd.f32 %v4435, %v4477
      %v4479 = vpop.f32.mrb[0].mxu0
      %v4480 = vadd.f32 %v4437, %v4479
      %v4481 = vpop.f32.mrb[0].mxu0
      %v4482 = vadd.f32 %v4439, %v4481
      %v4483 = vpop.f32.mrb[0].mxu0
      %v4484 = vadd.f32 %v4441, %v4483
      %4485 = vdwg.mxu0
      %4486 = vmatprep.subr.bf16.mxu0 %v3898
      %4487 = vmatpush1.bf16.msra.mxu0 %v3897
      %4488 = vmatprep.subr.bf16.mxu0 %v3900
      %4489 = vmatpush1.bf16.msra.mxu0 %v3899
      %4490 = vmatprep.subr.bf16.mxu0 %v3902
      %4491 = vmatpush1.bf16.msra.mxu0 %v3901
      %4492 = vmatprep.subr.bf16.mxu0 %v3904
      %4493 = vmatpush1.bf16.msra.mxu0 %v3903
      %4494 = vmatprep.subr.bf16.mxu0 %v3906
      %4495 = vmatpush1.bf16.msra.mxu0 %v3905
      %4496 = vmatprep.subr.bf16.mxu0 %v3908
      %4497 = vmatpush1.bf16.msra.mxu0 %v3907
      %4498 = vmatprep.subr.bf16.mxu0 %v3910
      %4499 = vmatpush1.bf16.msra.mxu0 %v3909
      %4500 = vmatprep.subr.bf16.mxu0 %v3912
      %4501 = vmatpush1.bf16.msra.mxu0 %v3911
      %4502 = vmatprep.subr.bf16.mxu0 %v3914
      %4503 = vmatpush1.bf16.msra.mxu0 %v3913
      %4504 = vmatprep.subr.bf16.mxu0 %v3916
      %4505 = vmatpush1.bf16.msra.mxu0 %v3915
      %4506 = vmatprep.subr.bf16.mxu0 %v3918
      %4507 = vmatpush1.bf16.msra.mxu0 %v3917
      %4508 = vmatprep.subr.bf16.mxu0 %v3920
      %4509 = vmatpush1.bf16.msra.mxu0 %v3919
      %4510 = vmatprep.subr.bf16.mxu0 %v3922
      %4511 = vmatpush1.bf16.msra.mxu0 %v3921
      %4512 = vmatprep.subr.bf16.mxu0 %v3924
      %4513 = vmatpush1.bf16.msra.mxu0 %v3923
      %4514 = vmatprep.subr.bf16.mxu0 %v3926
      %4515 = vmatpush1.bf16.msra.mxu0 %v3925
      %4516 = vmatprep.subr.bf16.mxu0 %v3928
      %4517 = vmatpush1.bf16.msra.mxu0 %v3927
      %4518 = vmatprep.mubr.bf16.mxu0 %v2636
      %4519 = vmatmul.mubr.bf16.gmra.mrb[0].mxu0 %v2635
      %v4520 = vpop.f32.mrb[0].mxu0
      %v4521 = vadd.f32 %v4478, %v4520
      %v4522 = vpop.f32.mrb[0].mxu0
      %v4523 = vadd.f32 %v4480, %v4522
      %v4524 = vpop.f32.mrb[0].mxu0
      %v4525 = vadd.f32 %v4482, %v4524
      %v4526 = vpop.f32.mrb[0].mxu0
      %v4527 = vadd.f32 %v4484, %v4526
      %4528 = vdwg.mxu0
      %4529 = vst [vmem:[#allocation3] sm:$0xff] %v4521
      %4530 = vst [vmem:[#allocation3 + $0x8] sm:$0xff] %v4523
      %4531 = vst [vmem:[#allocation3 + $0x10] sm:$0xff] %v4525
      %4532 = vst [vmem:[#allocation3 + $0x18] sm:$0xff] %v4527
    $region29: #{generator_forward.1} parent=1 // pred_fallthru
      _
    // Predicated region
    $region30: #{generator_forward.1} parent=1 // pred_check
      _
    $region31: #{generator_forward.1} parent=1 // pred_check_branch
      %4534 = sbr.rel (0) target = $region33
    $region32: #{generator_forward.1} parent=1 // pred_region
      %s4536 = ssub.s32 512, 512
      %4537 = vsyncadd [#allocation4], %s4536
      %s4538 = sshll.u32 [#allocation3], 4
      %s4539 = int_to_ptr.vmem [resolvable:$true] %s4538
      %4544 = dma.vmem_to_hbm [thread:$0]  %s4539, 512, %s5, [#allocation4], 256, 256, 16
    $region33: #{generator_forward.1} parent=1 // pred_fallthru
      _
    // Predicated region
    $region34: #{generator_forward.1} parent=1 // pred_check
      _
    $region35: #{generator_forward.1} parent=1 // pred_check_branch
      %4546 = sbr.rel (0) target = $region37
    $region36: #{generator_forward.1} parent=1 // pred_region
      %4547 = dma.done [#allocation4], 512
    $region37: #{generator_forward.1} parent=1 // pred_fallthru
      _
    %4548 = vsyncpa [#allocation4], 1

</llo_original>
